<compile_context>
chip_gen: v6e
topology: v6e:2x2x1
jax: 0.10.0
libtpu: 0.0.40
codegen_flags: <defaults>
</compile_context>

<pallas_src>
import functools
import math

import jax
import jax.numpy as jnp
from jax import lax
from jax.experimental import pallas as pl
from jax.experimental.pallas import tpu as pltpu

_INV_SQRT2 = 1.0 / math.sqrt(2.0)


# ----------------------------- small helpers --------------------------------

@functools.lru_cache(maxsize=None)
def _vmem_limit():
    """Generation-aware scoped-VMEM cap: ~100 MiB on 128 MiB parts (v5e/v6e),
    capacity minus 8 MiB headroom on 64 MiB parts (v7x); safe fallback otherwise."""
    try:
        cap = getattr(pltpu.get_tpu_info(), "vmem_capacity_bytes", None)
    except Exception:
        cap = None
    if not cap:
        cap = 64 * 1024 * 1024
    return int(min(cap - 8 * 1024 * 1024, 100 * 1024 * 1024))


def _params(*sem):
    return pltpu.CompilerParams(dimension_semantics=sem,
                                vmem_limit_bytes=_vmem_limit())


def _fit(dim, desired, align):
    """Largest tile <= desired that divides `dim` and is a multiple of `align`;
    full-axis fallback (a full-extent block is always layout-legal)."""
    if dim <= desired:
        return dim
    t = (desired // align) * align
    while t >= align:
        if dim % t == 0:
            return t
        t -= align
    return dim


def _erf(x):
    # Abramowitz & Stegun 7.1.26 rational approximation, |err| < 1.5e-7 (far below bf16
    # resolution), built only from ops with guaranteed Mosaic lowerings (exp, mul, add, where).
    a1, a2, a3, a4, a5 = 0.254829592, -0.284496736, 1.421413741, -1.453152027, 1.061405429
    p = 0.3275911
    sgn = jnp.where(x >= 0.0, 1.0, -1.0)
    ax = jnp.abs(x)
    t = 1.0 / (1.0 + p * ax)
    poly = ((((a5 * t + a4) * t + a3) * t + a2) * t + a1) * t
    return sgn * (1.0 - poly * jnp.exp(-ax * ax))


def _gelu(x):
    # HF BERT "gelu" (exact erf form)
    return 0.5 * x * (1.0 + _erf(x * _INV_SQRT2))


def _layernorm(y, g, b):
    mu = jnp.mean(y, axis=-1, keepdims=True)
    var = jnp.mean(jnp.square(y - mu), axis=-1, keepdims=True)
    return (y - mu) * lax.rsqrt(var + 1e-12) * g + b


# ---------------- fused embedding epilogue: (+pos +type) -> LayerNorm -------

def _embed_ln_kernel(x_ref, pos_ref, type_ref, g_ref, b_ref, o_ref):
    y = (x_ref[0].astype(jnp.float32) + pos_ref[...].astype(jnp.float32)
         + type_ref[...].astype(jnp.float32))
    o_ref[0] = _layernorm(y, g_ref[...], b_ref[...]).astype(o_ref.dtype)


def embed_layernorm(x, pos, type_row, g, b, *, out_dtype):
    B, S, H = x.shape
    return pl.pallas_call(
        _embed_ln_kernel,
        out_shape=jax.ShapeDtypeStruct((B, S, H), out_dtype),
        grid=(B,),
        in_specs=[
            pl.BlockSpec((1, S, H), lambda i: (i, 0, 0)),
            pl.BlockSpec((S, H), lambda i: (0, 0)),      # pos rows, VMEM-resident
            pl.BlockSpec((1, H), lambda i: (0, 0)),      # token-type-0 row
            pl.BlockSpec((1, H), lambda i: (0, 0)),
            pl.BlockSpec((1, H), lambda i: (0, 0)),
        ],
        out_specs=pl.BlockSpec((1, S, H), lambda i: (i, 0, 0)),
        compiler_params=_params("parallel"),
    )(x, pos, type_row, g.reshape(1, H), b.reshape(1, H))


# --------------- linear with VMEM-resident weight (fused QKV proj) ----------

def _linear_kernel(x_ref, w_ref, b_ref, o_ref):
    y = jnp.dot(x_ref[...], w_ref[...], preferred_element_type=jnp.float32)
    o_ref[...] = (y + b_ref[...].astype(jnp.float32)).astype(o_ref.dtype)


def linear(x, w, b, *, out_dtype=jnp.bfloat16, tm=512):
    M, K = x.shape
    N = w.shape[1]
    tm = _fit(M, tm, 8)
    return pl.pallas_call(
        _linear_kernel,
        out_shape=jax.ShapeDtypeStruct((M, N), out_dtype),
        grid=(M // tm,),
        in_specs=[
            pl.BlockSpec((tm, K), lambda i: (i, 0)),
            pl.BlockSpec((K, N), lambda i: (0, 0)),      # weight DMA'd once, stays resident
            pl.BlockSpec((1, N), lambda i: (0, 0)),
        ],
        out_specs=pl.BlockSpec((tm, N), lambda i: (i, 0)),
        compiler_params=_params("parallel"),
    )(x, w, b.reshape(1, N))


# -------- attention out-projection + bias + residual + LayerNorm (fused) ----

def _proj_res_ln_kernel(x_ref, w_ref, b_ref, r_ref, g_ref, beta_ref, o_ref):
    y = jnp.dot(x_ref[...], w_ref[...], preferred_element_type=jnp.float32)
    y = y + b_ref[...].astype(jnp.float32) + r_ref[...].astype(jnp.float32)
    o_ref[...] = _layernorm(y, g_ref[...], beta_ref[...]).astype(o_ref.dtype)


def linear_residual_ln(x, w, b, residual, g, beta, *, out_dtype=jnp.bfloat16, tm=512):
    M, K = x.shape
    N = w.shape[1]
    tm = _fit(M, tm, 8)
    return pl.pallas_call(
        _proj_res_ln_kernel,
        out_shape=jax.ShapeDtypeStruct((M, N), out_dtype),
        grid=(M // tm,),
        in_specs=[
            pl.BlockSpec((tm, K), lambda i: (i, 0)),
            pl.BlockSpec((K, N), lambda i: (0, 0)),      # Wo resident
            pl.BlockSpec((1, N), lambda i: (0, 0)),
            pl.BlockSpec((tm, N), lambda i: (i, 0)),     # residual
            pl.BlockSpec((1, N), lambda i: (0, 0)),      # LN gamma
            pl.BlockSpec((1, N), lambda i: (0, 0)),      # LN beta
        ],
        out_specs=pl.BlockSpec((tm, N), lambda i: (i, 0)),
        compiler_params=_params("parallel"),
    )(x, w, b.reshape(1, N), residual, g.reshape(1, N), beta.reshape(1, N))


# ---- fused FFN: gelu(x@Wi+bi) @ Wo2 + bo2 + residual -> LayerNorm ----------

def _ffn_kernel(x_ref, wi_ref, bi_ref, wo_ref, bo_ref, g_ref, beta_ref,
                o_ref, acc_ref, *, ti):
    x = x_ref[...]
    acc_ref[...] = jnp.zeros_like(acc_ref)
    # Walk the intermediate dim in ti-wide chunks: the (tm, ti) activation lives only in
    # VMEM/vregs (never HBM); accumulating through the VMEM scratch bounds each chunk's
    # live range and the chunk count is small (I/ti, e.g. 12 at BERT-base).
    for c in range(wi_ref.shape[1] // ti):
        cs = slice(c * ti, (c + 1) * ti)
        h = jnp.dot(x, wi_ref[:, cs], preferred_element_type=jnp.float32)
        h = _gelu(h + bi_ref[:, cs].astype(jnp.float32))
        acc_ref[...] += jnp.dot(h.astype(wo_ref.dtype), wo_ref[cs, :],
                                preferred_element_type=jnp.float32)
    y = acc_ref[...] + bo_ref[...].astype(jnp.float32) + x.astype(jnp.float32)
    o_ref[...] = _layernorm(y, g_ref[...], beta_ref[...]).astype(o_ref.dtype)


def ffn(x, wi, bi, wo2, bo2, g, beta, *, out_dtype=jnp.bfloat16, tm=512, ti=256):
    M, H = x.shape
    I = wi.shape[1]
    tm = _fit(M, tm, 8)
    ti = _fit(I, ti, 128)
    return pl.pallas_call(
        functools.partial(_ffn_kernel, ti=ti),
        out_shape=jax.ShapeDtypeStruct((M, H), out_dtype),
        grid=(M // tm,),
        in_specs=[
            pl.BlockSpec((tm, H), lambda m: (m, 0)),     # x (also the residual)
            pl.BlockSpec((H, I), lambda m: (0, 0)),      # Wi  (VMEM-resident)
            pl.BlockSpec((1, I), lambda m: (0, 0)),      # bi
            pl.BlockSpec((I, H), lambda m: (0, 0)),      # Wo2 (VMEM-resident)
            pl.BlockSpec((1, H), lambda m: (0, 0)),      # bo2
            pl.BlockSpec((1, H), lambda m: (0, 0)),      # LN gamma
            pl.BlockSpec((1, H), lambda m: (0, 0)),      # LN beta
        ],
        out_specs=pl.BlockSpec((tm, H), lambda m: (m, 0)),
        scratch_shapes=[pltpu.VMEM((tm, H), jnp.float32)],
        compiler_params=_params("parallel"),
    )(x, wi, bi.reshape(1, I), wo2, bo2.reshape(1, H),
      g.reshape(1, H), beta.reshape(1, H))


# ------------------------------ attention -----------------------------------

def _attn_kernel(q_ref, k_ref, v_ref, bias_ref, o_ref, *, heads_per_block, head_dim):
    bias = bias_ref[0].astype(jnp.float32)               # (1, T) additive key mask
    scale = 1.0 / math.sqrt(head_dim)
    ctx = []
    for h in range(heads_per_block):                      # <= 2 heads live at any time
        hs = slice(h * head_dim, (h + 1) * head_dim)
        q, k, v = q_ref[0, :, hs], k_ref[0, :, hs], v_ref[0, :, hs]
        s = lax.dot_general(q, k, (((1,), (1,)), ((), ())),
                            preferred_element_type=jnp.float32) * scale + bias
        s = s - jnp.max(s, axis=-1, keepdims=True)
        p = jnp.exp(s)
        # approx reciprocal runs on the EUP slot; error << bf16 output resolution
        p = p * pl.reciprocal(jnp.sum(p, axis=-1, keepdims=True), approx=True)
        ctx.append(jnp.dot(p.astype(v.dtype), v, preferred_element_type=jnp.float32))
    merged = ctx[0] if len(ctx) == 1 else jnp.concatenate(ctx, axis=-1)
    o_ref[0] = merged.astype(o_ref.dtype)                 # one lane-dense 128-wide store
    # TODO(synk): for sequences far beyond BERT's 512 tokens, tile the KV axis
    # flash-attention style instead of holding (T, T) scores in VMEM.


def _heads_per_block(num_heads, head_dim):
    # A 128-lane head group (2 heads at dh=64) keeps every slice vreg-aligned and every
    # store an unmasked 128-wide vst; fall back to all heads per step otherwise.
    if 128 % head_dim == 0 and num_heads % (128 // head_dim) == 0:
        return 128 // head_dim
    return num_heads


def attention(qkv, bias, *, num_heads, head_dim):
    B, T, _ = qkv.shape
    H = num_heads * head_dim
    hp = _heads_per_block(num_heads, head_dim)
    bw = hp * head_dim
    if bw % 128:
        raise NotImplementedError("head-group lane width must be a multiple of 128 "
                                  "(holds for BERT-base/large head layouts)")
    groups = H // bw
    kern = functools.partial(_attn_kernel, heads_per_block=hp, head_dim=head_dim)
    return pl.pallas_call(
        kern,
        out_shape=jax.ShapeDtypeStruct((B, T, H), jnp.bfloat16),
        grid=(B, groups),
        in_specs=[
            # same fused qkv array passed three times: lane-aligned Q / K / V slabs
            pl.BlockSpec((1, T, bw), lambda b, g: (b, 0, g)),
            pl.BlockSpec((1, T, bw), lambda b, g: (b, 0, groups + g)),
            pl.BlockSpec((1, T, bw), lambda b, g: (b, 0, 2 * groups + g)),
            pl.BlockSpec((1, 1, T), lambda b, g: (b, 0, 0)),
        ],
        out_specs=pl.BlockSpec((1, T, bw), lambda b, g: (b, 0, g)),
        compiler_params=_params("parallel", "parallel"),   # feeds v7x megacore even at B=1-2
    )(qkv, qkv, qkv, bias)


# ------------------------------ model wrapper -------------------------------

def init_params(key, cfg):
    H, I = cfg["hidden"], cfg["intermediate"]
    keys = iter(jax.random.split(key, 8 + 8 * cfg["layers"]))

    def nrm(shape, dtype=jnp.float32):
        return (jax.random.normal(next(keys), shape, jnp.float32) * 0.02).astype(dtype)

    params = {
        "word_emb": nrm((cfg["vocab"], H)),
        "pos_emb": nrm((cfg["max_pos"], H)),
        "type_emb": nrm((2, H)),
        "emb_ln_g": jnp.ones((H,), jnp.float32),
        "emb_ln_b": jnp.zeros((H,), jnp.float32),
        "soft_prompts": nrm((cfg["num_prompts"], H)),
        # start/end QA heads folded into one [H, 2] matrix (same math)
        "w_qa": nrm((H, 2)),
        "b_qa": jnp.zeros((2,), jnp.float32),
        "layers": [],
    }
    for _ in range(cfg["layers"]):
        params["layers"].append({
            "wqkv": nrm((H, 3 * H), jnp.bfloat16),     # fused Q/K/V projection
            "bqkv": jnp.zeros((3 * H,), jnp.float32),
            "wo": nrm((H, H), jnp.bfloat16),
            "bo": jnp.zeros((H,), jnp.float32),
            "ln1_g": jnp.ones((H,), jnp.float32),
            "ln1_b": jnp.zeros((H,), jnp.float32),
            "wi": nrm((H, I), jnp.bfloat16),
            "bi": jnp.zeros((I,), jnp.float32),
            "wo2": nrm((I, H), jnp.bfloat16),
            "bo2": jnp.zeros((H,), jnp.float32),
            "ln2_g": jnp.ones((H,), jnp.float32),
            "ln2_b": jnp.zeros((H,), jnp.float32),
        })
    return params


def prompted_bert_qa_forward(params, cfg, input_ids, attention_mask):
    B, S = input_ids.shape
    H = cfg["hidden"]
    P = cfg["num_prompts"]
    nh = cfg["heads"]
    dh = H // nh
    T = P + S
    T_pad = -(-T // 8) * 8                                 # sublane-aligned token count

    type_row = params["type_emb"][0:1]                     # token_type_ids == 0 everywhere

    # --- mbert.embeddings(input_seq): word + pos + type -> LayerNorm (fused kernel) ---
    we = jnp.take(params["word_emb"], input_ids, axis=0)                   # (B,S,H) f32
    emb = embed_layernorm(we, params["pos_emb"][:S], type_row,
                          params["emb_ln_g"], params["emb_ln_b"],
                          out_dtype=jnp.float32)                           # (B,S,H)

    # --- prepend soft prompts, extend mask with ones, pad seq to sublane multiple ---
    prompts = jnp.broadcast_to(params["soft_prompts"][None], (B, P, H))
    x = jnp.concatenate([prompts, emb], axis=1)                            # (B,T,H)
    mask = jnp.concatenate(
        [jnp.ones((B, P), jnp.float32), attention_mask.astype(jnp.float32)], axis=1)
    if T_pad != T:
        x = jnp.pad(x, ((0, 0), (0, T_pad - T), (0, 0)))
        mask = jnp.pad(mask, ((0, 0), (0, T_pad - T)))                     # padded keys masked out

    # --- BertModel embeddings on inputs_embeds (HF applies pos/type + LN again) ---
    x = embed_layernorm(x, params["pos_emb"][:T_pad], type_row,
                        params["emb_ln_g"], params["emb_ln_b"],
                        out_dtype=jnp.bfloat16)                            # (B,T_pad,H) bf16
    x = x.reshape(B * T_pad, H)

    bias = ((1.0 - mask) * -1e9)[:, None, :]                               # (B,1,T_pad) f32

    # --- transformer encoder layers ---
    for lp in params["layers"]:
        qkv = linear(x, lp["wqkv"], lp["bqkv"])                            # (M,3H) bf16
        ctx = attention(qkv.reshape(B, T_pad, 3 * H), bias,
                        num_heads=nh, head_dim=dh)                         # (B,T_pad,H)
        # TODO(synk): fuse attention with the out-projection (grid=(B, head_group) with an
        # out-proj accumulator) so qkv/ctx never round-trip HBM.
        x = linear_residual_ln(ctx.reshape(B * T_pad, H), lp["wo"], lp["bo"],
                               x, lp["ln1_g"], lp["ln1_b"])                # out-proj + add + LN
        x = ffn(x, lp["wi"], lp["bi"], lp["wo2"], lp["bo2"],
                lp["ln2_g"], lp["ln2_b"])                                  # fused FFN + add + LN

    # --- QA heads: tiny [H,2] matvec left to plain XLA (2-wide store would be fully masked) ---
    logits = x.astype(jnp.float32) @ params["w_qa"] + params["b_qa"]       # (M,2)
    logits = logits.reshape(B, T_pad, 2)[:, :T]
    return logits[..., 0], logits[..., 1]


if __name__ == "__main__":
    # Small shapes chosen so head pairing (2 heads x dh=64 = 128 lanes) matches the
    # BERT-base attention layout while staying tiny.
    cfg = dict(vocab=64, max_pos=64, hidden=128, heads=2, intermediate=512,
               layers=2, num_prompts=4)
    key = jax.random.PRNGKey(0)
    pkey, ikey = jax.random.split(key)
    params = init_params(pkey, cfg)

    B, S = 2, 12
    input_ids = jax.random.randint(ikey, (B, S), 0, cfg["vocab"], dtype=jnp.int32)
    # last two tokens of each sequence are padding
    attention_mask = jnp.concatenate(
        [jnp.ones((B, 10), jnp.float32), jnp.zeros((B, 2), jnp.float32)], axis=1)

    fwd = jax.jit(lambda p, ids, m: prompted_bert_qa_forward(p, cfg, ids, m))
    start_logits, end_logits = fwd(params, input_ids, attention_mask)
    jax.block_until_ready((start_logits, end_logits))

    T = cfg["num_prompts"] + S
    assert start_logits.shape == (B, T) and end_logits.shape == (B, T)
    assert bool(jnp.all(jnp.isfinite(start_logits)))
    assert bool(jnp.all(jnp.isfinite(end_logits)))
    print("KERNEL_OK")
</pallas_src>

<mosaic_0001>
module attributes {stable_mosaic.version = 11 : i64} {
  func.func @_embed_ln_kernel(%arg0: i32, %arg1: memref<1x16x128xf32, #tpu.memory_space<vmem>>, %arg2: memref<16x128xf32, #tpu.memory_space<vmem>>, %arg3: memref<1x128xf32, #tpu.memory_space<vmem>>, %arg4: memref<1x128xf32, #tpu.memory_space<vmem>>, %arg5: memref<1x128xf32, #tpu.memory_space<vmem>>, %arg6: memref<1x16x128xbf16, #tpu.memory_space<vmem>>) attributes {dimension_semantics = [#tpu.dimension_semantics<parallel>], iteration_bounds = array<i64: 2>, scalar_prefetch = 0 : i64, scratch_operands = 0 : i64, tpu.core_type = #tpu.core_type<tc>, window_params = [{transform_indices = @transform_0, window_bounds = array<i64: 1, 16, 128>}, {pipeline_mode = #tpu.pipeline_mode<synchronous>, transform_indices = @transform_1, window_bounds = array<i64: 16, 128>}, {pipeline_mode = #tpu.pipeline_mode<synchronous>, transform_indices = @transform_2, window_bounds = array<i64: 1, 128>}, {pipeline_mode = #tpu.pipeline_mode<synchronous>, transform_indices = @transform_3, window_bounds = array<i64: 1, 128>}, {pipeline_mode = #tpu.pipeline_mode<synchronous>, transform_indices = @transform_4, window_bounds = array<i64: 1, 128>}, {transform_indices = @transform_5, window_bounds = array<i64: 1, 16, 128>}]} {
    %c0 = arith.constant 0 : index
    %c0_0 = arith.constant 0 : index
    %c0_1 = arith.constant 0 : index
    %0 = vector.load %arg1[%c0, %c0_0, %c0_1] : memref<1x16x128xf32, #tpu.memory_space<vmem>>, vector<1x16x128xf32>
    %1 = vector.shape_cast %0 : vector<1x16x128xf32> to vector<16x128xf32>
    %c0_2 = arith.constant 0 : index
    %c0_3 = arith.constant 0 : index
    %2 = vector.load %arg2[%c0_2, %c0_3] : memref<16x128xf32, #tpu.memory_space<vmem>>, vector<16x128xf32>
    %3 = arith.addf %1, %2 : vector<16x128xf32>
    %c0_4 = arith.constant 0 : index
    %c0_5 = arith.constant 0 : index
    %4 = vector.load %arg3[%c0_4, %c0_5] : memref<1x128xf32, #tpu.memory_space<vmem>>, vector<1x128xf32>
    %5 = vector.broadcast %4 : vector<1x128xf32> to vector<16x128xf32>
    %6 = arith.addf %3, %5 : vector<16x128xf32>
    %c0_6 = arith.constant 0 : index
    %c0_7 = arith.constant 0 : index
    %7 = vector.load %arg4[%c0_6, %c0_7] : memref<1x128xf32, #tpu.memory_space<vmem>>, vector<1x128xf32>
    %c0_8 = arith.constant 0 : index
    %c0_9 = arith.constant 0 : index
    %8 = vector.load %arg5[%c0_8, %c0_9] : memref<1x128xf32, #tpu.memory_space<vmem>>, vector<1x128xf32>
    %cst = arith.constant dense<0.000000e+00> : vector<16xf32>
    %9 = vector.multi_reduction <add>, %6, %cst [1] : vector<16x128xf32> to vector<16xf32>
    %10 = vector.shape_cast %9 : vector<16xf32> to vector<16x1xf32>
    %cst_10 = arith.constant 1.280000e+02 : f32
    %11 = vector.broadcast %cst_10 : f32 to vector<16x1xf32>
    %12 = arith.divf %10, %11 : vector<16x1xf32>
    %13 = vector.broadcast %12 : vector<16x1xf32> to vector<16x128xf32>
    %14 = arith.subf %6, %13 : vector<16x128xf32>
    %15 = arith.mulf %14, %14 : vector<16x128xf32>
    %cst_11 = arith.constant dense<0.000000e+00> : vector<16xf32>
    %16 = vector.multi_reduction <add>, %15, %cst_11 [1] : vector<16x128xf32> to vector<16xf32>
    %17 = vector.shape_cast %16 : vector<16xf32> to vector<16x1xf32>
    %cst_12 = arith.constant 1.280000e+02 : f32
    %18 = vector.broadcast %cst_12 : f32 to vector<16x1xf32>
    %19 = arith.divf %17, %18 : vector<16x1xf32>
    %20 = vector.broadcast %12 : vector<16x1xf32> to vector<16x128xf32>
    %21 = arith.subf %6, %20 : vector<16x128xf32>
    %cst_13 = arith.constant 9.99999996E-13 : f32
    %22 = vector.broadcast %cst_13 : f32 to vector<16x1xf32>
    %23 = arith.addf %19, %22 : vector<16x1xf32>
    %24 = math.rsqrt %23 : vector<16x1xf32>
    %25 = vector.broadcast %24 : vector<16x1xf32> to vector<16x128xf32>
    %26 = arith.mulf %21, %25 : vector<16x128xf32>
    %27 = vector.broadcast %7 : vector<1x128xf32> to vector<16x128xf32>
    %28 = arith.mulf %26, %27 : vector<16x128xf32>
    %29 = vector.broadcast %8 : vector<1x128xf32> to vector<16x128xf32>
    %30 = arith.addf %28, %29 : vector<16x128xf32>
    %31 = arith.truncf %30 : vector<16x128xf32> to vector<16x128xbf16>
    %c0_14 = arith.constant 0 : index
    %c0_15 = arith.constant 0 : index
    %c0_16 = arith.constant 0 : index
    %32 = vector.load %arg6[%c0_14, %c0_15, %c0_16] : memref<1x16x128xbf16, #tpu.memory_space<vmem>>, vector<1x16x128xbf16>
    %33 = vector.shape_cast %32 : vector<1x16x128xbf16> to vector<16x128xbf16>
    %34 = vector.shape_cast %31 : vector<16x128xbf16> to vector<1x16x128xbf16>
    tpu.vector_store %arg6[%c0_14, %c0_15, %c0_16], %34 {strides = array<i32>} : memref<1x16x128xbf16, #tpu.memory_space<vmem>>, vector<1x16x128xbf16>,
    return
  }
  func.func @transform_0(%arg0: i32) -> (i32, i32, i32) {
    %c0_i32 = arith.constant 0 : i32
    %c0_i32_0 = arith.constant 0 : i32
    %c0_i32_1 = arith.constant 0 : i32
    return %arg0, %c0_i32, %c0_i32_0 : i32, i32, i32
  }
  func.func @transform_1(%arg0: i32) -> (i32, i32) {
    %c0_i32 = arith.constant 0 : i32
    %c0_i32_0 = arith.constant 0 : i32
    %c0_i32_1 = arith.constant 0 : i32
    return %c0_i32, %c0_i32_0 : i32, i32
  }
  func.func @transform_2(%arg0: i32) -> (i32, i32) {
    %c0_i32 = arith.constant 0 : i32
    %c0_i32_0 = arith.constant 0 : i32
    %c0_i32_1 = arith.constant 0 : i32
    return %c0_i32, %c0_i32_0 : i32, i32
  }
  func.func @transform_3(%arg0: i32) -> (i32, i32) {
    %c0_i32 = arith.constant 0 : i32
    %c0_i32_0 = arith.constant 0 : i32
    %c0_i32_1 = arith.constant 0 : i32
    return %c0_i32, %c0_i32_0 : i32, i32
  }
  func.func @transform_4(%arg0: i32) -> (i32, i32) {
    %c0_i32 = arith.constant 0 : i32
    %c0_i32_0 = arith.constant 0 : i32
    %c0_i32_1 = arith.constant 0 : i32
    return %c0_i32, %c0_i32_0 : i32, i32
  }
  func.func @transform_5(%arg0: i32) -> (i32, i32, i32) {
    %c0_i32 = arith.constant 0 : i32
    %c0_i32_0 = arith.constant 0 : i32
    %c0_i32_1 = arith.constant 0 : i32
    return %arg0, %c0_i32, %c0_i32_0 : i32, i32, i32
  }
}

module attributes {stable_mosaic.version = 11 : i64} {
  func.func @_embed_ln_kernel(%arg0: i32, %arg1: memref<1x12x128xf32, #tpu.memory_space<vmem>>, %arg2: memref<12x128xf32, #tpu.memory_space<vmem>>, %arg3: memref<1x128xf32, #tpu.memory_space<vmem>>, %arg4: memref<1x128xf32, #tpu.memory_space<vmem>>, %arg5: memref<1x128xf32, #tpu.memory_space<vmem>>, %arg6: memref<1x12x128xf32, #tpu.memory_space<vmem>>) attributes {dimension_semantics = [#tpu.dimension_semantics<parallel>], iteration_bounds = array<i64: 2>, scalar_prefetch = 0 : i64, scratch_operands = 0 : i64, tpu.core_type = #tpu.core_type<tc>, window_params = [{transform_indices = @transform_0, window_bounds = array<i64: 1, 12, 128>}, {pipeline_mode = #tpu.pipeline_mode<synchronous>, transform_indices = @transform_1, window_bounds = array<i64: 12, 128>}, {pipeline_mode = #tpu.pipeline_mode<synchronous>, transform_indices = @transform_2, window_bounds = array<i64: 1, 128>}, {pipeline_mode = #tpu.pipeline_mode<synchronous>, transform_indices = @transform_3, window_bounds = array<i64: 1, 128>}, {pipeline_mode = #tpu.pipeline_mode<synchronous>, transform_indices = @transform_4, window_bounds = array<i64: 1, 128>}, {transform_indices = @transform_5, window_bounds = array<i64: 1, 12, 128>}]} {
    %c0 = arith.constant 0 : index
    %c0_0 = arith.constant 0 : index
    %c0_1 = arith.constant 0 : index
    %0 = vector.load %arg1[%c0, %c0_0, %c0_1] : memref<1x12x128xf32, #tpu.memory_space<vmem>>, vector<1x12x128xf32>
    %1 = vector.shape_cast %0 : vector<1x12x128xf32> to vector<12x128xf32>
    %c0_2 = arith.constant 0 : index
    %c0_3 = arith.constant 0 : index
    %2 = vector.load %arg2[%c0_2, %c0_3] : memref<12x128xf32, #tpu.memory_space<vmem>>, vector<12x128xf32>
    %3 = arith.addf %1, %2 : vector<12x128xf32>
    %c0_4 = arith.constant 0 : index
    %c0_5 = arith.constant 0 : index
    %4 = vector.load %arg3[%c0_4, %c0_5] : memref<1x128xf32, #tpu.memory_space<vmem>>, vector<1x128xf32>
    %5 = vector.broadcast %4 : vector<1x128xf32> to vector<12x128xf32>
    %6 = arith.addf %3, %5 : vector<12x128xf32>
    %c0_6 = arith.constant 0 : index
    %c0_7 = arith.constant 0 : index
    %7 = vector.load %arg4[%c0_6, %c0_7] : memref<1x128xf32, #tpu.memory_space<vmem>>, vector<1x128xf32>
    %c0_8 = arith.constant 0 : index
    %c0_9 = arith.constant 0 : index
    %8 = vector.load %arg5[%c0_8, %c0_9] : memref<1x128xf32, #tpu.memory_space<vmem>>, vector<1x128xf32>
    %cst = arith.constant dense<0.000000e+00> : vector<12xf32>
    %9 = vector.multi_reduction <add>, %6, %cst [1] : vector<12x128xf32> to vector<12xf32>
    %10 = vector.shape_cast %9 : vector<12xf32> to vector<12x1xf32>
    %cst_10 = arith.constant 1.280000e+02 : f32
    %11 = vector.broadcast %cst_10 : f32 to vector<12x1xf32>
    %12 = arith.divf %10, %11 : vector<12x1xf32>
    %13 = vector.broadcast %12 : vector<12x1xf32> to vector<12x128xf32>
    %14 = arith.subf %6, %13 : vector<12x128xf32>
    %15 = arith.mulf %14, %14 : vector<12x128xf32>
    %cst_11 = arith.constant dense<0.000000e+00> : vector<12xf32>
    %16 = vector.multi_reduction <add>, %15, %cst_11 [1] : vector<12x128xf32> to vector<12xf32>
    %17 = vector.shape_cast %16 : vector<12xf32> to vector<12x1xf32>
    %cst_12 = arith.constant 1.280000e+02 : f32
    %18 = vector.broadcast %cst_12 : f32 to vector<12x1xf32>
    %19 = arith.divf %17, %18 : vector<12x1xf32>
    %20 = vector.broadcast %12 : vector<12x1xf32> to vector<12x128xf32>
    %21 = arith.subf %6, %20 : vector<12x128xf32>
    %cst_13 = arith.constant 9.99999996E-13 : f32
    %22 = vector.broadcast %cst_13 : f32 to vector<12x1xf32>
    %23 = arith.addf %19, %22 : vector<12x1xf32>
    %24 = math.rsqrt %23 : vector<12x1xf32>
    %25 = vector.broadcast %24 : vector<12x1xf32> to vector<12x128xf32>
    %26 = arith.mulf %21, %25 : vector<12x128xf32>
    %27 = vector.broadcast %7 : vector<1x128xf32> to vector<12x128xf32>
    %28 = arith.mulf %26, %27 : vector<12x128xf32>
    %29 = vector.broadcast %8 : vector<1x128xf32> to vector<12x128xf32>
    %30 = arith.addf %28, %29 : vector<12x128xf32>
    %c0_14 = arith.constant 0 : index
    %c0_15 = arith.constant 0 : index
    %c0_16 = arith.constant 0 : index
    %31 = vector.load %arg6[%c0_14, %c0_15, %c0_16] : memref<1x12x128xf32, #tpu.memory_space<vmem>>, vector<1x12x128xf32>
    %32 = vector.shape_cast %31 : vector<1x12x128xf32> to vector<12x128xf32>
    %33 = vector.shape_cast %30 : vector<12x128xf32> to vector<1x12x128xf32>
    tpu.vector_store %arg6[%c0_14, %c0_15, %c0_16], %33 {strides = array<i32>} : memref<1x12x128xf32, #tpu.memory_space<vmem>>, vector<1x12x128xf32>,
    return
  }
  func.func @transform_0(%arg0: i32) -> (i32, i32, i32) {
    %c0_i32 = arith.constant 0 : i32
    %c0_i32_0 = arith.constant 0 : i32
    %c0_i32_1 = arith.constant 0 : i32
    return %arg0, %c0_i32, %c0_i32_0 : i32, i32, i32
  }
  func.func @transform_1(%arg0: i32) -> (i32, i32) {
    %c0_i32 = arith.constant 0 : i32
    %c0_i32_0 = arith.constant 0 : i32
    %c0_i32_1 = arith.constant 0 : i32
    return %c0_i32, %c0_i32_0 : i32, i32
  }
  func.func @transform_2(%arg0: i32) -> (i32, i32) {
    %c0_i32 = arith.constant 0 : i32
    %c0_i32_0 = arith.constant 0 : i32
    %c0_i32_1 = arith.constant 0 : i32
    return %c0_i32, %c0_i32_0 : i32, i32
  }
  func.func @transform_3(%arg0: i32) -> (i32, i32) {
    %c0_i32 = arith.constant 0 : i32
    %c0_i32_0 = arith.constant 0 : i32
    %c0_i32_1 = arith.constant 0 : i32
    return %c0_i32, %c0_i32_0 : i32, i32
  }
  func.func @transform_4(%arg0: i32) -> (i32, i32) {
    %c0_i32 = arith.constant 0 : i32
    %c0_i32_0 = arith.constant 0 : i32
    %c0_i32_1 = arith.constant 0 : i32
    return %c0_i32, %c0_i32_0 : i32, i32
  }
  func.func @transform_5(%arg0: i32) -> (i32, i32, i32) {
    %c0_i32 = arith.constant 0 : i32
    %c0_i32_0 = arith.constant 0 : i32
    %c0_i32_1 = arith.constant 0 : i32
    return %arg0, %c0_i32, %c0_i32_0 : i32, i32, i32
  }
}

module attributes {stable_mosaic.version = 11 : i64} {
  func.func @_attn_kernel(%arg0: i32, %arg1: i32, %arg2: memref<1x16x128xbf16, #tpu.memory_space<vmem>>, %arg3: memref<1x16x128xbf16, #tpu.memory_space<vmem>>, %arg4: memref<1x16x128xbf16, #tpu.memory_space<vmem>>, %arg5: memref<1x1x16xf32, #tpu.memory_space<vmem>>, %arg6: memref<1x16x128xbf16, #tpu.memory_space<vmem>>) attributes {dimension_semantics = [#tpu.dimension_semantics<parallel>, #tpu.dimension_semantics<parallel>], iteration_bounds = array<i64: 2, 1>, scalar_prefetch = 0 : i64, scratch_operands = 0 : i64, tpu.core_type = #tpu.core_type<tc>, window_params = [{transform_indices = @transform_0, window_bounds = array<i64: 1, 16, 128>}, {transform_indices = @transform_1, window_bounds = array<i64: 1, 16, 128>}, {transform_indices = @transform_2, window_bounds = array<i64: 1, 16, 128>}, {transform_indices = @transform_3, window_bounds = array<i64: 1, 1, 16>}, {transform_indices = @transform_4, window_bounds = array<i64: 1, 16, 128>}]} {
    %c0 = arith.constant 0 : index
    %c0_0 = arith.constant 0 : index
    %c0_1 = arith.constant 0 : index
    %0 = vector.load %arg5[%c0, %c0_0, %c0_1] : memref<1x1x16xf32, #tpu.memory_space<vmem>>, vector<1x1x16xf32>
    %1 = vector.shape_cast %0 : vector<1x1x16xf32> to vector<1x16xf32>
    %c0_2 = arith.constant 0 : index
    %c0_3 = arith.constant 0 : index
    %c0_4 = arith.constant 0 : index
    %2 = vector.load %arg2[%c0_2, %c0_3, %c0_4] : memref<1x16x128xbf16, #tpu.memory_space<vmem>>, vector<1x16x64xbf16>
    %3 = vector.shape_cast %2 : vector<1x16x64xbf16> to vector<16x64xbf16>
    %c0_5 = arith.constant 0 : index
    %c0_6 = arith.constant 0 : index
    %c0_7 = arith.constant 0 : index
    %4 = vector.load %arg3[%c0_5, %c0_6, %c0_7] : memref<1x16x128xbf16, #tpu.memory_space<vmem>>, vector<1x16x64xbf16>
    %5 = vector.shape_cast %4 : vector<1x16x64xbf16> to vector<16x64xbf16>
    %c0_8 = arith.constant 0 : index
    %c0_9 = arith.constant 0 : index
    %c0_10 = arith.constant 0 : index
    %6 = vector.load %arg4[%c0_8, %c0_9, %c0_10] : memref<1x16x128xbf16, #tpu.memory_space<vmem>>, vector<1x16x64xbf16>
    %7 = vector.shape_cast %6 : vector<1x16x64xbf16> to vector<16x64xbf16>
    %cst = arith.constant dense<0.000000e+00> : vector<16x16xf32>
    %8 = tpu.matmul %3, %5, %cst {dimension_numbers = #tpu.dot_dimension_numbers<[1], [1], [0], [0], [0, 0, 1, 0], [], []>} : vector<16x64xbf16>, vector<16x64xbf16>, vector<16x16xf32> -> vector<16x16xf32>
    %cst_11 = arith.constant 1.250000e-01 : f32
    %9 = vector.broadcast %cst_11 : f32 to vector<16x16xf32>
    %10 = arith.mulf %8, %9 : vector<16x16xf32>
    %11 = vector.broadcast %1 : vector<1x16xf32> to vector<16x16xf32>
    %12 = arith.addf %10, %11 : vector<16x16xf32>
    %cst_12 = arith.constant dense<0xFF800000> : vector<16xf32>
    %13 = vector.multi_reduction <maximumf>, %12, %cst_12 [1] : vector<16x16xf32> to vector<16xf32>
    %14 = vector.shape_cast %13 : vector<16xf32> to vector<16x1xf32>
    %15 = vector.broadcast %14 : vector<16x1xf32> to vector<16x16xf32>
    %16 = arith.subf %12, %15 : vector<16x16xf32>
    %17 = math.exp %16 : vector<16x16xf32>
    %cst_13 = arith.constant dense<0.000000e+00> : vector<16xf32>
    %18 = vector.multi_reduction <add>, %17, %cst_13 [1] : vector<16x16xf32> to vector<16xf32>
    %19 = vector.shape_cast %18 : vector<16xf32> to vector<16x1xf32>
    %20 = tpu.reciprocal %19 {approx = true} : vector<16x1xf32> -> vector<16x1xf32>
    %21 = vector.broadcast %20 : vector<16x1xf32> to vector<16x16xf32>
    %22 = arith.mulf %17, %21 : vector<16x16xf32>
    %23 = arith.truncf %22 : vector<16x16xf32> to vector<16x16xbf16>
    %cst_14 = arith.constant dense<0.000000e+00> : vector<16x64xf32>
    %24 = tpu.matmul %23, %7, %cst_14 {dimension_numbers = #tpu.dot_dimension_numbers<[1], [0], [0], [1], [0, 0, 1, 1], [], []>} : vector<16x16xbf16>, vector<16x64xbf16>, vector<16x64xf32> -> vector<16x64xf32>
    %c0_15 = arith.constant 0 : index
    %c0_16 = arith.constant 0 : index
    %c64 = arith.constant 64 : index
    %25 = vector.load %arg2[%c0_15, %c0_16, %c64] : memref<1x16x128xbf16, #tpu.memory_space<vmem>>, vector<1x16x64xbf16>
    %26 = vector.shape_cast %25 : vector<1x16x64xbf16> to vector<16x64xbf16>
    %c0_17 = arith.constant 0 : index
    %c0_18 = arith.constant 0 : index
    %c64_19 = arith.constant 64 : index
    %27 = vector.load %arg3[%c0_17, %c0_18, %c64_19] : memref<1x16x128xbf16, #tpu.memory_space<vmem>>, vector<1x16x64xbf16>
    %28 = vector.shape_cast %27 : vector<1x16x64xbf16> to vector<16x64xbf16>
    %c0_20 = arith.constant 0 : index
    %c0_21 = arith.constant 0 : index
    %c64_22 = arith.constant 64 : index
    %29 = vector.load %arg4[%c0_20, %c0_21, %c64_22] : memref<1x16x128xbf16, #tpu.memory_space<vmem>>, vector<1x16x64xbf16>
    %30 = vector.shape_cast %29 : vector<1x16x64xbf16> to vector<16x64xbf16>
    %cst_23 = arith.constant dense<0.000000e+00> : vector<16x16xf32>
    %31 = tpu.matmul %26, %28, %cst_23 {dimension_numbers = #tpu.dot_dimension_numbers<[1], [1], [0], [0], [0, 0, 1, 0], [], []>} : vector<16x64xbf16>, vector<16x64xbf16>, vector<16x16xf32> -> vector<16x16xf32>
    %cst_24 = arith.constant 1.250000e-01 : f32
    %32 = vector.broadcast %cst_24 : f32 to vector<16x16xf32>
    %33 = arith.mulf %31, %32 : vector<16x16xf32>
    %34 = vector.broadcast %1 : vector<1x16xf32> to vector<16x16xf32>
    %35 = arith.addf %33, %34 : vector<16x16xf32>
    %cst_25 = arith.constant dense<0xFF800000> : vector<16xf32>
    %36 = vector.multi_reduction <maximumf>, %35, %cst_25 [1] : vector<16x16xf32> to vector<16xf32>
    %37 = vector.shape_cast %36 : vector<16xf32> to vector<16x1xf32>
    %38 = vector.broadcast %37 : vector<16x1xf32> to vector<16x16xf32>
    %39 = arith.subf %35, %38 : vector<16x16xf32>
    %40 = math.exp %39 : vector<16x16xf32>
    %cst_26 = arith.constant dense<0.000000e+00> : vector<16xf32>
    %41 = vector.multi_reduction <add>, %40, %cst_26 [1] : vector<16x16xf32> to vector<16xf32>
    %42 = vector.shape_cast %41 : vector<16xf32> to vector<16x1xf32>
    %43 = tpu.reciprocal %42 {approx = true} : vector<16x1xf32> -> vector<16x1xf32>
    %44 = vector.broadcast %43 : vector<16x1xf32> to vector<16x16xf32>
    %45 = arith.mulf %40, %44 : vector<16x16xf32>
    %46 = arith.truncf %45 : vector<16x16xf32> to vector<16x16xbf16>
    %cst_27 = arith.constant dense<0.000000e+00> : vector<16x64xf32>
    %47 = tpu.matmul %46, %30, %cst_27 {dimension_numbers = #tpu.dot_dimension_numbers<[1], [0], [0], [1], [0, 0, 1, 1], [], []>} : vector<16x16xbf16>, vector<16x64xbf16>, vector<16x64xf32> -> vector<16x64xf32>
    %48 = tpu.concatenate %24, %47 in 1 : vector<16x64xf32>, vector<16x64xf32> -> vector<16x128xf32>
    %49 = arith.truncf %48 : vector<16x128xf32> to vector<16x128xbf16>
    %c0_28 = arith.constant 0 : index
    %c0_29 = arith.constant 0 : index
    %c0_30 = arith.constant 0 : index
    %50 = vector.load %arg6[%c0_28, %c0_29, %c0_30] : memref<1x16x128xbf16, #tpu.memory_space<vmem>>, vector<1x16x128xbf16>
    %51 = vector.shape_cast %50 : vector<1x16x128xbf16> to vector<16x128xbf16>
    %52 = vector.shape_cast %49 : vector<16x128xbf16> to vector<1x16x128xbf16>
    tpu.vector_store %arg6[%c0_28, %c0_29, %c0_30], %52 {strides = array<i32>} : memref<1x16x128xbf16, #tpu.memory_space<vmem>>, vector<1x16x128xbf16>,
    return
  }
  func.func @transform_0(%arg0: i32, %arg1: i32) -> (i32, i32, i32) {
    %c0_i32 = arith.constant 0 : i32
    %c0_i32_0 = arith.constant 0 : i32
    return %arg0, %c0_i32, %arg1 : i32, i32, i32
  }
  func.func @transform_1(%arg0: i32, %arg1: i32) -> (i32, i32, i32) {
    %c1_i32 = arith.constant 1 : i32
    %0 = arith.addi %c1_i32, %arg1 : i32
    %c0_i32 = arith.constant 0 : i32
    %c0_i32_0 = arith.constant 0 : i32
    return %arg0, %c0_i32, %0 : i32, i32, i32
  }
  func.func @transform_2(%arg0: i32, %arg1: i32) -> (i32, i32, i32) {
    %c2_i32 = arith.constant 2 : i32
    %0 = arith.addi %c2_i32, %arg1 : i32
    %c0_i32 = arith.constant 0 : i32
    %c0_i32_0 = arith.constant 0 : i32
    return %arg0, %c0_i32, %0 : i32, i32, i32
  }
  func.func @transform_3(%arg0: i32, %arg1: i32) -> (i32, i32, i32) {
    %c0_i32 = arith.constant 0 : i32
    %c0_i32_0 = arith.constant 0 : i32
    %c0_i32_1 = arith.constant 0 : i32
    return %arg0, %c0_i32, %c0_i32_0 : i32, i32, i32
  }
  func.func @transform_4(%arg0: i32, %arg1: i32) -> (i32, i32, i32) {
    %c0_i32 = arith.constant 0 : i32
    %c0_i32_0 = arith.constant 0 : i32
    return %arg0, %c0_i32, %arg1 : i32, i32, i32
  }
}

module attributes {stable_mosaic.version = 11 : i64} {
  func.func @_linear_kernel(%arg0: i32, %arg1: memref<32x128xbf16, #tpu.memory_space<vmem>>, %arg2: memref<128x384xbf16, #tpu.memory_space<vmem>>, %arg3: memref<1x384xf32, #tpu.memory_space<vmem>>, %arg4: memref<32x384xbf16, #tpu.memory_space<vmem>>) attributes {dimension_semantics = [#tpu.dimension_semantics<parallel>], iteration_bounds = array<i64: 1>, scalar_prefetch = 0 : i64, scratch_operands = 0 : i64, tpu.core_type = #tpu.core_type<tc>, window_params = [{transform_indices = @transform_0, window_bounds = array<i64: 32, 128>}, {pipeline_mode = #tpu.pipeline_mode<synchronous>, transform_indices = @transform_1, window_bounds = array<i64: 128, 384>}, {pipeline_mode = #tpu.pipeline_mode<synchronous>, transform_indices = @transform_2, window_bounds = array<i64: 1, 384>}, {transform_indices = @transform_3, window_bounds = array<i64: 32, 384>}]} {
    %c0 = arith.constant 0 : index
    %c0_0 = arith.constant 0 : index
    %0 = vector.load %arg1[%c0, %c0_0] : memref<32x128xbf16, #tpu.memory_space<vmem>>, vector<32x128xbf16>
    %c0_1 = arith.constant 0 : index
    %c0_2 = arith.constant 0 : index
    %1 = vector.load %arg2[%c0_1, %c0_2] : memref<128x384xbf16, #tpu.memory_space<vmem>>, vector<128x384xbf16>
    %cst = arith.constant dense<0.000000e+00> : vector<32x384xf32>
    %2 = tpu.matmul %0, %1, %cst {dimension_numbers = #tpu.dot_dimension_numbers<[1], [0], [0], [1], [0, 0, 1, 1], [], []>} : vector<32x128xbf16>, vector<128x384xbf16>, vector<32x384xf32> -> vector<32x384xf32>
    %c0_3 = arith.constant 0 : index
    %c0_4 = arith.constant 0 : index
    %3 = vector.load %arg3[%c0_3, %c0_4] : memref<1x384xf32, #tpu.memory_space<vmem>>, vector<1x384xf32>
    %4 = vector.broadcast %3 : vector<1x384xf32> to vector<32x384xf32>
    %5 = arith.addf %2, %4 : vector<32x384xf32>
    %6 = arith.truncf %5 : vector<32x384xf32> to vector<32x384xbf16>
    %c0_5 = arith.constant 0 : index
    %c0_6 = arith.constant 0 : index
    %7 = vector.load %arg4[%c0_5, %c0_6] : memref<32x384xbf16, #tpu.memory_space<vmem>>, vector<32x384xbf16>
    tpu.vector_store %arg4[%c0_5, %c0_6], %6 {strides = array<i32>} : memref<32x384xbf16, #tpu.memory_space<vmem>>, vector<32x384xbf16>,
    return
  }
  func.func @transform_0(%arg0: i32) -> (i32, i32) {
    %c0_i32 = arith.constant 0 : i32
    %c0_i32_0 = arith.constant 0 : i32
    return %arg0, %c0_i32 : i32, i32
  }
  func.func @transform_1(%arg0: i32) -> (i32, i32) {
    %c0_i32 = arith.constant 0 : i32
    %c0_i32_0 = arith.constant 0 : i32
    %c0_i32_1 = arith.constant 0 : i32
    return %c0_i32, %c0_i32_0 : i32, i32
  }
  func.func @transform_2(%arg0: i32) -> (i32, i32) {
    %c0_i32 = arith.constant 0 : i32
    %c0_i32_0 = arith.constant 0 : i32
    %c0_i32_1 = arith.constant 0 : i32
    return %c0_i32, %c0_i32_0 : i32, i32
  }
  func.func @transform_3(%arg0: i32) -> (i32, i32) {
    %c0_i32 = arith.constant 0 : i32
    %c0_i32_0 = arith.constant 0 : i32
    return %arg0, %c0_i32 : i32, i32
  }
}

module attributes {stable_mosaic.version = 11 : i64} {
  func.func @_proj_res_ln_kernel(%arg0: i32, %arg1: memref<32x128xbf16, #tpu.memory_space<vmem>>, %arg2: memref<128x128xbf16, #tpu.memory_space<vmem>>, %arg3: memref<1x128xf32, #tpu.memory_space<vmem>>, %arg4: memref<32x128xbf16, #tpu.memory_space<vmem>>, %arg5: memref<1x128xf32, #tpu.memory_space<vmem>>, %arg6: memref<1x128xf32, #tpu.memory_space<vmem>>, %arg7: memref<32x128xbf16, #tpu.memory_space<vmem>>) attributes {dimension_semantics = [#tpu.dimension_semantics<parallel>], iteration_bounds = array<i64: 1>, scalar_prefetch = 0 : i64, scratch_operands = 0 : i64, tpu.core_type = #tpu.core_type<tc>, window_params = [{transform_indices = @transform_0, window_bounds = array<i64: 32, 128>}, {pipeline_mode = #tpu.pipeline_mode<synchronous>, transform_indices = @transform_1, window_bounds = array<i64: 128, 128>}, {pipeline_mode = #tpu.pipeline_mode<synchronous>, transform_indices = @transform_2, window_bounds = array<i64: 1, 128>}, {transform_indices = @transform_3, window_bounds = array<i64: 32, 128>}, {pipeline_mode = #tpu.pipeline_mode<synchronous>, transform_indices = @transform_4, window_bounds = array<i64: 1, 128>}, {pipeline_mode = #tpu.pipeline_mode<synchronous>, transform_indices = @transform_5, window_bounds = array<i64: 1, 128>}, {transform_indices = @transform_6, window_bounds = array<i64: 32, 128>}]} {
    %c0 = arith.constant 0 : index
    %c0_0 = arith.constant 0 : index
    %0 = vector.load %arg1[%c0, %c0_0] : memref<32x128xbf16, #tpu.memory_space<vmem>>, vector<32x128xbf16>
    %c0_1 = arith.constant 0 : index
    %c0_2 = arith.constant 0 : index
    %1 = vector.load %arg2[%c0_1, %c0_2] : memref<128x128xbf16, #tpu.memory_space<vmem>>, vector<128x128xbf16>
    %cst = arith.constant dense<0.000000e+00> : vector<32x128xf32>
    %2 = tpu.matmul %0, %1, %cst {dimension_numbers = #tpu.dot_dimension_numbers<[1], [0], [0], [1], [0, 0, 1, 1], [], []>} : vector<32x128xbf16>, vector<128x128xbf16>, vector<32x128xf32> -> vector<32x128xf32>
    %c0_3 = arith.constant 0 : index
    %c0_4 = arith.constant 0 : index
    %3 = vector.load %arg3[%c0_3, %c0_4] : memref<1x128xf32, #tpu.memory_space<vmem>>, vector<1x128xf32>
    %4 = vector.broadcast %3 : vector<1x128xf32> to vector<32x128xf32>
    %5 = arith.addf %2, %4 : vector<32x128xf32>
    %c0_5 = arith.constant 0 : index
    %c0_6 = arith.constant 0 : index
    %6 = vector.load %arg4[%c0_5, %c0_6] : memref<32x128xbf16, #tpu.memory_space<vmem>>, vector<32x128xbf16>
    %7 = arith.extf %6 : vector<32x128xbf16> to vector<32x128xf32>
    %8 = arith.addf %5, %7 : vector<32x128xf32>
    %c0_7 = arith.constant 0 : index
    %c0_8 = arith.constant 0 : index
    %9 = vector.load %arg5[%c0_7, %c0_8] : memref<1x128xf32, #tpu.memory_space<vmem>>, vector<1x128xf32>
    %c0_9 = arith.constant 0 : index
    %c0_10 = arith.constant 0 : index
    %10 = vector.load %arg6[%c0_9, %c0_10] : memref<1x128xf32, #tpu.memory_space<vmem>>, vector<1x128xf32>
    %cst_11 = arith.constant dense<0.000000e+00> : vector<32xf32>
    %11 = vector.multi_reduction <add>, %8, %cst_11 [1] : vector<32x128xf32> to vector<32xf32>
    %12 = vector.shape_cast %11 : vector<32xf32> to vector<32x1xf32>
    %cst_12 = arith.constant 1.280000e+02 : f32
    %13 = vector.broadcast %cst_12 : f32 to vector<32x1xf32>
    %14 = arith.divf %12, %13 : vector<32x1xf32>
    %15 = vector.broadcast %14 : vector<32x1xf32> to vector<32x128xf32>
    %16 = arith.subf %8, %15 : vector<32x128xf32>
    %17 = arith.mulf %16, %16 : vector<32x128xf32>
    %cst_13 = arith.constant dense<0.000000e+00> : vector<32xf32>
    %18 = vector.multi_reduction <add>, %17, %cst_13 [1] : vector<32x128xf32> to vector<32xf32>
    %19 = vector.shape_cast %18 : vector<32xf32> to vector<32x1xf32>
    %cst_14 = arith.constant 1.280000e+02 : f32
    %20 = vector.broadcast %cst_14 : f32 to vector<32x1xf32>
    %21 = arith.divf %19, %20 : vector<32x1xf32>
    %22 = vector.broadcast %14 : vector<32x1xf32> to vector<32x128xf32>
    %23 = arith.subf %8, %22 : vector<32x128xf32>
    %cst_15 = arith.constant 9.99999996E-13 : f32
    %24 = vector.broadcast %cst_15 : f32 to vector<32x1xf32>
    %25 = arith.addf %21, %24 : vector<32x1xf32>
    %26 = math.rsqrt %25 : vector<32x1xf32>
    %27 = vector.broadcast %26 : vector<32x1xf32> to vector<32x128xf32>
    %28 = arith.mulf %23, %27 : vector<32x128xf32>
    %29 = vector.broadcast %9 : vector<1x128xf32> to vector<32x128xf32>
    %30 = arith.mulf %28, %29 : vector<32x128xf32>
    %31 = vector.broadcast %10 : vector<1x128xf32> to vector<32x128xf32>
    %32 = arith.addf %30, %31 : vector<32x128xf32>
    %33 = arith.truncf %32 : vector<32x128xf32> to vector<32x128xbf16>
    %c0_16 = arith.constant 0 : index
    %c0_17 = arith.constant 0 : index
    %34 = vector.load %arg7[%c0_16, %c0_17] : memref<32x128xbf16, #tpu.memory_space<vmem>>, vector<32x128xbf16>
    tpu.vector_store %arg7[%c0_16, %c0_17], %33 {strides = array<i32>} : memref<32x128xbf16, #tpu.memory_space<vmem>>, vector<32x128xbf16>,
    return
  }
  func.func @transform_0(%arg0: i32) -> (i32, i32) {
    %c0_i32 = arith.constant 0 : i32
    %c0_i32_0 = arith.constant 0 : i32
    return %arg0, %c0_i32 : i32, i32
  }
  func.func @transform_1(%arg0: i32) -> (i32, i32) {
    %c0_i32 = arith.constant 0 : i32
    %c0_i32_0 = arith.constant 0 : i32
    %c0_i32_1 = arith.constant 0 : i32
    return %c0_i32, %c0_i32_0 : i32, i32
  }
  func.func @transform_2(%arg0: i32) -> (i32, i32) {
    %c0_i32 = arith.constant 0 : i32
    %c0_i32_0 = arith.constant 0 : i32
    %c0_i32_1 = arith.constant 0 : i32
    return %c0_i32, %c0_i32_0 : i32, i32
  }
  func.func @transform_3(%arg0: i32) -> (i32, i32) {
    %c0_i32 = arith.constant 0 : i32
    %c0_i32_0 = arith.constant 0 : i32
    return %arg0, %c0_i32 : i32, i32
  }
  func.func @transform_4(%arg0: i32) -> (i32, i32) {
    %c0_i32 = arith.constant 0 : i32
    %c0_i32_0 = arith.constant 0 : i32
    %c0_i32_1 = arith.constant 0 : i32
    return %c0_i32, %c0_i32_0 : i32, i32
  }
  func.func @transform_5(%arg0: i32) -> (i32, i32) {
    %c0_i32 = arith.constant 0 : i32
    %c0_i32_0 = arith.constant 0 : i32
    %c0_i32_1 = arith.constant 0 : i32
    return %c0_i32, %c0_i32_0 : i32, i32
  }
  func.func @transform_6(%arg0: i32) -> (i32, i32) {
    %c0_i32 = arith.constant 0 : i32
    %c0_i32_0 = arith.constant 0 : i32
    return %arg0, %c0_i32 : i32, i32
  }
}

module attributes {stable_mosaic.version = 11 : i64} {
  func.func @_ffn_kernel(%arg0: i32, %arg1: memref<32x128xbf16, #tpu.memory_space<vmem>>, %arg2: memref<128x512xbf16, #tpu.memory_space<vmem>>, %arg3: memref<1x512xf32, #tpu.memory_space<vmem>>, %arg4: memref<512x128xbf16, #tpu.memory_space<vmem>>, %arg5: memref<1x128xf32, #tpu.memory_space<vmem>>, %arg6: memref<1x128xf32, #tpu.memory_space<vmem>>, %arg7: memref<1x128xf32, #tpu.memory_space<vmem>>, %arg8: memref<32x128xbf16, #tpu.memory_space<vmem>>, %arg9: memref<32x128xf32, #tpu.memory_space<vmem>>) attributes {dimension_semantics = [#tpu.dimension_semantics<parallel>], iteration_bounds = array<i64: 1>, scalar_prefetch = 0 : i64, scratch_operands = 1 : i64, tpu.core_type = #tpu.core_type<tc>, window_params = [{transform_indices = @transform_0, window_bounds = array<i64: 32, 128>}, {pipeline_mode = #tpu.pipeline_mode<synchronous>, transform_indices = @transform_1, window_bounds = array<i64: 128, 512>}, {pipeline_mode = #tpu.pipeline_mode<synchronous>, transform_indices = @transform_2, window_bounds = array<i64: 1, 512>}, {pipeline_mode = #tpu.pipeline_mode<synchronous>, transform_indices = @transform_3, window_bounds = array<i64: 512, 128>}, {pipeline_mode = #tpu.pipeline_mode<synchronous>, transform_indices = @transform_4, window_bounds = array<i64: 1, 128>}, {pipeline_mode = #tpu.pipeline_mode<synchronous>, transform_indices = @transform_5, window_bounds = array<i64: 1, 128>}, {pipeline_mode = #tpu.pipeline_mode<synchronous>, transform_indices = @transform_6, window_bounds = array<i64: 1, 128>}, {transform_indices = @transform_7, window_bounds = array<i64: 32, 128>}]} {
    %c0 = arith.constant 0 : index
    %c0_0 = arith.constant 0 : index
    %0 = vector.load %arg1[%c0, %c0_0] : memref<32x128xbf16, #tpu.memory_space<vmem>>, vector<32x128xbf16>
    %cst = arith.constant 0.000000e+00 : f32
    %1 = vector.broadcast %cst : f32 to vector<32x128xf32>
    %c0_1 = arith.constant 0 : index
    %c0_2 = arith.constant 0 : index
    %2 = vector.load %arg9[%c0_1, %c0_2] : memref<32x128xf32, #tpu.memory_space<vmem>>, vector<32x128xf32>
    tpu.vector_store %arg9[%c0_1, %c0_2], %1 {strides = array<i32>} : memref<32x128xf32, #tpu.memory_space<vmem>>, vector<32x128xf32>,
    %c0_3 = arith.constant 0 : index
    %c0_4 = arith.constant 0 : index
    %3 = vector.load %arg2[%c0_3, %c0_4] : memref<128x512xbf16, #tpu.memory_space<vmem>>, vector<128x256xbf16>
    %cst_5 = arith.constant dense<0.000000e+00> : vector<32x256xf32>
    %4 = tpu.matmul %0, %3, %cst_5 {dimension_numbers = #tpu.dot_dimension_numbers<[1], [0], [0], [1], [0, 0, 1, 1], [], []>} : vector<32x128xbf16>, vector<128x256xbf16>, vector<32x256xf32> -> vector<32x256xf32>
    %c0_6 = arith.constant 0 : index
    %c0_7 = arith.constant 0 : index
    %5 = vector.load %arg3[%c0_6, %c0_7] : memref<1x512xf32, #tpu.memory_space<vmem>>, vector<1x256xf32>
    %6 = vector.broadcast %5 : vector<1x256xf32> to vector<32x256xf32>
    %7 = arith.addf %4, %6 : vector<32x256xf32>
    %cst_8 = arith.constant 5.000000e-01 : f32
    %8 = vector.broadcast %cst_8 : f32 to vector<32x256xf32>
    %9 = arith.mulf %8, %7 : vector<32x256xf32>
    %cst_9 = arith.constant 0.707106769 : f32
    %10 = vector.broadcast %cst_9 : f32 to vector<32x256xf32>
    %11 = arith.mulf %7, %10 : vector<32x256xf32>
    %cst_10 = arith.constant 0.000000e+00 : f32
    %12 = vector.broadcast %cst_10 : f32 to vector<32x256xf32>
    %13 = arith.cmpf oge, %11, %12 : vector<32x256xf32>
    %cst_11 = arith.constant 1.000000e+00 : f32
    %cst_12 = arith.constant -1.000000e+00 : f32
    %14 = vector.broadcast %cst_11 : f32 to vector<32x256xf32>
    %15 = vector.broadcast %cst_12 : f32 to vector<32x256xf32>
    %16 = arith.select %13, %14, %15 : vector<32x256xi1>, vector<32x256xf32>
    %17 = math.absf %11 : vector<32x256xf32>
    %cst_13 = arith.constant 0.327591091 : f32
    %18 = vector.broadcast %cst_13 : f32 to vector<32x256xf32>
    %19 = arith.mulf %18, %17 : vector<32x256xf32>
    %cst_14 = arith.constant 1.000000e+00 : f32
    %20 = vector.broadcast %cst_14 : f32 to vector<32x256xf32>
    %21 = arith.addf %20, %19 : vector<32x256xf32>
    %cst_15 = arith.constant 1.000000e+00 : f32
    %22 = vector.broadcast %cst_15 : f32 to vector<32x256xf32>
    %23 = arith.divf %22, %21 : vector<32x256xf32>
    %cst_16 = arith.constant 1.06140542 : f32
    %24 = vector.broadcast %cst_16 : f32 to vector<32x256xf32>
    %25 = arith.mulf %24, %23 : vector<32x256xf32>
    %cst_17 = arith.constant -1.45315206 : f32
    %26 = vector.broadcast %cst_17 : f32 to vector<32x256xf32>
    %27 = arith.addf %25, %26 : vector<32x256xf32>
    %28 = arith.mulf %27, %23 : vector<32x256xf32>
    %cst_18 = arith.constant 1.42141378 : f32
    %29 = vector.broadcast %cst_18 : f32 to vector<32x256xf32>
    %30 = arith.addf %28, %29 : vector<32x256xf32>
    %31 = arith.mulf %30, %23 : vector<32x256xf32>
    %cst_19 = arith.constant -0.284496725 : f32
    %32 = vector.broadcast %cst_19 : f32 to vector<32x256xf32>
    %33 = arith.addf %31, %32 : vector<32x256xf32>
    %34 = arith.mulf %33, %23 : vector<32x256xf32>
    %cst_20 = arith.constant 0.254829586 : f32
    %35 = vector.broadcast %cst_20 : f32 to vector<32x256xf32>
    %36 = arith.addf %34, %35 : vector<32x256xf32>
    %37 = arith.mulf %36, %23 : vector<32x256xf32>
    %cst_21 = arith.constant 0.000000e+00 : f32
    %38 = vector.broadcast %cst_21 : f32 to vector<32x256xf32>
    %39 = arith.subf %38, %17 : vector<32x256xf32>
    %40 = arith.mulf %39, %17 : vector<32x256xf32>
    %41 = math.exp %40 : vector<32x256xf32>
    %42 = arith.mulf %37, %41 : vector<32x256xf32>
    %cst_22 = arith.constant 1.000000e+00 : f32
    %43 = vector.broadcast %cst_22 : f32 to vector<32x256xf32>
    %44 = arith.subf %43, %42 : vector<32x256xf32>
    %45 = arith.mulf %16, %44 : vector<32x256xf32>
    %cst_23 = arith.constant 1.000000e+00 : f32
    %46 = vector.broadcast %cst_23 : f32 to vector<32x256xf32>
    %47 = arith.addf %46, %45 : vector<32x256xf32>
    %48 = arith.mulf %9, %47 : vector<32x256xf32>
    %c0_24 = arith.constant 0 : index
    %c0_25 = arith.constant 0 : index
    %49 = vector.load %arg9[%c0_24, %c0_25] : memref<32x128xf32, #tpu.memory_space<vmem>>, vector<32x128xf32>
    %50 = arith.truncf %48 : vector<32x256xf32> to vector<32x256xbf16>
    %c0_26 = arith.constant 0 : index
    %c0_27 = arith.constant 0 : index
    %51 = vector.load %arg4[%c0_26, %c0_27] : memref<512x128xbf16, #tpu.memory_space<vmem>>, vector<256x128xbf16>
    %cst_28 = arith.constant dense<0.000000e+00> : vector<32x128xf32>
    %52 = tpu.matmul %50, %51, %cst_28 {dimension_numbers = #tpu.dot_dimension_numbers<[1], [0], [0], [1], [0, 0, 1, 1], [], []>} : vector<32x256xbf16>, vector<256x128xbf16>, vector<32x128xf32> -> vector<32x128xf32>
    %53 = arith.addf %49, %52 : vector<32x128xf32>
    %c0_29 = arith.constant 0 : index
    %c0_30 = arith.constant 0 : index
    %54 = vector.load %arg9[%c0_29, %c0_30] : memref<32x128xf32, #tpu.memory_space<vmem>>, vector<32x128xf32>
    tpu.vector_store %arg9[%c0_29, %c0_30], %53 {strides = array<i32>} : memref<32x128xf32, #tpu.memory_space<vmem>>, vector<32x128xf32>,
    %c0_31 = arith.constant 0 : index
    %c256 = arith.constant 256 : index
    %55 = vector.load %arg2[%c0_31, %c256] : memref<128x512xbf16, #tpu.memory_space<vmem>>, vector<128x256xbf16>
    %cst_32 = arith.constant dense<0.000000e+00> : vector<32x256xf32>
    %56 = tpu.matmul %0, %55, %cst_32 {dimension_numbers = #tpu.dot_dimension_numbers<[1], [0], [0], [1], [0, 0, 1, 1], [], []>} : vector<32x128xbf16>, vector<128x256xbf16>, vector<32x256xf32> -> vector<32x256xf32>
    %c0_33 = arith.constant 0 : index
    %c256_34 = arith.constant 256 : index
    %57 = vector.load %arg3[%c0_33, %c256_34] : memref<1x512xf32, #tpu.memory_space<vmem>>, vector<1x256xf32>
    %58 = vector.broadcast %57 : vector<1x256xf32> to vector<32x256xf32>
    %59 = arith.addf %56, %58 : vector<32x256xf32>
    %cst_35 = arith.constant 5.000000e-01 : f32
    %60 = vector.broadcast %cst_35 : f32 to vector<32x256xf32>
    %61 = arith.mulf %60, %59 : vector<32x256xf32>
    %cst_36 = arith.constant 0.707106769 : f32
    %62 = vector.broadcast %cst_36 : f32 to vector<32x256xf32>
    %63 = arith.mulf %59, %62 : vector<32x256xf32>
    %cst_37 = arith.constant 0.000000e+00 : f32
    %64 = vector.broadcast %cst_37 : f32 to vector<32x256xf32>
    %65 = arith.cmpf oge, %63, %64 : vector<32x256xf32>
    %cst_38 = arith.constant 1.000000e+00 : f32
    %cst_39 = arith.constant -1.000000e+00 : f32
    %66 = vector.broadcast %cst_38 : f32 to vector<32x256xf32>
    %67 = vector.broadcast %cst_39 : f32 to vector<32x256xf32>
    %68 = arith.select %65, %66, %67 : vector<32x256xi1>, vector<32x256xf32>
    %69 = math.absf %63 : vector<32x256xf32>
    %cst_40 = arith.constant 0.327591091 : f32
    %70 = vector.broadcast %cst_40 : f32 to vector<32x256xf32>
    %71 = arith.mulf %70, %69 : vector<32x256xf32>
    %cst_41 = arith.constant 1.000000e+00 : f32
    %72 = vector.broadcast %cst_41 : f32 to vector<32x256xf32>
    %73 = arith.addf %72, %71 : vector<32x256xf32>
    %cst_42 = arith.constant 1.000000e+00 : f32
    %74 = vector.broadcast %cst_42 : f32 to vector<32x256xf32>
    %75 = arith.divf %74, %73 : vector<32x256xf32>
    %cst_43 = arith.constant 1.06140542 : f32
    %76 = vector.broadcast %cst_43 : f32 to vector<32x256xf32>
    %77 = arith.mulf %76, %75 : vector<32x256xf32>
    %cst_44 = arith.constant -1.45315206 : f32
    %78 = vector.broadcast %cst_44 : f32 to vector<32x256xf32>
    %79 = arith.addf %77, %78 : vector<32x256xf32>
    %80 = arith.mulf %79, %75 : vector<32x256xf32>
    %cst_45 = arith.constant 1.42141378 : f32
    %81 = vector.broadcast %cst_45 : f32 to vector<32x256xf32>
    %82 = arith.addf %80, %81 : vector<32x256xf32>
    %83 = arith.mulf %82, %75 : vector<32x256xf32>
    %cst_46 = arith.constant -0.284496725 : f32
    %84 = vector.broadcast %cst_46 : f32 to vector<32x256xf32>
    %85 = arith.addf %83, %84 : vector<32x256xf32>
    %86 = arith.mulf %85, %75 : vector<32x256xf32>
    %cst_47 = arith.constant 0.254829586 : f32
    %87 = vector.broadcast %cst_47 : f32 to vector<32x256xf32>
    %88 = arith.addf %86, %87 : vector<32x256xf32>
    %89 = arith.mulf %88, %75 : vector<32x256xf32>
    %cst_48 = arith.constant 0.000000e+00 : f32
    %90 = vector.broadcast %cst_48 : f32 to vector<32x256xf32>
    %91 = arith.subf %90, %69 : vector<32x256xf32>
    %92 = arith.mulf %91, %69 : vector<32x256xf32>
    %93 = math.exp %92 : vector<32x256xf32>
    %94 = arith.mulf %89, %93 : vector<32x256xf32>
    %cst_49 = arith.constant 1.000000e+00 : f32
    %95 = vector.broadcast %cst_49 : f32 to vector<32x256xf32>
    %96 = arith.subf %95, %94 : vector<32x256xf32>
    %97 = arith.mulf %68, %96 : vector<32x256xf32>
    %cst_50 = arith.constant 1.000000e+00 : f32
    %98 = vector.broadcast %cst_50 : f32 to vector<32x256xf32>
    %99 = arith.addf %98, %97 : vector<32x256xf32>
    %100 = arith.mulf %61, %99 : vector<32x256xf32>
    %c0_51 = arith.constant 0 : index
    %c0_52 = arith.constant 0 : index
    %101 = vector.load %arg9[%c0_51, %c0_52] : memref<32x128xf32, #tpu.memory_space<vmem>>, vector<32x128xf32>
    %102 = arith.truncf %100 : vector<32x256xf32> to vector<32x256xbf16>
    %c256_53 = arith.constant 256 : index
    %c0_54 = arith.constant 0 : index
    %103 = vector.load %arg4[%c256_53, %c0_54] : memref<512x128xbf16, #tpu.memory_space<vmem>>, vector<256x128xbf16>
    %cst_55 = arith.constant dense<0.000000e+00> : vector<32x128xf32>
    %104 = tpu.matmul %102, %103, %cst_55 {dimension_numbers = #tpu.dot_dimension_numbers<[1], [0], [0], [1], [0, 0, 1, 1], [], []>} : vector<32x256xbf16>, vector<256x128xbf16>, vector<32x128xf32> -> vector<32x128xf32>
    %105 = arith.addf %101, %104 : vector<32x128xf32>
    %c0_56 = arith.constant 0 : index
    %c0_57 = arith.constant 0 : index
    %106 = vector.load %arg9[%c0_56, %c0_57] : memref<32x128xf32, #tpu.memory_space<vmem>>, vector<32x128xf32>
    tpu.vector_store %arg9[%c0_56, %c0_57], %105 {strides = array<i32>} : memref<32x128xf32, #tpu.memory_space<vmem>>, vector<32x128xf32>,
    %c0_58 = arith.constant 0 : index
    %c0_59 = arith.constant 0 : index
    %107 = vector.load %arg9[%c0_58, %c0_59] : memref<32x128xf32, #tpu.memory_space<vmem>>, vector<32x128xf32>
    %c0_60 = arith.constant 0 : index
    %c0_61 = arith.constant 0 : index
    %108 = vector.load %arg5[%c0_60, %c0_61] : memref<1x128xf32, #tpu.memory_space<vmem>>, vector<1x128xf32>
    %109 = vector.broadcast %108 : vector<1x128xf32> to vector<32x128xf32>
    %110 = arith.addf %107, %109 : vector<32x128xf32>
    %111 = arith.extf %0 : vector<32x128xbf16> to vector<32x128xf32>
    %112 = arith.addf %110, %111 : vector<32x128xf32>
    %c0_62 = arith.constant 0 : index
    %c0_63 = arith.constant 0 : index
    %113 = vector.load %arg6[%c0_62, %c0_63] : memref<1x128xf32, #tpu.memory_space<vmem>>, vector<1x128xf32>
    %c0_64 = arith.constant 0 : index
    %c0_65 = arith.constant 0 : index
    %114 = vector.load %arg7[%c0_64, %c0_65] : memref<1x128xf32, #tpu.memory_space<vmem>>, vector<1x128xf32>
    %cst_66 = arith.constant dense<0.000000e+00> : vector<32xf32>
    %115 = vector.multi_reduction <add>, %112, %cst_66 [1] : vector<32x128xf32> to vector<32xf32>
    %116 = vector.shape_cast %115 : vector<32xf32> to vector<32x1xf32>
    %cst_67 = arith.constant 1.280000e+02 : f32
    %117 = vector.broadcast %cst_67 : f32 to vector<32x1xf32>
    %118 = arith.divf %116, %117 : vector<32x1xf32>
    %119 = vector.broadcast %118 : vector<32x1xf32> to vector<32x128xf32>
    %120 = arith.subf %112, %119 : vector<32x128xf32>
    %121 = arith.mulf %120, %120 : vector<32x128xf32>
    %cst_68 = arith.constant dense<0.000000e+00> : vector<32xf32>
    %122 = vector.multi_reduction <add>, %121, %cst_68 [1] : vector<32x128xf32> to vector<32xf32>
    %123 = vector.shape_cast %122 : vector<32xf32> to vector<32x1xf32>
    %cst_69 = arith.constant 1.280000e+02 : f32
    %124 = vector.broadcast %cst_69 : f32 to vector<32x1xf32>
    %125 = arith.divf %123, %124 : vector<32x1xf32>
    %126 = vector.broadcast %118 : vector<32x1xf32> to vector<32x128xf32>
    %127 = arith.subf %112, %126 : vector<32x128xf32>
    %cst_70 = arith.constant 9.99999996E-13 : f32
    %128 = vector.broadcast %cst_70 : f32 to vector<32x1xf32>
    %129 = arith.addf %125, %128 : vector<32x1xf32>
    %130 = math.rsqrt %129 : vector<32x1xf32>
    %131 = vector.broadcast %130 : vector<32x1xf32> to vector<32x128xf32>
    %132 = arith.mulf %127, %131 : vector<32x128xf32>
    %133 = vector.broadcast %113 : vector<1x128xf32> to vector<32x128xf32>
    %134 = arith.mulf %132, %133 : vector<32x128xf32>
    %135 = vector.broadcast %114 : vector<1x128xf32> to vector<32x128xf32>
    %136 = arith.addf %134, %135 : vector<32x128xf32>
    %137 = arith.truncf %136 : vector<32x128xf32> to vector<32x128xbf16>
    %c0_71 = arith.constant 0 : index
    %c0_72 = arith.constant 0 : index
    %138 = vector.load %arg8[%c0_71, %c0_72] : memref<32x128xbf16, #tpu.memory_space<vmem>>, vector<32x128xbf16>
    tpu.vector_store %arg8[%c0_71, %c0_72], %137 {strides = array<i32>} : memref<32x128xbf16, #tpu.memory_space<vmem>>, vector<32x128xbf16>,
    return
  }
  func.func @transform_0(%arg0: i32) -> (i32, i32) {
    %c0_i32 = arith.constant 0 : i32
    %c0_i32_0 = arith.constant 0 : i32
    return %arg0, %c0_i32 : i32, i32
  }
  func.func @transform_1(%arg0: i32) -> (i32, i32) {
    %c0_i32 = arith.constant 0 : i32
    %c0_i32_0 = arith.constant 0 : i32
    %c0_i32_1 = arith.constant 0 : i32
    return %c0_i32, %c0_i32_0 : i32, i32
  }
  func.func @transform_2(%arg0: i32) -> (i32, i32) {
    %c0_i32 = arith.constant 0 : i32
    %c0_i32_0 = arith.constant 0 : i32
    %c0_i32_1 = arith.constant 0 : i32
    return %c0_i32, %c0_i32_0 : i32, i32
  }
  func.func @transform_3(%arg0: i32) -> (i32, i32) {
    %c0_i32 = arith.constant 0 : i32
    %c0_i32_0 = arith.constant 0 : i32
    %c0_i32_1 = arith.constant 0 : i32
    return %c0_i32, %c0_i32_0 : i32, i32
  }
  func.func @transform_4(%arg0: i32) -> (i32, i32) {
    %c0_i32 = arith.constant 0 : i32
    %c0_i32_0 = arith.constant 0 : i32
    %c0_i32_1 = arith.constant 0 : i32
    return %c0_i32, %c0_i32_0 : i32, i32
  }
  func.func @transform_5(%arg0: i32) -> (i32, i32) {
    %c0_i32 = arith.constant 0 : i32
    %c0_i32_0 = arith.constant 0 : i32
    %c0_i32_1 = arith.constant 0 : i32
    return %c0_i32, %c0_i32_0 : i32, i32
  }
  func.func @transform_6(%arg0: i32) -> (i32, i32) {
    %c0_i32 = arith.constant 0 : i32
    %c0_i32_0 = arith.constant 0 : i32
    %c0_i32_1 = arith.constant 0 : i32
    return %c0_i32, %c0_i32_0 : i32, i32
  }
  func.func @transform_7(%arg0: i32) -> (i32, i32) {
    %c0_i32 = arith.constant 0 : i32
    %c0_i32_0 = arith.constant 0 : i32
    return %arg0, %c0_i32 : i32, i32
  }
}

</mosaic_0001>

<llo_original>
// kernel: _lambda_.11
$region0: #{_lambda_.11}
  #allocation0 [shape = 'u32[]', space=smem, size = 0x4, offset = 0x4, fixed_abs, tag = 'smem constant byte address 0x4 - core index']
  #allocation1 [shape = 'u32[144,128]{1,0:T(1,128)}', space=vmem, size = 0x12000, scoped, tag = 'internal scratch']
  %s0 = inlined_call_operand.vmem [shape: f32[2,16,128], index: 0, kind: input, shape index: {}]
  %s1 = inlined_call_operand.vmem [shape: f32[16,128], index: 1, kind: input, shape index: {}]
  %s2 = inlined_call_operand.vmem [shape: f32[1,128], index: 2, kind: input, shape index: {}]
  %s3 = inlined_call_operand.vmem [shape: f32[1,128], index: 3, kind: input, shape index: {}]
  %s4 = inlined_call_operand.vmem [shape: f32[1,128], index: 4, kind: input, shape index: {}]
  %s5 = inlined_call_operand.vmem [shape: bf16[2,16,128], index: 5, kind: output, shape index: {}]
  %s6 = sld [smem:[#allocation0]]
  $region53: #{_lambda_.11} parent=0
    _
  %s8 = ssub.s32 1, %s6
  %s9 = scalar_select 0, %s8, %s6
  loop: start=0, step=1, limit=4
  $region2: #{_lambda_.11} parent=0 // loop_pre_header
    _
  $region3: #{_lambda_.11} parent=0 // loop_header
    %s11 = sphi 0, %s15
    %p12 = scmp.ge.s32.totalorder %s11, 4
    %s21 = sphi 0, %s23
    %s24 = sphi 0, %s21
    %s25 = sphi 0, %s24
    %s41 = sphi 0, %s25
    %s45 = sphi 0, %s45
    %s47 = sphi 0, %s45
    %s48 = sphi 0, %s47
    %s62 = sphi 0, %s48
    %s66 = sphi 0, %s66
    %s68 = sphi 0, %s66
    %s69 = sphi 0, %s68
    %s83 = sphi 0, %s69
    %s87 = sphi 0, %s87
    %s89 = sphi 0, %s87
    %s90 = sphi 0, %s89
    %s104 = sphi 0, %s90
    %s108 = sphi 0, %s108
    %s110 = sphi 0, %s108
    %s111 = sphi 0, %s110
    %s125 = sphi 0, %s111
    %s131 = sphi 0, %s133
    %s134 = sphi 0, %s131
    %s135 = sphi 0, %s134
    %s151 = sphi 0, %s135
  $region4: #{_lambda_.11} parent=0 // loop_header_branch
    %14 = sbr.rel (%p12) target = $region8
  $region5: #{_lambda_.11} parent=0 // loop_body
    %s16 = ssub.s32 %s11, 1
    %s17 = ssub.s32 %s11, 2
    %s18 = sadd.s32 %s11, 1
    %s19 = ssub.s32 %s11, %s18
    %p20 = scmp.eq.s32.totalorder %s19, 0
    %s22 = sadd.s32 %s21, 1
    %s23 = scalar_select %p20, %s21, %s22
    %p26 = pneg %p20
    %p27 = scmp.eq.s32.totalorder %s11, 1
    %p28 = por %p26, %p27
    %p29 = scmp.ne.s32.totalorder %s21, %s24
    %p30 = scmp.eq.s32.totalorder %s11, 0
    %p31 = por %p29, %p30
    %p32 = scmp.ne.s32.totalorder %s21, %s24
    %p33 = scmp.eq.s32.totalorder %s16, 1
    %p34 = por %p32, %p33
    %p35 = scmp.ne.s32.totalorder %s24, %s25
    %p36 = scmp.eq.s32.totalorder %s16, 0
    %p37 = por %p35, %p36
    %p38 = scmp.ne.s32.totalorder %s24, %s25
    %p39 = scmp.eq.s32.totalorder %s17, 1
    %p40 = por %p38, %p39
    %p42 = scmp.ne.s32.totalorder %s25, %s41
    %p43 = scmp.eq.s32.totalorder %s17, 0
    %p44 = por %p42, %p43
    %s46 = sadd.s32 %s45, 1
    %p49 = scmp.eq.s32.totalorder %s11, 1
    %p50 = scmp.ne.s32.totalorder %s45, %s47
    %p51 = scmp.eq.s32.totalorder %s11, 0
    %p52 = por %p50, %p51
    %p53 = scmp.ne.s32.totalorder %s45, %s47
    %p54 = scmp.eq.s32.totalorder %s16, 1
    %p55 = por %p53, %p54
    %p56 = scmp.ne.s32.totalorder %s47, %s48
    %p57 = scmp.eq.s32.totalorder %s16, 0
    %p58 = por %p56, %p57
    %p59 = scmp.ne.s32.totalorder %s47, %s48
    %p60 = scmp.eq.s32.totalorder %s17, 1
    %p61 = por %p59, %p60
    %p63 = scmp.ne.s32.totalorder %s48, %s62
    %p64 = scmp.eq.s32.totalorder %s17, 0
    %p65 = por %p63, %p64
    %s67 = sadd.s32 %s66, 1
    %p70 = scmp.eq.s32.totalorder %s11, 1
    %p71 = scmp.ne.s32.totalorder %s66, %s68
    %p72 = scmp.eq.s32.totalorder %s11, 0
    %p73 = por %p71, %p72
    %p74 = scmp.ne.s32.totalorder %s66, %s68
    %p75 = scmp.eq.s32.totalorder %s16, 1
    %p76 = por %p74, %p75
    %p77 = scmp.ne.s32.totalorder %s68, %s69
    %p78 = scmp.eq.s32.totalorder %s16, 0
    %p79 = por %p77, %p78
    %p80 = scmp.ne.s32.totalorder %s68, %s69
    %p81 = scmp.eq.s32.totalorder %s17, 1
    %p82 = por %p80, %p81
    %p84 = scmp.ne.s32.totalorder %s69, %s83
    %p85 = scmp.eq.s32.totalorder %s17, 0
    %p86 = por %p84, %p85
    %s88 = sadd.s32 %s87, 1
    %p91 = scmp.eq.s32.totalorder %s11, 1
    %p92 = scmp.ne.s32.totalorder %s87, %s89
    %p93 = scmp.eq.s32.totalorder %s11, 0
    %p94 = por %p92, %p93
    %p95 = scmp.ne.s32.totalorder %s87, %s89
    %p96 = scmp.eq.s32.totalorder %s16, 1
    %p97 = por %p95, %p96
    %p98 = scmp.ne.s32.totalorder %s89, %s90
    %p99 = scmp.eq.s32.totalorder %s16, 0
    %p100 = por %p98, %p99
    %p101 = scmp.ne.s32.totalorder %s89, %s90
    %p102 = scmp.eq.s32.totalorder %s17, 1
    %p103 = por %p101, %p102
    %p105 = scmp.ne.s32.totalorder %s90, %s104
    %p106 = scmp.eq.s32.totalorder %s17, 0
    %p107 = por %p105, %p106
    %s109 = sadd.s32 %s108, 1
    %p112 = scmp.eq.s32.totalorder %s11, 1
    %p113 = scmp.ne.s32.totalorder %s108, %s110
    %p114 = scmp.eq.s32.totalorder %s11, 0
    %p115 = por %p113, %p114
    %p116 = scmp.ne.s32.totalorder %s108, %s110
    %p117 = scmp.eq.s32.totalorder %s16, 1
    %p118 = por %p116, %p117
    %p119 = scmp.ne.s32.totalorder %s110, %s111
    %p120 = scmp.eq.s32.totalorder %s16, 0
    %p121 = por %p119, %p120
    %p122 = scmp.ne.s32.totalorder %s110, %s111
    %p123 = scmp.eq.s32.totalorder %s17, 1
    %p124 = por %p122, %p123
    %p126 = scmp.ne.s32.totalorder %s111, %s125
    %p127 = scmp.eq.s32.totalorder %s17, 0
    %p128 = por %p126, %p127
    %s129 = ssub.s32 %s11, %s18
    %p130 = scmp.eq.s32.totalorder %s129, 0
    %s132 = sadd.s32 %s131, 1
    %s133 = scalar_select %p130, %s131, %s132
    %p136 = pneg %p130
    %p137 = scmp.eq.s32.totalorder %s11, 1
    %p138 = por %p136, %p137
    %p139 = scmp.ne.s32.totalorder %s131, %s134
    %p140 = scmp.eq.s32.totalorder %s11, 0
    %p141 = por %p139, %p140
    %p142 = scmp.ne.s32.totalorder %s131, %s134
    %p143 = scmp.eq.s32.totalorder %s16, 1
    %p144 = por %p142, %p143
    %p145 = scmp.ne.s32.totalorder %s134, %s135
    %p146 = scmp.eq.s32.totalorder %s16, 0
    %p147 = por %p145, %p146
    %p148 = scmp.ne.s32.totalorder %s134, %s135
    %p149 = scmp.eq.s32.totalorder %s17, 1
    %p150 = por %p148, %p149
    %p152 = scmp.ne.s32.totalorder %s135, %s151
    %p153 = scmp.eq.s32.totalorder %s17, 0
    %p154 = por %p152, %p153
    %p155 = scmp.le.s32.totalorder 1, %s11
    %p156 = scmp.lt.s32.totalorder %s11, 3
    %p157 = pnand %p155, %p156
    %p158 = pneg %p157
    // Predicated region
    $region9: #{_lambda_.11} parent=5 // pred_check
      _
    $region10: #{_lambda_.11} parent=5 // pred_check_branch
      %160 = sbr.rel (%p157) target = $region12
    $region11: #{_lambda_.11} parent=5 // pred_region
      %s161 = ssub.s32 %s11, 1
      // Predicated region
      $region13: #{_lambda_.11} parent=11 // pred_check
        %p162 = pneg %p58
      $region14: #{_lambda_.11} parent=11 // pred_check_branch
        %164 = sbr.rel (%p162) target = $region16
      $region15: #{_lambda_.11} parent=11 // pred_region
        _
      $region16: #{_lambda_.11} parent=11 // pred_fallthru
        _
      // Predicated region
      $region17: #{_lambda_.11} parent=11 // pred_check
        %p165 = pneg %p79
      $region18: #{_lambda_.11} parent=11 // pred_check_branch
        %167 = sbr.rel (%p165) target = $region20
      $region19: #{_lambda_.11} parent=11 // pred_region
        _
      $region20: #{_lambda_.11} parent=11 // pred_fallthru
        _
      // Predicated region
      $region21: #{_lambda_.11} parent=11 // pred_check
        %p168 = pneg %p100
      $region22: #{_lambda_.11} parent=11 // pred_check_branch
        %170 = sbr.rel (%p168) target = $region24
      $region23: #{_lambda_.11} parent=11 // pred_region
        _
      $region24: #{_lambda_.11} parent=11 // pred_fallthru
        _
      // Predicated region
      $region25: #{_lambda_.11} parent=11 // pred_check
        %p171 = pneg %p121
      $region26: #{_lambda_.11} parent=11 // pred_check_branch
        %173 = sbr.rel (%p171) target = $region28
      $region27: #{_lambda_.11} parent=11 // pred_region
        _
      $region28: #{_lambda_.11} parent=11 // pred_fallthru
        _
    $region12: #{_lambda_.11} parent=5 // pred_fallthru
      _
    %p174 = scmp.lt.s32.totalorder %s11, 2
    // Predicated region
    $region29: #{_lambda_.11} parent=5 // pred_check
      %p175 = pneg %p174
    $region30: #{_lambda_.11} parent=5 // pred_check_branch
      %177 = sbr.rel (%p175) target = $region32
    $region31: #{_lambda_.11} parent=5 // pred_region
      // Predicated region
      $region33: #{_lambda_.11} parent=31 // pred_check
        %p178 = pneg %p31
      $region34: #{_lambda_.11} parent=31 // pred_check_branch
        %180 = sbr.rel (%p178) target = $region36
      $region35: #{_lambda_.11} parent=31 // pred_region
        %p181 = scmp.lt.s32.totalorder %s11, 1
        %s182 = scalar_select %p181, %s11, 1
        %s183 = smul.addr %s182, 2
        %s184 = smul.addr %s183, 8
        %s185 = scalar_lea.vmem %s0, %s184
      $region36: #{_lambda_.11} parent=31 // pred_fallthru
        _
    $region32: #{_lambda_.11} parent=5 // pred_fallthru
      _
    %p186 = scmp.le.s32.totalorder 1, %s11
    %p187 = scmp.lt.s32.totalorder %s11, 3
    %p188 = pnand %p186, %p187
    %p189 = pneg %p188
    // Predicated region
    $region37: #{_lambda_.11} parent=5 // pred_check
      _
    $region38: #{_lambda_.11} parent=5 // pred_check_branch
      %191 = sbr.rel (%p188) target = $region40
    $region39: #{_lambda_.11} parent=5 // pred_region
      %s192 = ssub.s32 %s11, 1
      %p193 = scmp.lt.s32.totalorder %s16, 1
      %s194 = scalar_select %p193, %s16, 1
      %s195 = smul.addr %s194, 2
      %s196 = smul.addr %s195, 8
      %s197 = scalar_lea.vmem %s0, %s196
      %p198 = pneg %p37
      %p199 = pneg %p34
      %p200 = pneg %p58
      %p201 = pneg %p55
      %p202 = pneg %p79
      %p203 = pneg %p76
      %p204 = pneg %p100
      %p205 = pneg %p97
      %p206 = pneg %p121
      %p207 = pneg %p118
      %p208 = pneg %p147
      %p209 = pneg %p144
      %p210 = scmp.lt.s32.totalorder %s16, 1
      %s211 = scalar_select %p210, %s16, 1
      %s212 = smul.addr %s211, 2
      %s213 = smul.addr %s212, 4
      %s214 = scalar_lea.vmem %s5, %s213
      %p215 = scmp.lt.s32.totalorder %s16, 1
      %s216 = scalar_select %p215, %s16, 1
      %s217 = smul.addr %s216, 2
      %s218 = smul.addr %s217, 8
      %s219 = scalar_lea.vmem %s0, %s218
      %p220 = scmp.lt.s32.totalorder %s16, 1
      %s221 = scalar_select %p220, %s16, 1
      %s222 = smul.addr %s221, 2
      %s223 = smul.addr %s222, 4
      %s224 = scalar_lea.vmem %s5, %s223
      %v225 = vld [vmem:[%s219] sm:$0xff]
      %v226 = vld [vmem:[%s219 + $0x8] sm:$0xff]
      %v227 = vld [vmem:[%s1] sm:$0xff]
      %v228 = vld [vmem:[%s1 + $0x8] sm:$0xff]
      %v229 = vadd.f32 %v225, %v227
      %v230 = vadd.f32 %v226, %v228
      %v231 = vld [vmem:[%s2] sm:$0x1]
      %v233 = vlaneseq
      %v234 = vshrl.u32 %v233, 7
      %v235 = vsub.s32 0, %v234
      %v236 = vrot.slane %v231, %v235
      %v238 = vadd.f32 %v229, %v236
      %v239 = vadd.f32 %v230, %v236
      %v240 = vld [vmem:[%s3] sm:$0x1]
      %v241 = vld [vmem:[%s4] sm:$0x1]
      %242 = vadd.xlane.f32.xlu0 %v238
      %v243 = vpop.xlane.xlu0 %242
      %244 = vadd.xlane.f32.xlu0 %v239
      %v245 = vpop.xlane.xlu0 %244
      %v246 = vrcp.pop 128.0
      %v247 = vmul.f32 %v243, %v246
      %v248 = vmul.f32 %v245, %v246
      %v249 = vsub.f32 %v238, %v247
      %v250 = vsub.f32 %v239, %v248
      %v251 = vmul.f32 %v249, %v249
      %v252 = vmul.f32 %v250, %v250
      %253 = vadd.xlane.f32.xlu0 %v251
      %v254 = vpop.xlane.xlu0 %253
      %255 = vadd.xlane.f32.xlu0 %v252
      %v256 = vpop.xlane.xlu0 %255
      %v257 = vmul.f32 %v254, %v246
      %v258 = vmul.f32 %v256, %v246
      %v259 = vadd.f32 %v257, 1e-12
      %v260 = vadd.f32 %v258, 1e-12
      %v261 = vrsqrt.pop %v259
      %v262 = vrsqrt.pop %v260
      %v263 = vmul.f32 %v249, %v261
      %v264 = vmul.f32 %v250, %v262
      %v266 = vlaneseq
      %v267 = vshrl.u32 %v266, 7
      %v268 = vsub.s32 0, %v267
      %v269 = vrot.slane %v240, %v268
      %v271 = vmul.f32 %v263, %v269
      %v272 = vmul.f32 %v264, %v269
      %v274 = vlaneseq
      %v275 = vshrl.u32 %v274, 7
      %v276 = vsub.s32 0, %v275
      %v277 = vrot.slane %v241, %v276
      %v279 = vadd.f32 %v271, %v277
      %v280 = vadd.f32 %v272, %v277
      %v281 = vpack.c.bf16 %v280, %v279
      %v283 = vunpack.c.l.b16 %v281
      %v284 = vunpack.c.h.b16 %v281
      %v285 = vpack.c.b16 %v283, %v283
      %v286 = vpack.c.b16 %v284, %v284
      %289 = vst [vmem:[%s224] sm:$0xf] %v285
      %290 = vst [vmem:[%s224 + $0x4] sm:$0xf] %v286
      %p291 = scmp.lt.s32.totalorder %s16, 1
      %s292 = scalar_select %p291, %s16, 1
      %s293 = smul.addr %s292, 2
      %s294 = smul.addr %s293, 4
      %s295 = scalar_lea.vmem %s5, %s294
      // Predicated region
      $region41: #{_lambda_.11} parent=39 // pred_check
        %p296 = pneg %p144
      $region42: #{_lambda_.11} parent=39 // pred_check_branch
        %298 = sbr.rel (%p296) target = $region44
      $region43: #{_lambda_.11} parent=39 // pred_region
        _
      $region44: #{_lambda_.11} parent=39 // pred_fallthru
        _
    $region40: #{_lambda_.11} parent=5 // pred_fallthru
      _
    %p299 = scmp.le.s32.totalorder 2, %s11
    // Predicated region
    $region45: #{_lambda_.11} parent=5 // pred_check
      %p300 = pneg %p299
    $region46: #{_lambda_.11} parent=5 // pred_check_branch
      %302 = sbr.rel (%p300) target = $region48
    $region47: #{_lambda_.11} parent=5 // pred_region
      %s303 = ssub.s32 %s11, 2
      // Predicated region
      $region49: #{_lambda_.11} parent=47 // pred_check
        %p304 = pneg %p150
      $region50: #{_lambda_.11} parent=47 // pred_check_branch
        %306 = sbr.rel (%p304) target = $region52
      $region51: #{_lambda_.11} parent=47 // pred_region
        %p307 = scmp.lt.s32.totalorder %s17, 1
        %s308 = scalar_select %p307, %s17, 1
        %s309 = smul.addr %s308, 2
        %s310 = smul.addr %s309, 4
        %s311 = scalar_lea.vmem %s5, %s310
      $region52: #{_lambda_.11} parent=47 // pred_fallthru
        _
    $region48: #{_lambda_.11} parent=5 // pred_fallthru
      _
  $region6: #{_lambda_.11} parent=0 // loop_footer
    %s15 = sadd.s32 1, %s11
  $region7: #{_lambda_.11} parent=0 // loop_footer_branch
    %10 = sbr.rel target = $region3
  $region8: #{_lambda_.11} parent=0 // loop_exit
    _

// kernel: _lambda_.10
$region0: #{_lambda_.10}
  #allocation0 [shape = 'u32[]', space=smem, size = 0x4, offset = 0x4, fixed_abs, tag = 'smem constant byte address 0x4 - core index']
  #allocation1 [shape = 'u32[144,128]{1,0:T(1,128)}', space=vmem, size = 0x12000, scoped, tag = 'internal scratch']
  %s0 = inlined_call_operand.vmem [shape: f32[2,12,128], index: 0, kind: input, shape index: {}]
  %s1 = inlined_call_operand.vmem [shape: f32[12,128], index: 1, kind: input, shape index: {}]
  %s2 = inlined_call_operand.vmem [shape: f32[1,128], index: 2, kind: input, shape index: {}]
  %s3 = inlined_call_operand.vmem [shape: f32[1,128], index: 3, kind: input, shape index: {}]
  %s4 = inlined_call_operand.vmem [shape: f32[1,128], index: 4, kind: input, shape index: {}]
  %s5 = inlined_call_operand.vmem [shape: f32[2,12,128], index: 5, kind: output, shape index: {}]
  %s6 = sld [smem:[#allocation0]]
  $region53: #{_lambda_.10} parent=0
    _
  %s8 = ssub.s32 1, %s6
  %s9 = scalar_select 0, %s8, %s6
  loop: start=0, step=1, limit=4
  $region2: #{_lambda_.10} parent=0 // loop_pre_header
    _
  $region3: #{_lambda_.10} parent=0 // loop_header
    %s11 = sphi 0, %s15
    %p12 = scmp.ge.s32.totalorder %s11, 4
    %s21 = sphi 0, %s23
    %s24 = sphi 0, %s21
    %s25 = sphi 0, %s24
    %s41 = sphi 0, %s25
    %s45 = sphi 0, %s45
    %s47 = sphi 0, %s45
    %s48 = sphi 0, %s47
    %s62 = sphi 0, %s48
    %s66 = sphi 0, %s66
    %s68 = sphi 0, %s66
    %s69 = sphi 0, %s68
    %s83 = sphi 0, %s69
    %s87 = sphi 0, %s87
    %s89 = sphi 0, %s87
    %s90 = sphi 0, %s89
    %s104 = sphi 0, %s90
    %s108 = sphi 0, %s108
    %s110 = sphi 0, %s108
    %s111 = sphi 0, %s110
    %s125 = sphi 0, %s111
    %s131 = sphi 0, %s133
    %s134 = sphi 0, %s131
    %s135 = sphi 0, %s134
    %s151 = sphi 0, %s135
  $region4: #{_lambda_.10} parent=0 // loop_header_branch
    %14 = sbr.rel (%p12) target = $region8
  $region5: #{_lambda_.10} parent=0 // loop_body
    %s16 = ssub.s32 %s11, 1
    %s17 = ssub.s32 %s11, 2
    %s18 = sadd.s32 %s11, 1
    %s19 = ssub.s32 %s11, %s18
    %p20 = scmp.eq.s32.totalorder %s19, 0
    %s22 = sadd.s32 %s21, 1
    %s23 = scalar_select %p20, %s21, %s22
    %p26 = pneg %p20
    %p27 = scmp.eq.s32.totalorder %s11, 1
    %p28 = por %p26, %p27
    %p29 = scmp.ne.s32.totalorder %s21, %s24
    %p30 = scmp.eq.s32.totalorder %s11, 0
    %p31 = por %p29, %p30
    %p32 = scmp.ne.s32.totalorder %s21, %s24
    %p33 = scmp.eq.s32.totalorder %s16, 1
    %p34 = por %p32, %p33
    %p35 = scmp.ne.s32.totalorder %s24, %s25
    %p36 = scmp.eq.s32.totalorder %s16, 0
    %p37 = por %p35, %p36
    %p38 = scmp.ne.s32.totalorder %s24, %s25
    %p39 = scmp.eq.s32.totalorder %s17, 1
    %p40 = por %p38, %p39
    %p42 = scmp.ne.s32.totalorder %s25, %s41
    %p43 = scmp.eq.s32.totalorder %s17, 0
    %p44 = por %p42, %p43
    %s46 = sadd.s32 %s45, 1
    %p49 = scmp.eq.s32.totalorder %s11, 1
    %p50 = scmp.ne.s32.totalorder %s45, %s47
    %p51 = scmp.eq.s32.totalorder %s11, 0
    %p52 = por %p50, %p51
    %p53 = scmp.ne.s32.totalorder %s45, %s47
    %p54 = scmp.eq.s32.totalorder %s16, 1
    %p55 = por %p53, %p54
    %p56 = scmp.ne.s32.totalorder %s47, %s48
    %p57 = scmp.eq.s32.totalorder %s16, 0
    %p58 = por %p56, %p57
    %p59 = scmp.ne.s32.totalorder %s47, %s48
    %p60 = scmp.eq.s32.totalorder %s17, 1
    %p61 = por %p59, %p60
    %p63 = scmp.ne.s32.totalorder %s48, %s62
    %p64 = scmp.eq.s32.totalorder %s17, 0
    %p65 = por %p63, %p64
    %s67 = sadd.s32 %s66, 1
    %p70 = scmp.eq.s32.totalorder %s11, 1
    %p71 = scmp.ne.s32.totalorder %s66, %s68
    %p72 = scmp.eq.s32.totalorder %s11, 0
    %p73 = por %p71, %p72
    %p74 = scmp.ne.s32.totalorder %s66, %s68
    %p75 = scmp.eq.s32.totalorder %s16, 1
    %p76 = por %p74, %p75
    %p77 = scmp.ne.s32.totalorder %s68, %s69
    %p78 = scmp.eq.s32.totalorder %s16, 0
    %p79 = por %p77, %p78
    %p80 = scmp.ne.s32.totalorder %s68, %s69
    %p81 = scmp.eq.s32.totalorder %s17, 1
    %p82 = por %p80, %p81
    %p84 = scmp.ne.s32.totalorder %s69, %s83
    %p85 = scmp.eq.s32.totalorder %s17, 0
    %p86 = por %p84, %p85
    %s88 = sadd.s32 %s87, 1
    %p91 = scmp.eq.s32.totalorder %s11, 1
    %p92 = scmp.ne.s32.totalorder %s87, %s89
    %p93 = scmp.eq.s32.totalorder %s11, 0
    %p94 = por %p92, %p93
    %p95 = scmp.ne.s32.totalorder %s87, %s89
    %p96 = scmp.eq.s32.totalorder %s16, 1
    %p97 = por %p95, %p96
    %p98 = scmp.ne.s32.totalorder %s89, %s90
    %p99 = scmp.eq.s32.totalorder %s16, 0
    %p100 = por %p98, %p99
    %p101 = scmp.ne.s32.totalorder %s89, %s90
    %p102 = scmp.eq.s32.totalorder %s17, 1
    %p103 = por %p101, %p102
    %p105 = scmp.ne.s32.totalorder %s90, %s104
    %p106 = scmp.eq.s32.totalorder %s17, 0
    %p107 = por %p105, %p106
    %s109 = sadd.s32 %s108, 1
    %p112 = scmp.eq.s32.totalorder %s11, 1
    %p113 = scmp.ne.s32.totalorder %s108, %s110
    %p114 = scmp.eq.s32.totalorder %s11, 0
    %p115 = por %p113, %p114
    %p116 = scmp.ne.s32.totalorder %s108, %s110
    %p117 = scmp.eq.s32.totalorder %s16, 1
    %p118 = por %p116, %p117
    %p119 = scmp.ne.s32.totalorder %s110, %s111
    %p120 = scmp.eq.s32.totalorder %s16, 0
    %p121 = por %p119, %p120
    %p122 = scmp.ne.s32.totalorder %s110, %s111
    %p123 = scmp.eq.s32.totalorder %s17, 1
    %p124 = por %p122, %p123
    %p126 = scmp.ne.s32.totalorder %s111, %s125
    %p127 = scmp.eq.s32.totalorder %s17, 0
    %p128 = por %p126, %p127
    %s129 = ssub.s32 %s11, %s18
    %p130 = scmp.eq.s32.totalorder %s129, 0
    %s132 = sadd.s32 %s131, 1
    %s133 = scalar_select %p130, %s131, %s132
    %p136 = pneg %p130
    %p137 = scmp.eq.s32.totalorder %s11, 1
    %p138 = por %p136, %p137
    %p139 = scmp.ne.s32.totalorder %s131, %s134
    %p140 = scmp.eq.s32.totalorder %s11, 0
    %p141 = por %p139, %p140
    %p142 = scmp.ne.s32.totalorder %s131, %s134
    %p143 = scmp.eq.s32.totalorder %s16, 1
    %p144 = por %p142, %p143
    %p145 = scmp.ne.s32.totalorder %s134, %s135
    %p146 = scmp.eq.s32.totalorder %s16, 0
    %p147 = por %p145, %p146
    %p148 = scmp.ne.s32.totalorder %s134, %s135
    %p149 = scmp.eq.s32.totalorder %s17, 1
    %p150 = por %p148, %p149
    %p152 = scmp.ne.s32.totalorder %s135, %s151
    %p153 = scmp.eq.s32.totalorder %s17, 0
    %p154 = por %p152, %p153
    %p155 = scmp.le.s32.totalorder 1, %s11
    %p156 = scmp.lt.s32.totalorder %s11, 3
    %p157 = pnand %p155, %p156
    %p158 = pneg %p157
    // Predicated region
    $region9: #{_lambda_.10} parent=5 // pred_check
      _
    $region10: #{_lambda_.10} parent=5 // pred_check_branch
      %160 = sbr.rel (%p157) target = $region12
    $region11: #{_lambda_.10} parent=5 // pred_region
      %s161 = ssub.s32 %s11, 1
      // Predicated region
      $region13: #{_lambda_.10} parent=11 // pred_check
        %p162 = pneg %p58
      $region14: #{_lambda_.10} parent=11 // pred_check_branch
        %164 = sbr.rel (%p162) target = $region16
      $region15: #{_lambda_.10} parent=11 // pred_region
        _
      $region16: #{_lambda_.10} parent=11 // pred_fallthru
        _
      // Predicated region
      $region17: #{_lambda_.10} parent=11 // pred_check
        %p165 = pneg %p79
      $region18: #{_lambda_.10} parent=11 // pred_check_branch
        %167 = sbr.rel (%p165) target = $region20
      $region19: #{_lambda_.10} parent=11 // pred_region
        _
      $region20: #{_lambda_.10} parent=11 // pred_fallthru
        _
      // Predicated region
      $region21: #{_lambda_.10} parent=11 // pred_check
        %p168 = pneg %p100
      $region22: #{_lambda_.10} parent=11 // pred_check_branch
        %170 = sbr.rel (%p168) target = $region24
      $region23: #{_lambda_.10} parent=11 // pred_region
        _
      $region24: #{_lambda_.10} parent=11 // pred_fallthru
        _
      // Predicated region
      $region25: #{_lambda_.10} parent=11 // pred_check
        %p171 = pneg %p121
      $region26: #{_lambda_.10} parent=11 // pred_check_branch
        %173 = sbr.rel (%p171) target = $region28
      $region27: #{_lambda_.10} parent=11 // pred_region
        _
      $region28: #{_lambda_.10} parent=11 // pred_fallthru
        _
    $region12: #{_lambda_.10} parent=5 // pred_fallthru
      _
    %p174 = scmp.lt.s32.totalorder %s11, 2
    // Predicated region
    $region29: #{_lambda_.10} parent=5 // pred_check
      %p175 = pneg %p174
    $region30: #{_lambda_.10} parent=5 // pred_check_branch
      %177 = sbr.rel (%p175) target = $region32
    $region31: #{_lambda_.10} parent=5 // pred_region
      // Predicated region
      $region33: #{_lambda_.10} parent=31 // pred_check
        %p178 = pneg %p31
      $region34: #{_lambda_.10} parent=31 // pred_check_branch
        %180 = sbr.rel (%p178) target = $region36
      $region35: #{_lambda_.10} parent=31 // pred_region
        %p181 = scmp.lt.s32.totalorder %s11, 1
        %s182 = scalar_select %p181, %s11, 1
        %s183 = smul.addr %s182, 2
        %s184 = smul.addr %s183, 8
        %s185 = scalar_lea.vmem %s0, %s184
      $region36: #{_lambda_.10} parent=31 // pred_fallthru
        _
    $region32: #{_lambda_.10} parent=5 // pred_fallthru
      _
    %p186 = scmp.le.s32.totalorder 1, %s11
    %p187 = scmp.lt.s32.totalorder %s11, 3
    %p188 = pnand %p186, %p187
    %p189 = pneg %p188
    // Predicated region
    $region37: #{_lambda_.10} parent=5 // pred_check
      _
    $region38: #{_lambda_.10} parent=5 // pred_check_branch
      %191 = sbr.rel (%p188) target = $region40
    $region39: #{_lambda_.10} parent=5 // pred_region
      %s192 = ssub.s32 %s11, 1
      %p193 = scmp.lt.s32.totalorder %s16, 1
      %s194 = scalar_select %p193, %s16, 1
      %s195 = smul.addr %s194, 2
      %s196 = smul.addr %s195, 8
      %s197 = scalar_lea.vmem %s0, %s196
      %p198 = pneg %p37
      %p199 = pneg %p34
      %p200 = pneg %p58
      %p201 = pneg %p55
      %p202 = pneg %p79
      %p203 = pneg %p76
      %p204 = pneg %p100
      %p205 = pneg %p97
      %p206 = pneg %p121
      %p207 = pneg %p118
      %p208 = pneg %p147
      %p209 = pneg %p144
      %p210 = scmp.lt.s32.totalorder %s16, 1
      %s211 = scalar_select %p210, %s16, 1
      %s212 = smul.addr %s211, 2
      %s213 = smul.addr %s212, 8
      %s214 = scalar_lea.vmem %s5, %s213
      %p215 = scmp.lt.s32.totalorder %s16, 1
      %s216 = scalar_select %p215, %s16, 1
      %s217 = smul.addr %s216, 2
      %s218 = smul.addr %s217, 8
      %s219 = scalar_lea.vmem %s0, %s218
      %p220 = scmp.lt.s32.totalorder %s16, 1
      %s221 = scalar_select %p220, %s16, 1
      %s222 = smul.addr %s221, 2
      %s223 = smul.addr %s222, 8
      %s224 = scalar_lea.vmem %s5, %s223
      %v225 = vld [vmem:[%s219] sm:$0xff]
      %v226 = vld [vmem:[%s219 + $0x8] sm:$0xf]
      %v227 = vld [vmem:[%s1] sm:$0xff]
      %v228 = vld [vmem:[%s1 + $0x8] sm:$0xf]
      %v229 = vadd.f32 %v225, %v227
      %v230 = vadd.f32 %v226, %v228
      %v231 = vld [vmem:[%s2] sm:$0x1]
      %v233 = vlaneseq
      %v234 = vshrl.u32 %v233, 7
      %v235 = vsub.s32 0, %v234
      %v236 = vrot.slane %v231, %v235
      %v238 = vadd.f32 %v229, %v236
      %v239 = vadd.f32 %v230, %v236
      %v240 = vld [vmem:[%s3] sm:$0x1]
      %v241 = vld [vmem:[%s4] sm:$0x1]
      %242 = vadd.xlane.f32.xlu0 %v238
      %v243 = vpop.xlane.xlu0 %242
      %vm244 = vcmask 1043456
      %v245 = vsel %vm244, %v239, 0.0
      %246 = vadd.xlane.f32.xlu0 %v245
      %v247 = vpop.xlane.xlu0 %246
      %v248 = vrcp.pop 128.0
      %v249 = vmul.f32 %v243, %v248
      %v250 = vmul.f32 %v247, %v248
      %v251 = vsub.f32 %v238, %v249
      %v252 = vsub.f32 %v239, %v250
      %v253 = vmul.f32 %v251, %v251
      %v254 = vmul.f32 %v252, %v252
      %255 = vadd.xlane.f32.xlu0 %v253
      %v256 = vpop.xlane.xlu0 %255
      %v257 = vsel %vm244, %v254, 0.0
      %258 = vadd.xlane.f32.xlu0 %v257
      %v259 = vpop.xlane.xlu0 %258
      %v260 = vmul.f32 %v256, %v248
      %v261 = vmul.f32 %v259, %v248
      %v262 = vadd.f32 %v260, 1e-12
      %v263 = vadd.f32 %v261, 1e-12
      %v264 = vrsqrt.pop %v262
      %v265 = vrsqrt.pop %v263
      %v266 = vmul.f32 %v251, %v264
      %v267 = vmul.f32 %v252, %v265
      %v269 = vlaneseq
      %v270 = vshrl.u32 %v269, 7
      %v271 = vsub.s32 0, %v270
      %v272 = vrot.slane %v240, %v271
      %v274 = vmul.f32 %v266, %v272
      %v275 = vmul.f32 %v267, %v272
      %v277 = vlaneseq
      %v278 = vshrl.u32 %v277, 7
      %v279 = vsub.s32 0, %v278
      %v280 = vrot.slane %v241, %v279
      %v282 = vadd.f32 %v274, %v280
      %v283 = vadd.f32 %v275, %v280
      %284 = vst [vmem:[%s224] sm:$0xff] %v282
      %285 = vst [vmem:[%s224 + $0x8] sm:$0xf] %v283
      %p286 = scmp.lt.s32.totalorder %s16, 1
      %s287 = scalar_select %p286, %s16, 1
      %s288 = smul.addr %s287, 2
      %s289 = smul.addr %s288, 8
      %s290 = scalar_lea.vmem %s5, %s289
      // Predicated region
      $region41: #{_lambda_.10} parent=39 // pred_check
        %p291 = pneg %p144
      $region42: #{_lambda_.10} parent=39 // pred_check_branch
        %293 = sbr.rel (%p291) target = $region44
      $region43: #{_lambda_.10} parent=39 // pred_region
        _
      $region44: #{_lambda_.10} parent=39 // pred_fallthru
        _
    $region40: #{_lambda_.10} parent=5 // pred_fallthru
      _
    %p294 = scmp.le.s32.totalorder 2, %s11
    // Predicated region
    $region45: #{_lambda_.10} parent=5 // pred_check
      %p295 = pneg %p294
    $region46: #{_lambda_.10} parent=5 // pred_check_branch
      %297 = sbr.rel (%p295) target = $region48
    $region47: #{_lambda_.10} parent=5 // pred_region
      %s298 = ssub.s32 %s11, 2
      // Predicated region
      $region49: #{_lambda_.10} parent=47 // pred_check
        %p299 = pneg %p150
      $region50: #{_lambda_.10} parent=47 // pred_check_branch
        %301 = sbr.rel (%p299) target = $region52
      $region51: #{_lambda_.10} parent=47 // pred_region
        %p302 = scmp.lt.s32.totalorder %s17, 1
        %s303 = scalar_select %p302, %s17, 1
        %s304 = smul.addr %s303, 2
        %s305 = smul.addr %s304, 8
        %s306 = scalar_lea.vmem %s5, %s305
      $region52: #{_lambda_.10} parent=47 // pred_fallthru
        _
    $region48: #{_lambda_.10} parent=5 // pred_fallthru
      _
  $region6: #{_lambda_.10} parent=0 // loop_footer
    %s15 = sadd.s32 1, %s11
  $region7: #{_lambda_.10} parent=0 // loop_footer_branch
    %10 = sbr.rel target = $region3
  $region8: #{_lambda_.10} parent=0 // loop_exit
    _

// kernel: _lambda_.13
$region0: #{_lambda_.13}
  #allocation0 [shape = 'u32[]', space=smem, size = 0x4, offset = 0x4, fixed_abs, tag = 'smem constant byte address 0x4 - core index']
  #allocation1 [shape = 'u32[144,128]{1,0:T(1,128)}', space=vmem, size = 0x12000, scoped, tag = 'internal scratch']
  %s0 = inlined_call_operand.vmem [shape: bf16[2,16,384], index: 0, kind: input, shape index: {}, may-alias: {0,1,2}]
  %s1 = inlined_call_operand.vmem [shape: bf16[2,16,384], index: 1, kind: input, shape index: {}, may-alias: {0,1,2}]
  %s2 = inlined_call_operand.vmem [shape: bf16[2,16,384], index: 2, kind: input, shape index: {}, may-alias: {0,1,2}]
  %s3 = inlined_call_operand.vmem [shape: f32[2,1,16], index: 3, kind: input, shape index: {}]
  %s4 = inlined_call_operand.vmem [shape: bf16[2,16,128], index: 4, kind: output, shape index: {}]
  %s5 = sld [smem:[#allocation0]]
  $region172: #{_lambda_.13} parent=0
    _
  %s7 = ssub.s32 1, %s5
  %s8 = scalar_select 0, %s7, %s5
  $region1: #{_lambda_.13} parent=0
    #allocation2 [shape = 'u8[8192]{0}', space=vmem, size = 0x2000, scoped, tag = 'input window, operand 0']
    #allocation3 [shape = 'u8[8192]{0}', space=vmem, size = 0x2000, scoped, tag = 'input window, operand 1']
    #allocation4 [shape = 'u8[8192]{0}', space=vmem, size = 0x2000, scoped, tag = 'input window, operand 2']
    loop: start=0, step=1, limit=4
    $region2: #{_lambda_.13} parent=1 // loop_pre_header
      _
    $region3: #{_lambda_.13} parent=1 // loop_header
      %s10 = sphi 0, %s14
      %p11 = scmp.ge.s32.totalorder %s10, 4
      %s17 = sphi 0, %s29
      %s18 = sphi 0, %s25
      %s19 = sphi 0, %s17
      %s20 = sphi 0, %s18
      %s21 = sphi 0, %s19
      %s22 = sphi 0, %s20
      %s34 = sphi 0, %s36
      %s37 = sphi 0, %s34
      %s38 = sphi 0, %s37
      %s54 = sphi 0, %s38
      %s64 = sphi 0, %s66
      %s67 = sphi 0, %s64
      %s68 = sphi 0, %s67
      %s84 = sphi 0, %s68
      %s94 = sphi 0, %s96
      %s97 = sphi 0, %s94
      %s98 = sphi 0, %s97
      %s114 = sphi 0, %s98
      %s120 = sphi 0, %s122
      %s123 = sphi 0, %s120
      %s124 = sphi 0, %s123
      %s140 = sphi 0, %s124
      %s148 = sphi 0, %s150
      %s151 = sphi 0, %s148
      %s152 = sphi 0, %s151
      %s168 = sphi 0, %s152
    $region4: #{_lambda_.13} parent=1 // loop_header_branch
      %13 = sbr.rel (%p11) target = $region8
    $region5: #{_lambda_.13} parent=1 // loop_body
      %s15 = ssub.s32 %s10, 1
      %s16 = ssub.s32 %s10, 2
      %s23 = sadd.s32 1, %s18
      %p24 = scmp.ge.s32.totalorder %s23, 1
      %s25 = scalar_select %p24, 0, %s23
      %s26 = sadd.s32 1, %s17
      %s27 = scalar_select %p24, %s26, %s17
      %p28 = scmp.ge.s32.totalorder %s27, 2
      %s29 = scalar_select %p28, 0, %s27
      %s30 = ssub.s32 %s17, %s29
      %s31 = ssub.s32 %s18, %s25
      %s32 = sor.u32 %s30, %s31
      %p33 = scmp.eq.s32.totalorder %s32, 0
      %s35 = sadd.s32 %s34, 1
      %s36 = scalar_select %p33, %s34, %s35
      %p39 = pneg %p33
      %p40 = scmp.eq.s32.totalorder %s10, 1
      %p41 = por %p39, %p40
      %p42 = scmp.ne.s32.totalorder %s34, %s37
      %p43 = scmp.eq.s32.totalorder %s10, 0
      %p44 = por %p42, %p43
      %p45 = scmp.ne.s32.totalorder %s34, %s37
      %p46 = scmp.eq.s32.totalorder %s15, 1
      %p47 = por %p45, %p46
      %p48 = scmp.ne.s32.totalorder %s37, %s38
      %p49 = scmp.eq.s32.totalorder %s15, 0
      %p50 = por %p48, %p49
      %p51 = scmp.ne.s32.totalorder %s37, %s38
      %p52 = scmp.eq.s32.totalorder %s16, 1
      %p53 = por %p51, %p52
      %p55 = scmp.ne.s32.totalorder %s38, %s54
      %p56 = scmp.eq.s32.totalorder %s16, 0
      %p57 = por %p55, %p56
      %s58 = sadd.s32 %s18, 1
      %s59 = sadd.s32 %s25, 1
      %s60 = ssub.s32 %s17, %s29
      %s61 = ssub.s32 %s58, %s59
      %s62 = sor.u32 %s60, %s61
      %p63 = scmp.eq.s32.totalorder %s62, 0
      %s65 = sadd.s32 %s64, 1
      %s66 = scalar_select %p63, %s64, %s65
      %p69 = pneg %p63
      %p70 = scmp.eq.s32.totalorder %s10, 1
      %p71 = por %p69, %p70
      %p72 = scmp.ne.s32.totalorder %s64, %s67
      %p73 = scmp.eq.s32.totalorder %s10, 0
      %p74 = por %p72, %p73
      %p75 = scmp.ne.s32.totalorder %s64, %s67
      %p76 = scmp.eq.s32.totalorder %s15, 1
      %p77 = por %p75, %p76
      %p78 = scmp.ne.s32.totalorder %s67, %s68
      %p79 = scmp.eq.s32.totalorder %s15, 0
      %p80 = por %p78, %p79
      %p81 = scmp.ne.s32.totalorder %s67, %s68
      %p82 = scmp.eq.s32.totalorder %s16, 1
      %p83 = por %p81, %p82
      %p85 = scmp.ne.s32.totalorder %s68, %s84
      %p86 = scmp.eq.s32.totalorder %s16, 0
      %p87 = por %p85, %p86
      %s88 = sadd.s32 %s18, 2
      %s89 = sadd.s32 %s25, 2
      %s90 = ssub.s32 %s17, %s29
      %s91 = ssub.s32 %s88, %s89
      %s92 = sor.u32 %s90, %s91
      %p93 = scmp.eq.s32.totalorder %s92, 0
      %s95 = sadd.s32 %s94, 1
      %s96 = scalar_select %p93, %s94, %s95
      %p99 = pneg %p93
      %p100 = scmp.eq.s32.totalorder %s10, 1
      %p101 = por %p99, %p100
      %p102 = scmp.ne.s32.totalorder %s94, %s97
      %p103 = scmp.eq.s32.totalorder %s10, 0
      %p104 = por %p102, %p103
      %p105 = scmp.ne.s32.totalorder %s94, %s97
      %p106 = scmp.eq.s32.totalorder %s15, 1
      %p107 = por %p105, %p106
      %p108 = scmp.ne.s32.totalorder %s97, %s98
      %p109 = scmp.eq.s32.totalorder %s15, 0
      %p110 = por %p108, %p109
      %p111 = scmp.ne.s32.totalorder %s97, %s98
      %p112 = scmp.eq.s32.totalorder %s16, 1
      %p113 = por %p111, %p112
      %p115 = scmp.ne.s32.totalorder %s98, %s114
      %p116 = scmp.eq.s32.totalorder %s16, 0
      %p117 = por %p115, %p116
      %s118 = ssub.s32 %s17, %s29
      %p119 = scmp.eq.s32.totalorder %s118, 0
      %s121 = sadd.s32 %s120, 1
      %s122 = scalar_select %p119, %s120, %s121
      %p125 = pneg %p119
      %p126 = scmp.eq.s32.totalorder %s10, 1
      %p127 = por %p125, %p126
      %p128 = scmp.ne.s32.totalorder %s120, %s123
      %p129 = scmp.eq.s32.totalorder %s10, 0
      %p130 = por %p128, %p129
      %p131 = scmp.ne.s32.totalorder %s120, %s123
      %p132 = scmp.eq.s32.totalorder %s15, 1
      %p133 = por %p131, %p132
      %p134 = scmp.ne.s32.totalorder %s123, %s124
      %p135 = scmp.eq.s32.totalorder %s15, 0
      %p136 = por %p134, %p135
      %p137 = scmp.ne.s32.totalorder %s123, %s124
      %p138 = scmp.eq.s32.totalorder %s16, 1
      %p139 = por %p137, %p138
      %p141 = scmp.ne.s32.totalorder %s124, %s140
      %p142 = scmp.eq.s32.totalorder %s16, 0
      %p143 = por %p141, %p142
      %s144 = ssub.s32 %s17, %s29
      %s145 = ssub.s32 %s18, %s25
      %s146 = sor.u32 %s144, %s145
      %p147 = scmp.eq.s32.totalorder %s146, 0
      %s149 = sadd.s32 %s148, 1
      %s150 = scalar_select %p147, %s148, %s149
      %p153 = pneg %p147
      %p154 = scmp.eq.s32.totalorder %s10, 1
      %p155 = por %p153, %p154
      %p156 = scmp.ne.s32.totalorder %s148, %s151
      %p157 = scmp.eq.s32.totalorder %s10, 0
      %p158 = por %p156, %p157
      %p159 = scmp.ne.s32.totalorder %s148, %s151
      %p160 = scmp.eq.s32.totalorder %s15, 1
      %p161 = por %p159, %p160
      %p162 = scmp.ne.s32.totalorder %s151, %s152
      %p163 = scmp.eq.s32.totalorder %s15, 0
      %p164 = por %p162, %p163
      %p165 = scmp.ne.s32.totalorder %s151, %s152
      %p166 = scmp.eq.s32.totalorder %s16, 1
      %p167 = por %p165, %p166
      %p169 = scmp.ne.s32.totalorder %s152, %s168
      %p170 = scmp.eq.s32.totalorder %s16, 0
      %p171 = por %p169, %p170
      %p172 = scmp.le.s32.totalorder 1, %s10
      %p173 = scmp.lt.s32.totalorder %s10, 3
      %p174 = pnand %p172, %p173
      %p175 = pneg %p174
      // Predicated region
      $region9: #{_lambda_.13} parent=5 // pred_check
        _
      $region10: #{_lambda_.13} parent=5 // pred_check_branch
        %177 = sbr.rel (%p174) target = $region12
      $region11: #{_lambda_.13} parent=5 // pred_region
        %s178 = ssub.s32 %s10, 1
      $region12: #{_lambda_.13} parent=5 // pred_fallthru
        _
      %p179 = scmp.lt.s32.totalorder %s10, 2
      // Predicated region
      $region13: #{_lambda_.13} parent=5 // pred_check
        %p180 = pneg %p179
      $region14: #{_lambda_.13} parent=5 // pred_check_branch
        %182 = sbr.rel (%p180) target = $region16
      $region15: #{_lambda_.13} parent=5 // pred_region
        // Predicated region
        $region17: #{_lambda_.13} parent=15 // pred_check
          %p183 = pneg %p44
        $region18: #{_lambda_.13} parent=15 // pred_check_branch
          %185 = sbr.rel (%p183) target = $region20
        $region19: #{_lambda_.13} parent=15 // pred_region
          %s186 = sand.u32 %s34, 1
          %s187 = sand.u32 %s34, 1
          %s188 = smul.addr %s187, 8
          %s189 = scalar_lea.vmem [#allocation2], %s188
          %s190 = smul.addr %s17, 6
          %s191 = sadd.s32 %s18, %s190
          %s192 = smul.addr %s191, 4
          %s193 = scalar_lea.vmem %s0, %s192
          // Predicated region
          $region21: #{_lambda_.13} parent=19 // pred_check
            _
          $region22: #{_lambda_.13} parent=19 // pred_check_branch
            %195 = sbr.rel (0) target = $region24
          $region23: #{_lambda_.13} parent=19 // pred_region
            // Predicated region
            $region25: #{_lambda_.13} parent=23 // pred_check
              _
            $region26: #{_lambda_.13} parent=23 // pred_check_branch
              %197 = sbr.rel target = $region28
            $region27: #{_lambda_.13} parent=23 // pred_region
              // Predicated region
              $region40: #{_lambda_.13} parent=27 // pred_check
                _
              $region41: #{_lambda_.13} parent=27 // pred_check_branch
                %215 = sbr.rel (0) target = $region43
              $region42: #{_lambda_.13} parent=27 // pred_region
                loop: start=0, step=1, limit=1
                $region44: #{_lambda_.13} parent=42 // loop_pre_header
                  _
                $region45: #{_lambda_.13} parent=42 // loop_header
                  %s217 = sphi 0, %s221
                  %p218 = scmp.ge.s32.totalorder %s217, 1
                  %s222 = sphi %s193, %s193
                  %s223 = sphi %s189, %s189
                $region46: #{_lambda_.13} parent=42 // loop_header_branch
                  %220 = sbr.rel (%p218) target = $region50
                $region47: #{_lambda_.13} parent=42 // loop_body
                  _
                $region48: #{_lambda_.13} parent=42 // loop_footer
                  %s221 = sadd.s32 1, %s217
                $region49: #{_lambda_.13} parent=42 // loop_footer_branch
                  %216 = sbr.rel target = $region45
                $region50: #{_lambda_.13} parent=42 // loop_exit
                  _
                %s225 = ssub.s32 16, 1
                loop: start=0, step=1, limit=1
                $region51: #{_lambda_.13} parent=42 // loop_pre_header
                  _
                $region52: #{_lambda_.13} parent=42 // loop_header
                  %s227 = sphi 0, %s231
                  %p228 = scmp.ge.s32.totalorder %s227, 1
                  %s232 = sphi %s193, %s193
                  %s233 = sphi %s189, %s189
                $region53: #{_lambda_.13} parent=42 // loop_header_branch
                  %230 = sbr.rel (%p228) target = $region57
                $region54: #{_lambda_.13} parent=42 // loop_body
                  %v234 = vld [vmem:[%s232] sm:%s225]
                  %235 = vst [vmem:[%s233] sm:%s225] %v234
                  %v236 = vld [vmem:[%s232 + $0xc] sm:%s225]
                  %237 = vst [vmem:[%s233 + $0x4] sm:%s225] %v236
                $region55: #{_lambda_.13} parent=42 // loop_footer
                  %s231 = sadd.s32 1, %s227
                $region56: #{_lambda_.13} parent=42 // loop_footer_branch
                  %226 = sbr.rel target = $region52
                $region57: #{_lambda_.13} parent=42 // loop_exit
                  _
              $region43: #{_lambda_.13} parent=27 // pred_fallthru
                _
            $region28: #{_lambda_.13} parent=23 // pred_fallthru
              _
            // Predicated region
            $region29: #{_lambda_.13} parent=23 // pred_check
              _
            $region30: #{_lambda_.13} parent=23 // pred_check_branch
              %199 = sbr.rel (0) target = $region32
            $region31: #{_lambda_.13} parent=23 // pred_region
              %s201 = ssub.s32 16, 1
              loop: start=0, step=1, limit=1
              $region33: #{_lambda_.13} parent=31 // loop_pre_header
                _
              $region34: #{_lambda_.13} parent=31 // loop_header
                %s203 = sphi 0, %s207
                %p204 = scmp.ge.s32.totalorder %s203, 1
                %s208 = sphi %s193, %s193
                %s209 = sphi %s189, %s189
              $region35: #{_lambda_.13} parent=31 // loop_header_branch
                %206 = sbr.rel (%p204) target = $region39
              $region36: #{_lambda_.13} parent=31 // loop_body
                %v210 = vld [vmem:[%s208] sm:%s201]
                %211 = vst [vmem:[%s209] sm:%s201] %v210
                %v212 = vld [vmem:[%s208 + $0xc] sm:%s201]
                %213 = vst [vmem:[%s209 + $0x4] sm:%s201] %v212
              $region37: #{_lambda_.13} parent=31 // loop_footer
                %s207 = sadd.s32 1, %s203
              $region38: #{_lambda_.13} parent=31 // loop_footer_branch
                %202 = sbr.rel target = $region34
              $region39: #{_lambda_.13} parent=31 // loop_exit
                _
            $region32: #{_lambda_.13} parent=23 // pred_fallthru
              _
          $region24: #{_lambda_.13} parent=19 // pred_fallthru
            _
          %238 = vnop
        $region20: #{_lambda_.13} parent=15 // pred_fallthru
          _
        // Predicated region
        $region58: #{_lambda_.13} parent=15 // pred_check
          %p239 = pneg %p74
        $region59: #{_lambda_.13} parent=15 // pred_check_branch
          %241 = sbr.rel (%p239) target = $region61
        $region60: #{_lambda_.13} parent=15 // pred_region
          %s242 = sand.u32 %s64, 1
          %s243 = sand.u32 %s64, 1
          %s244 = smul.addr %s243, 8
          %s245 = scalar_lea.vmem [#allocation3], %s244
          %s246 = sadd.s32 %s18, 1
          %s247 = smul.addr %s17, 6
          %s248 = sadd.s32 %s246, %s247
          %s249 = smul.addr %s248, 4
          %s250 = scalar_lea.vmem %s1, %s249
          // Predicated region
          $region62: #{_lambda_.13} parent=60 // pred_check
            _
          $region63: #{_lambda_.13} parent=60 // pred_check_branch
            %252 = sbr.rel (0) target = $region65
          $region64: #{_lambda_.13} parent=60 // pred_region
            // Predicated region
            $region66: #{_lambda_.13} parent=64 // pred_check
              _
            $region67: #{_lambda_.13} parent=64 // pred_check_branch
              %254 = sbr.rel target = $region69
            $region68: #{_lambda_.13} parent=64 // pred_region
              // Predicated region
              $region81: #{_lambda_.13} parent=68 // pred_check
                _
              $region82: #{_lambda_.13} parent=68 // pred_check_branch
                %272 = sbr.rel (0) target = $region84
              $region83: #{_lambda_.13} parent=68 // pred_region
                loop: start=0, step=1, limit=1
                $region85: #{_lambda_.13} parent=83 // loop_pre_header
                  _
                $region86: #{_lambda_.13} parent=83 // loop_header
                  %s274 = sphi 0, %s278
                  %p275 = scmp.ge.s32.totalorder %s274, 1
                  %s279 = sphi %s250, %s250
                  %s280 = sphi %s245, %s245
                $region87: #{_lambda_.13} parent=83 // loop_header_branch
                  %277 = sbr.rel (%p275) target = $region91
                $region88: #{_lambda_.13} parent=83 // loop_body
                  _
                $region89: #{_lambda_.13} parent=83 // loop_footer
                  %s278 = sadd.s32 1, %s274
                $region90: #{_lambda_.13} parent=83 // loop_footer_branch
                  %273 = sbr.rel target = $region86
                $region91: #{_lambda_.13} parent=83 // loop_exit
                  _
                %s282 = ssub.s32 16, 1
                loop: start=0, step=1, limit=1
                $region92: #{_lambda_.13} parent=83 // loop_pre_header
                  _
                $region93: #{_lambda_.13} parent=83 // loop_header
                  %s284 = sphi 0, %s288
                  %p285 = scmp.ge.s32.totalorder %s284, 1
                  %s289 = sphi %s250, %s250
                  %s290 = sphi %s245, %s245
                $region94: #{_lambda_.13} parent=83 // loop_header_branch
                  %287 = sbr.rel (%p285) target = $region98
                $region95: #{_lambda_.13} parent=83 // loop_body
                  %v291 = vld [vmem:[%s289] sm:%s282]
                  %292 = vst [vmem:[%s290] sm:%s282] %v291
                  %v293 = vld [vmem:[%s289 + $0xc] sm:%s282]
                  %294 = vst [vmem:[%s290 + $0x4] sm:%s282] %v293
                $region96: #{_lambda_.13} parent=83 // loop_footer
                  %s288 = sadd.s32 1, %s284
                $region97: #{_lambda_.13} parent=83 // loop_footer_branch
                  %283 = sbr.rel target = $region93
                $region98: #{_lambda_.13} parent=83 // loop_exit
                  _
              $region84: #{_lambda_.13} parent=68 // pred_fallthru
                _
            $region69: #{_lambda_.13} parent=64 // pred_fallthru
              _
            // Predicated region
            $region70: #{_lambda_.13} parent=64 // pred_check
              _
            $region71: #{_lambda_.13} parent=64 // pred_check_branch
              %256 = sbr.rel (0) target = $region73
            $region72: #{_lambda_.13} parent=64 // pred_region
              %s258 = ssub.s32 16, 1
              loop: start=0, step=1, limit=1
              $region74: #{_lambda_.13} parent=72 // loop_pre_header
                _
              $region75: #{_lambda_.13} parent=72 // loop_header
                %s260 = sphi 0, %s264
                %p261 = scmp.ge.s32.totalorder %s260, 1
                %s265 = sphi %s250, %s250
                %s266 = sphi %s245, %s245
              $region76: #{_lambda_.13} parent=72 // loop_header_branch
                %263 = sbr.rel (%p261) target = $region80
              $region77: #{_lambda_.13} parent=72 // loop_body
                %v267 = vld [vmem:[%s265] sm:%s258]
                %268 = vst [vmem:[%s266] sm:%s258] %v267
                %v269 = vld [vmem:[%s265 + $0xc] sm:%s258]
                %270 = vst [vmem:[%s266 + $0x4] sm:%s258] %v269
              $region78: #{_lambda_.13} parent=72 // loop_footer
                %s264 = sadd.s32 1, %s260
              $region79: #{_lambda_.13} parent=72 // loop_footer_branch
                %259 = sbr.rel target = $region75
              $region80: #{_lambda_.13} parent=72 // loop_exit
                _
            $region73: #{_lambda_.13} parent=64 // pred_fallthru
              _
          $region65: #{_lambda_.13} parent=60 // pred_fallthru
            _
          %295 = vnop
        $region61: #{_lambda_.13} parent=15 // pred_fallthru
          _
        // Predicated region
        $region99: #{_lambda_.13} parent=15 // pred_check
          %p296 = pneg %p104
        $region100: #{_lambda_.13} parent=15 // pred_check_branch
          %298 = sbr.rel (%p296) target = $region102
        $region101: #{_lambda_.13} parent=15 // pred_region
          %s299 = sand.u32 %s94, 1
          %s300 = sand.u32 %s94, 1
          %s301 = smul.addr %s300, 8
          %s302 = scalar_lea.vmem [#allocation4], %s301
          %s303 = sadd.s32 %s18, 2
          %s304 = smul.addr %s17, 6
          %s305 = sadd.s32 %s303, %s304
          %s306 = smul.addr %s305, 4
          %s307 = scalar_lea.vmem %s2, %s306
          // Predicated region
          $region103: #{_lambda_.13} parent=101 // pred_check
            _
          $region104: #{_lambda_.13} parent=101 // pred_check_branch
            %309 = sbr.rel (0) target = $region106
          $region105: #{_lambda_.13} parent=101 // pred_region
            // Predicated region
            $region107: #{_lambda_.13} parent=105 // pred_check
              _
            $region108: #{_lambda_.13} parent=105 // pred_check_branch
              %311 = sbr.rel target = $region110
            $region109: #{_lambda_.13} parent=105 // pred_region
              // Predicated region
              $region122: #{_lambda_.13} parent=109 // pred_check
                _
              $region123: #{_lambda_.13} parent=109 // pred_check_branch
                %329 = sbr.rel (0) target = $region125
              $region124: #{_lambda_.13} parent=109 // pred_region
                loop: start=0, step=1, limit=1
                $region126: #{_lambda_.13} parent=124 // loop_pre_header
                  _
                $region127: #{_lambda_.13} parent=124 // loop_header
                  %s331 = sphi 0, %s335
                  %p332 = scmp.ge.s32.totalorder %s331, 1
                  %s336 = sphi %s307, %s307
                  %s337 = sphi %s302, %s302
                $region128: #{_lambda_.13} parent=124 // loop_header_branch
                  %334 = sbr.rel (%p332) target = $region132
                $region129: #{_lambda_.13} parent=124 // loop_body
                  _
                $region130: #{_lambda_.13} parent=124 // loop_footer
                  %s335 = sadd.s32 1, %s331
                $region131: #{_lambda_.13} parent=124 // loop_footer_branch
                  %330 = sbr.rel target = $region127
                $region132: #{_lambda_.13} parent=124 // loop_exit
                  _
                %s339 = ssub.s32 16, 1
                loop: start=0, step=1, limit=1
                $region133: #{_lambda_.13} parent=124 // loop_pre_header
                  _
                $region134: #{_lambda_.13} parent=124 // loop_header
                  %s341 = sphi 0, %s345
                  %p342 = scmp.ge.s32.totalorder %s341, 1
                  %s346 = sphi %s307, %s307
                  %s347 = sphi %s302, %s302
                $region135: #{_lambda_.13} parent=124 // loop_header_branch
                  %344 = sbr.rel (%p342) target = $region139
                $region136: #{_lambda_.13} parent=124 // loop_body
                  %v348 = vld [vmem:[%s346] sm:%s339]
                  %349 = vst [vmem:[%s347] sm:%s339] %v348
                  %v350 = vld [vmem:[%s346 + $0xc] sm:%s339]
                  %351 = vst [vmem:[%s347 + $0x4] sm:%s339] %v350
                $region137: #{_lambda_.13} parent=124 // loop_footer
                  %s345 = sadd.s32 1, %s341
                $region138: #{_lambda_.13} parent=124 // loop_footer_branch
                  %340 = sbr.rel target = $region134
                $region139: #{_lambda_.13} parent=124 // loop_exit
                  _
              $region125: #{_lambda_.13} parent=109 // pred_fallthru
                _
            $region110: #{_lambda_.13} parent=105 // pred_fallthru
              _
            // Predicated region
            $region111: #{_lambda_.13} parent=105 // pred_check
              _
            $region112: #{_lambda_.13} parent=105 // pred_check_branch
              %313 = sbr.rel (0) target = $region114
            $region113: #{_lambda_.13} parent=105 // pred_region
              %s315 = ssub.s32 16, 1
              loop: start=0, step=1, limit=1
              $region115: #{_lambda_.13} parent=113 // loop_pre_header
                _
              $region116: #{_lambda_.13} parent=113 // loop_header
                %s317 = sphi 0, %s321
                %p318 = scmp.ge.s32.totalorder %s317, 1
                %s322 = sphi %s307, %s307
                %s323 = sphi %s302, %s302
              $region117: #{_lambda_.13} parent=113 // loop_header_branch
                %320 = sbr.rel (%p318) target = $region121
              $region118: #{_lambda_.13} parent=113 // loop_body
                %v324 = vld [vmem:[%s322] sm:%s315]
                %325 = vst [vmem:[%s323] sm:%s315] %v324
                %v326 = vld [vmem:[%s322 + $0xc] sm:%s315]
                %327 = vst [vmem:[%s323 + $0x4] sm:%s315] %v326
              $region119: #{_lambda_.13} parent=113 // loop_footer
                %s321 = sadd.s32 1, %s317
              $region120: #{_lambda_.13} parent=113 // loop_footer_branch
                %316 = sbr.rel target = $region116
              $region121: #{_lambda_.13} parent=113 // loop_exit
                _
            $region114: #{_lambda_.13} parent=105 // pred_fallthru
              _
          $region106: #{_lambda_.13} parent=101 // pred_fallthru
            _
          %352 = vnop
        $region102: #{_lambda_.13} parent=15 // pred_fallthru
          _
        // Predicated region
        $region140: #{_lambda_.13} parent=15 // pred_check
          %p353 = pneg %p130
        $region141: #{_lambda_.13} parent=15 // pred_check_branch
          %355 = sbr.rel (%p353) target = $region143
        $region142: #{_lambda_.13} parent=15 // pred_region
          %p356 = scmp.lt.s32.totalorder %s17, 1
          %s357 = scalar_select %p356, %s17, 1
          %s358 = scalar_lea.vmem %s3, %s357
        $region143: #{_lambda_.13} parent=15 // pred_fallthru
          _
      $region16: #{_lambda_.13} parent=5 // pred_fallthru
        _
      %p359 = scmp.le.s32.totalorder 1, %s10
      %p360 = scmp.lt.s32.totalorder %s10, 3
      %p361 = pnand %p359, %p360
      %p362 = pneg %p361
      // Predicated region
      $region144: #{_lambda_.13} parent=5 // pred_check
        _
      $region145: #{_lambda_.13} parent=5 // pred_check_branch
        %364 = sbr.rel (%p361) target = $region147
      $region146: #{_lambda_.13} parent=5 // pred_region
        %s365 = ssub.s32 %s10, 1
        %s366 = sand.u32 %s37, 1
        %s367 = sand.u32 %s37, 1
        %s368 = smul.addr %s367, 8
        %s369 = scalar_lea.vmem [#allocation2], %s368
        // Predicated region
        $region148: #{_lambda_.13} parent=146 // pred_check
          %p370 = pneg %p50
        $region149: #{_lambda_.13} parent=146 // pred_check_branch
          %372 = sbr.rel (%p370) target = $region151
        $region150: #{_lambda_.13} parent=146 // pred_region
          _
        $region151: #{_lambda_.13} parent=146 // pred_fallthru
          _
        %s373 = sand.u32 %s67, 1
        %s374 = sand.u32 %s67, 1
        %s375 = smul.addr %s374, 8
        %s376 = scalar_lea.vmem [#allocation3], %s375
        // Predicated region
        $region152: #{_lambda_.13} parent=146 // pred_check
          %p377 = pneg %p80
        $region153: #{_lambda_.13} parent=146 // pred_check_branch
          %379 = sbr.rel (%p377) target = $region155
        $region154: #{_lambda_.13} parent=146 // pred_region
          _
        $region155: #{_lambda_.13} parent=146 // pred_fallthru
          _
        %s380 = sand.u32 %s97, 1
        %s381 = sand.u32 %s97, 1
        %s382 = smul.addr %s381, 8
        %s383 = scalar_lea.vmem [#allocation4], %s382
        // Predicated region
        $region156: #{_lambda_.13} parent=146 // pred_check
          %p384 = pneg %p110
        $region157: #{_lambda_.13} parent=146 // pred_check_branch
          %386 = sbr.rel (%p384) target = $region159
        $region158: #{_lambda_.13} parent=146 // pred_region
          _
        $region159: #{_lambda_.13} parent=146 // pred_fallthru
          _
        %s387 = sand.u32 %s37, 1
        %s388 = sand.u32 %s37, 1
        %s389 = smul.addr %s388, 8
        %s390 = scalar_lea.vmem [#allocation2], %s389
        %p391 = pneg %p50
        %p392 = pneg %p47
        %s393 = sand.u32 %s67, 1
        %s394 = sand.u32 %s67, 1
        %s395 = smul.addr %s394, 8
        %s396 = scalar_lea.vmem [#allocation3], %s395
        %p397 = pneg %p80
        %p398 = pneg %p77
        %s399 = sand.u32 %s97, 1
        %s400 = sand.u32 %s97, 1
        %s401 = smul.addr %s400, 8
        %s402 = scalar_lea.vmem [#allocation4], %s401
        %p403 = pneg %p110
        %p404 = pneg %p107
        %p405 = scmp.lt.s32.totalorder %s19, 1
        %s406 = scalar_select %p405, %s19, 1
        %s407 = scalar_lea.vmem %s3, %s406
        %p408 = pneg %p136
        %p409 = pneg %p133
        %p410 = pneg %p164
        %p411 = pneg %p161
        %p412 = scmp.lt.s32.totalorder %s19, 1
        %s413 = scalar_select %p412, %s19, 1
        %p414 = scmp.lt.s32.totalorder %s20, 0
        %s415 = scalar_select %p414, %s20, 0
        %s416 = smul.addr %s413, 2
        %s417 = sadd.s32 %s415, %s416
        %s418 = smul.addr %s417, 4
        %s419 = scalar_lea.vmem %s4, %s418
        %s420 = sadd.s32 %s20, 1
        %s421 = sadd.s32 %s20, 2
        %p422 = scmp.lt.s32.totalorder %s19, 1
        %s423 = scalar_select %p422, %s19, 1
        %s424 = scalar_lea.vmem %s3, %s423
        %p425 = scmp.lt.s32.totalorder %s19, 1
        %s426 = scalar_select %p425, %s19, 1
        %p427 = scmp.lt.s32.totalorder %s20, 0
        %s428 = scalar_select %p427, %s20, 0
        %s429 = smul.addr %s426, 2
        %s430 = sadd.s32 %s428, %s429
        %s431 = smul.addr %s430, 4
        %s432 = scalar_lea.vmem %s4, %s431
        %v434 = vld [vmem:[%s424] sm:$0x1]
        %v435 = vld [vmem:[%s369] sm:$0xf]
        %v436 = vld [vmem:[%s369 + $0x4] sm:$0xf]
        %v437 = vld [vmem:[%s376] sm:$0xf]
        %v438 = vld [vmem:[%s376 + $0x4] sm:$0xf]
        %v439 = vld [vmem:[%s383] sm:$0xf]
        %v440 = vld [vmem:[%s383 + $0x4] sm:$0xf]
        %v443 = vunpack.c.l.b16 %v435
        %v444 = vunpack.c.l.b16 %v436
        %v445 = vpack.c.b16 %v444, %v443
        %v448 = vunpack.c.l.b16 %v437
        %v449 = vunpack.c.l.b16 %v438
        %v450 = vpack.c.b16 %v449, %v448
        %vm451 = vcmask 523264
        %v453 = vsel %vm451, %v445, 0
        %v456 = vsel %vm451, %v450, 0
        %458 = vmatprep.subr.bf16.mxu0 0
        %459 = vmatpush1.bf16.xpose.msra.mxu0 0
        %460 = vmatprep.subr.bf16.mxu0 0
        %461 = vmatpush1.bf16.xpose.msra.mxu0 0
        %462 = vmatprep.subr.bf16.mxu0 0
        %463 = vmatpush1.bf16.xpose.msra.mxu0 0
        %464 = vmatprep.subr.bf16.mxu0 0
        %465 = vmatpush1.bf16.xpose.msra.mxu0 0
        %466 = vmatprep.subr.bf16.mxu0 0
        %467 = vmatpush1.bf16.xpose.msra.mxu0 0
        %468 = vmatprep.subr.bf16.mxu0 0
        %469 = vmatpush1.bf16.xpose.msra.mxu0 0
        %470 = vmatprep.subr.bf16.mxu0 0
        %471 = vmatpush1.bf16.xpose.msra.mxu0 0
        %472 = vmatprep.subr.bf16.mxu0 0
        %473 = vmatpush1.bf16.xpose.msra.mxu0 %v456
        %474 = vmatprep.subr.bf16.mxu0 0
        %475 = vmatpush2.bf16.xpose.msra.mxu0 0
        %476 = vmatprep.subr.bf16.mxu0 0
        %477 = vmatpush2.bf16.xpose.msra.mxu0 0
        %478 = vmatprep.subr.bf16.mxu0 0
        %479 = vmatpush2.bf16.xpose.msra.mxu0 0
        %480 = vmatprep.subr.bf16.mxu0 0
        %481 = vmatpush2.bf16.xpose.msra.mxu0 0
        %482 = vmatprep.subr.bf16.mxu0 0
        %483 = vmatpush2.bf16.xpose.msra.mxu0 0
        %484 = vmatprep.subr.bf16.mxu0 0
        %485 = vmatpush2.bf16.xpose.msra.mxu0 0
        %486 = vmatprep.subr.bf16.mxu0 0
        %487 = vmatpush2.bf16.xpose.msra.mxu0 0
        %488 = vmatprep.subr.bf16.mxu0 0
        %489 = vmatpush2.bf16.xpose.msra.mxu0 0
        %490 = vmatprep.mubr.bf16.mxu0 0
        %491 = vmatmul.mubr.bf16.gmra.mxu0 %v453
        %v492 = vpop.f32.mrf.mxu0
        %v493 = vadd.f32 0.0, %v492
        %v494 = vpop.f32.mrf.mxu0
        %v495 = vpop.f32.mrf.mxu0
        %v496 = vadd.f32 0.0, %v495
        %v497 = vpop.f32.mrf.mxu0
        %498 = vdwg.mxu0
        %v499 = vmul.f32 %v493, 0.125
        %v500 = vmul.f32 %v496, 0.125
        %v502 = vlaneseq
        %v503 = vshrl.u32 %v502, 7
        %v504 = vsub.s32 0, %v503
        %v505 = vrot.slane %v434, %v504
        %v507 = vadd.f32 %v499, %v505
        %v508 = vadd.f32 %v500, %v505
        %vm509 = vcmask 130048
        %v510 = vsel %vm509, %v507, -inf
        %511 = vmax.xlane.f32.xlu0 %v510
        %v512 = vpop.xlane.xlu0 %511
        %v513 = vsel %vm509, %v508, -inf
        %514 = vmax.xlane.f32.xlu0 %v513
        %v515 = vpop.xlane.xlu0 %514
        %v516 = vsub.f32 %v507, %v512
        %v517 = vsub.f32 %v508, %v515
        %v518 = vmul.f32 %v516, 1.442695
        %v519 = vpow.pop %v518
        %v520 = vmul.f32 %v517, 1.442695
        %v521 = vpow.pop %v520
        %v522 = vsel %vm509, %v519, 0.0
        %523 = vadd.xlane.f32.xlu0 %v522
        %v524 = vpop.xlane.xlu0 %523
        %v525 = vsel %vm509, %v521, 0.0
        %526 = vadd.xlane.f32.xlu0 %v525
        %v527 = vpop.xlane.xlu0 %526
        %v528 = vrcp.pop %v524
        %v529 = vrcp.pop %v527
        %v530 = vmul.f32 %v519, %v528
        %v531 = vmul.f32 %v521, %v529
        %v532 = vpack.c.bf16 %v531, %v530
        %v535 = vunpack.c.l.b16 %v439
        %v536 = vunpack.c.l.b16 %v440
        %v537 = vpack.c.b16 %v536, %v535
        %v540 = vsel %vm509, %v532, 0
        %542 = vmatprep.subr.bf16.mxu0 0
        %543 = vmatpush1.bf16.msra.mxu0 0
        %544 = vmatprep.subr.bf16.mxu0 0
        %545 = vmatpush1.bf16.msra.mxu0 0
        %546 = vmatprep.subr.bf16.mxu0 0
        %547 = vmatpush1.bf16.msra.mxu0 0
        %548 = vmatprep.subr.bf16.mxu0 0
        %549 = vmatpush1.bf16.msra.mxu0 0
        %550 = vmatprep.subr.bf16.mxu0 0
        %551 = vmatpush1.bf16.msra.mxu0 0
        %552 = vmatprep.subr.bf16.mxu0 0
        %553 = vmatpush1.bf16.msra.mxu0 0
        %554 = vmatprep.subr.bf16.mxu0 0
        %555 = vmatpush1.bf16.msra.mxu0 0
        %556 = vmatprep.subr.bf16.mxu0 0
        %557 = vmatpush1.bf16.msra.mxu0 %v537
        %558 = vmatprep.subr.bf16.mxu0 0
        %559 = vmatpush2.bf16.msra.mxu0 0
        %560 = vmatprep.subr.bf16.mxu0 0
        %561 = vmatpush2.bf16.msra.mxu0 0
        %562 = vmatprep.subr.bf16.mxu0 0
        %563 = vmatpush2.bf16.msra.mxu0 0
        %564 = vmatprep.subr.bf16.mxu0 0
        %565 = vmatpush2.bf16.msra.mxu0 0
        %566 = vmatprep.subr.bf16.mxu0 0
        %567 = vmatpush2.bf16.msra.mxu0 0
        %568 = vmatprep.subr.bf16.mxu0 0
        %569 = vmatpush2.bf16.msra.mxu0 0
        %570 = vmatprep.subr.bf16.mxu0 0
        %571 = vmatpush2.bf16.msra.mxu0 0
        %572 = vmatprep.subr.bf16.mxu0 0
        %573 = vmatpush2.bf16.msra.mxu0 0
        %574 = vmatprep.mubr.bf16.mxu0 0
        %575 = vmatmul.mubr.bf16.gmra.mxu0 %v540
        %v576 = vpop.f32.mrf.mxu0
        %v577 = vadd.f32 0.0, %v576
        %v578 = vpop.f32.mrf.mxu0
        %v579 = vpop.f32.mrf.mxu0
        %v580 = vadd.f32 0.0, %v579
        %v581 = vpop.f32.mrf.mxu0
        %582 = vdwg.mxu0
        %583 = vrot.lane.b32.xlu0 %v445, 64
        %v584 = vpop.permute.xlu0 %583
        %585 = vrot.lane.b32.xlu0 %v450, 64
        %v586 = vpop.permute.xlu0 %585
        %v588 = vsel %vm451, %v584, 0
        %v591 = vsel %vm451, %v586, 0
        %593 = vmatprep.subr.bf16.mxu0 0
        %594 = vmatpush1.bf16.xpose.msra.mxu0 0
        %595 = vmatprep.subr.bf16.mxu0 0
        %596 = vmatpush1.bf16.xpose.msra.mxu0 0
        %597 = vmatprep.subr.bf16.mxu0 0
        %598 = vmatpush1.bf16.xpose.msra.mxu0 0
        %599 = vmatprep.subr.bf16.mxu0 0
        %600 = vmatpush1.bf16.xpose.msra.mxu0 0
        %601 = vmatprep.subr.bf16.mxu0 0
        %602 = vmatpush1.bf16.xpose.msra.mxu0 0
        %603 = vmatprep.subr.bf16.mxu0 0
        %604 = vmatpush1.bf16.xpose.msra.mxu0 0
        %605 = vmatprep.subr.bf16.mxu0 0
        %606 = vmatpush1.bf16.xpose.msra.mxu0 0
        %607 = vmatprep.subr.bf16.mxu0 0
        %608 = vmatpush1.bf16.xpose.msra.mxu0 %v591
        %609 = vmatprep.subr.bf16.mxu0 0
        %610 = vmatpush2.bf16.xpose.msra.mxu0 0
        %611 = vmatprep.subr.bf16.mxu0 0
        %612 = vmatpush2.bf16.xpose.msra.mxu0 0
        %613 = vmatprep.subr.bf16.mxu0 0
        %614 = vmatpush2.bf16.xpose.msra.mxu0 0
        %615 = vmatprep.subr.bf16.mxu0 0
        %616 = vmatpush2.bf16.xpose.msra.mxu0 0
        %617 = vmatprep.subr.bf16.mxu0 0
        %618 = vmatpush2.bf16.xpose.msra.mxu0 0
        %619 = vmatprep.subr.bf16.mxu0 0
        %620 = vmatpush2.bf16.xpose.msra.mxu0 0
        %621 = vmatprep.subr.bf16.mxu0 0
        %622 = vmatpush2.bf16.xpose.msra.mxu0 0
        %623 = vmatprep.subr.bf16.mxu0 0
        %624 = vmatpush2.bf16.xpose.msra.mxu0 0
        %625 = vmatprep.mubr.bf16.mxu0 0
        %626 = vmatmul.mubr.bf16.gmra.mxu0 %v588
        %v627 = vpop.f32.mrf.mxu0
        %v628 = vadd.f32 0.0, %v627
        %v629 = vpop.f32.mrf.mxu0
        %v630 = vpop.f32.mrf.mxu0
        %v631 = vadd.f32 0.0, %v630
        %v632 = vpop.f32.mrf.mxu0
        %633 = vdwg.mxu0
        %v634 = vmul.f32 %v628, 0.125
        %v635 = vmul.f32 %v631, 0.125
        %v636 = vadd.f32 %v634, %v505
        %v637 = vadd.f32 %v635, %v505
        %v638 = vsel %vm509, %v636, -inf
        %639 = vmax.xlane.f32.xlu0 %v638
        %v640 = vpop.xlane.xlu0 %639
        %v641 = vsel %vm509, %v637, -inf
        %642 = vmax.xlane.f32.xlu0 %v641
        %v643 = vpop.xlane.xlu0 %642
        %v644 = vsub.f32 %v636, %v640
        %v645 = vsub.f32 %v637, %v643
        %v646 = vmul.f32 %v644, 1.442695
        %v647 = vpow.pop %v646
        %v648 = vmul.f32 %v645, 1.442695
        %v649 = vpow.pop %v648
        %v650 = vsel %vm509, %v647, 0.0
        %651 = vadd.xlane.f32.xlu0 %v650
        %v652 = vpop.xlane.xlu0 %651
        %v653 = vsel %vm509, %v649, 0.0
        %654 = vadd.xlane.f32.xlu0 %v653
        %v655 = vpop.xlane.xlu0 %654
        %v656 = vrcp.pop %v652
        %v657 = vrcp.pop %v655
        %v658 = vmul.f32 %v647, %v656
        %v659 = vmul.f32 %v649, %v657
        %v660 = vpack.c.bf16 %v659, %v658
        %661 = vrot.lane.b32.xlu0 %v537, 64
        %v662 = vpop.permute.xlu0 %661
        %v665 = vsel %vm509, %v660, 0
        %667 = vmatprep.subr.bf16.mxu0 0
        %668 = vmatpush1.bf16.msra.mxu0 0
        %669 = vmatprep.subr.bf16.mxu0 0
        %670 = vmatpush1.bf16.msra.mxu0 0
        %671 = vmatprep.subr.bf16.mxu0 0
        %672 = vmatpush1.bf16.msra.mxu0 0
        %673 = vmatprep.subr.bf16.mxu0 0
        %674 = vmatpush1.bf16.msra.mxu0 0
        %675 = vmatprep.subr.bf16.mxu0 0
        %676 = vmatpush1.bf16.msra.mxu0 0
        %677 = vmatprep.subr.bf16.mxu0 0
        %678 = vmatpush1.bf16.msra.mxu0 0
        %679 = vmatprep.subr.bf16.mxu0 0
        %680 = vmatpush1.bf16.msra.mxu0 0
        %681 = vmatprep.subr.bf16.mxu0 0
        %682 = vmatpush1.bf16.msra.mxu0 %v662
        %683 = vmatprep.subr.bf16.mxu0 0
        %684 = vmatpush2.bf16.msra.mxu0 0
        %685 = vmatprep.subr.bf16.mxu0 0
        %686 = vmatpush2.bf16.msra.mxu0 0
        %687 = vmatprep.subr.bf16.mxu0 0
        %688 = vmatpush2.bf16.msra.mxu0 0
        %689 = vmatprep.subr.bf16.mxu0 0
        %690 = vmatpush2.bf16.msra.mxu0 0
        %691 = vmatprep.subr.bf16.mxu0 0
        %692 = vmatpush2.bf16.msra.mxu0 0
        %693 = vmatprep.subr.bf16.mxu0 0
        %694 = vmatpush2.bf16.msra.mxu0 0
        %695 = vmatprep.subr.bf16.mxu0 0
        %696 = vmatpush2.bf16.msra.mxu0 0
        %697 = vmatprep.subr.bf16.mxu0 0
        %698 = vmatpush2.bf16.msra.mxu0 0
        %699 = vmatprep.mubr.bf16.mxu0 0
        %700 = vmatmul.mubr.bf16.gmra.mxu0 %v665
        %v701 = vpop.f32.mrf.mxu0
        %v702 = vadd.f32 0.0, %v701
        %v703 = vpop.f32.mrf.mxu0
        %v704 = vpop.f32.mrf.mxu0
        %v705 = vadd.f32 0.0, %v704
        %v706 = vpop.f32.mrf.mxu0
        %707 = vdwg.mxu0
        %710 = vrot.lane.b32.xlu0 %v702, 64
        %v711 = vpop.permute.xlu0 %710
        %712 = vrot.lane.b32.xlu0 %v705, 64
        %v713 = vpop.permute.xlu0 %712
        %v716 = vsel %vm451, %v577, %v711
        %v717 = vsel %vm451, %v580, %v713
        %v718 = vpack.c.bf16 %v717, %v716
        %v720 = vunpack.c.l.b16 %v718
        %v721 = vunpack.c.h.b16 %v718
        %v722 = vpack.c.b16 %v720, %v720
        %v723 = vpack.c.b16 %v721, %v721
        %726 = vst [vmem:[%s432] sm:$0xf] %v722
        %727 = vst [vmem:[%s432 + $0x4] sm:$0xf] %v723
        %p728 = scmp.lt.s32.totalorder %s19, 1
        %s729 = scalar_select %p728, %s19, 1
        %p730 = scmp.lt.s32.totalorder %s20, 0
        %s731 = scalar_select %p730, %s20, 0
        %s732 = smul.addr %s729, 2
        %s733 = sadd.s32 %s731, %s732
        %s734 = smul.addr %s733, 4
        %s735 = scalar_lea.vmem %s4, %s734
        // Predicated region
        $region160: #{_lambda_.13} parent=146 // pred_check
          %p736 = pneg %p161
        $region161: #{_lambda_.13} parent=146 // pred_check_branch
          %738 = sbr.rel (%p736) target = $region163
        $region162: #{_lambda_.13} parent=146 // pred_region
          _
        $region163: #{_lambda_.13} parent=146 // pred_fallthru
          _
      $region147: #{_lambda_.13} parent=5 // pred_fallthru
        _
      %p739 = scmp.le.s32.totalorder 2, %s10
      // Predicated region
      $region164: #{_lambda_.13} parent=5 // pred_check
        %p740 = pneg %p739
      $region165: #{_lambda_.13} parent=5 // pred_check_branch
        %742 = sbr.rel (%p740) target = $region167
      $region166: #{_lambda_.13} parent=5 // pred_region
        %s743 = ssub.s32 %s10, 2
        // Predicated region
        $region168: #{_lambda_.13} parent=166 // pred_check
          %p744 = pneg %p167
        $region169: #{_lambda_.13} parent=166 // pred_check_branch
          %746 = sbr.rel (%p744) target = $region171
        $region170: #{_lambda_.13} parent=166 // pred_region
          %p747 = scmp.lt.s32.totalorder %s21, 1
          %s748 = scalar_select %p747, %s21, 1
          %p749 = scmp.lt.s32.totalorder %s22, 0
          %s750 = scalar_select %p749, %s22, 0
          %s751 = smul.addr %s748, 2
          %s752 = sadd.s32 %s750, %s751
          %s753 = smul.addr %s752, 4
          %s754 = scalar_lea.vmem %s4, %s753
        $region171: #{_lambda_.13} parent=166 // pred_fallthru
          _
      $region167: #{_lambda_.13} parent=5 // pred_fallthru
        _
    $region6: #{_lambda_.13} parent=1 // loop_footer
      %s14 = sadd.s32 1, %s10
    $region7: #{_lambda_.13} parent=1 // loop_footer_branch
      %9 = sbr.rel target = $region3
    $region8: #{_lambda_.13} parent=1 // loop_exit
      _

// kernel: _lambda_.12
$region0: #{_lambda_.12}
  #allocation0 [shape = 'u32[]', space=smem, size = 0x4, offset = 0x4, fixed_abs, tag = 'smem constant byte address 0x4 - core index']
  #allocation1 [shape = 'u32[144,128]{1,0:T(1,128)}', space=vmem, size = 0x12000, scoped, tag = 'internal scratch']
  %s0 = inlined_call_operand.vmem [shape: bf16[32,128], index: 0, kind: input, shape index: {}]
  %s1 = inlined_call_operand.vmem [shape: bf16[128,384], index: 1, kind: input, shape index: {}]
  %s2 = inlined_call_operand.vmem [shape: f32[1,384], index: 2, kind: input, shape index: {}]
  %s3 = inlined_call_operand.vmem [shape: bf16[32,384], index: 3, kind: output, shape index: {}]
  %s4 = sld [smem:[#allocation0]]
  $region22: #{_lambda_.12} parent=0
    _
  %s6 = ssub.s32 1, %s4
  %s7 = scalar_select 0, %s6, %s4
  // Predicated region
  $region2: #{_lambda_.12} parent=0 // pred_check
    _
  $region3: #{_lambda_.12} parent=0 // pred_check_branch
    %9 = sbr.rel (0) target = $region5
  $region4: #{_lambda_.12} parent=0 // pred_region
    _
  $region5: #{_lambda_.12} parent=0 // pred_fallthru
    _
  // Predicated region
  $region6: #{_lambda_.12} parent=0 // pred_check
    _
  $region7: #{_lambda_.12} parent=0 // pred_check_branch
    %11 = sbr.rel (0) target = $region9
  $region8: #{_lambda_.12} parent=0 // pred_region
    _
  $region9: #{_lambda_.12} parent=0 // pred_fallthru
    _
  // Predicated region
  $region10: #{_lambda_.12} parent=0 // pred_check
    _
  $region11: #{_lambda_.12} parent=0 // pred_check_branch
    %13 = sbr.rel (0) target = $region13
  $region12: #{_lambda_.12} parent=0 // pred_region
    _
  $region13: #{_lambda_.12} parent=0 // pred_fallthru
    _
  %v15 = vld [vmem:[%s0] sm:$0xf]
  %v16 = vld [vmem:[%s0 + $0x4] sm:$0xf]
  %v17 = vld [vmem:[%s0 + $0x8] sm:$0xf]
  %v18 = vld [vmem:[%s0 + $0xc] sm:$0xf]
  %v19 = vld [vmem:[%s1] sm:$0xff]
  %v20 = vld [vmem:[%s1 + $0x8] sm:$0xf]
  %v21 = vld [vmem:[%s1 + $0xc] sm:$0xff]
  %v22 = vld [vmem:[%s1 + $0x14] sm:$0xf]
  %v23 = vld [vmem:[%s1 + $0x18] sm:$0xff]
  %v24 = vld [vmem:[%s1 + $0x20] sm:$0xf]
  %v25 = vld [vmem:[%s1 + $0x24] sm:$0xff]
  %v26 = vld [vmem:[%s1 + $0x2c] sm:$0xf]
  %v27 = vld [vmem:[%s1 + $0x30] sm:$0xff]
  %v28 = vld [vmem:[%s1 + $0x38] sm:$0xf]
  %v29 = vld [vmem:[%s1 + $0x3c] sm:$0xff]
  %v30 = vld [vmem:[%s1 + $0x44] sm:$0xf]
  %v31 = vld [vmem:[%s1 + $0x48] sm:$0xff]
  %v32 = vld [vmem:[%s1 + $0x50] sm:$0xf]
  %v33 = vld [vmem:[%s1 + $0x54] sm:$0xff]
  %v34 = vld [vmem:[%s1 + $0x5c] sm:$0xf]
  %v35 = vld [vmem:[%s1 + $0x60] sm:$0xff]
  %v36 = vld [vmem:[%s1 + $0x68] sm:$0xf]
  %v37 = vld [vmem:[%s1 + $0x6c] sm:$0xff]
  %v38 = vld [vmem:[%s1 + $0x74] sm:$0xf]
  %v39 = vld [vmem:[%s1 + $0x78] sm:$0xff]
  %v40 = vld [vmem:[%s1 + $0x80] sm:$0xf]
  %v41 = vld [vmem:[%s1 + $0x84] sm:$0xff]
  %v42 = vld [vmem:[%s1 + $0x8c] sm:$0xf]
  %v43 = vld [vmem:[%s1 + $0x90] sm:$0xff]
  %v44 = vld [vmem:[%s1 + $0x98] sm:$0xf]
  %v45 = vld [vmem:[%s1 + $0x9c] sm:$0xff]
  %v46 = vld [vmem:[%s1 + $0xa4] sm:$0xf]
  %v47 = vld [vmem:[%s1 + $0xa8] sm:$0xff]
  %v48 = vld [vmem:[%s1 + $0xb0] sm:$0xf]
  %v49 = vld [vmem:[%s1 + $0xb4] sm:$0xff]
  %v50 = vld [vmem:[%s1 + $0xbc] sm:$0xf]
  %v51 = vld [vmem:[%s2] sm:$0x7]
  %v53 = vlaneseq
  %v54 = vshrl.u32 %v53, 7
  %v55 = vsub.s32 0, %v54
  %v56 = vrot.slane %v51, %v55
  %v57 = vlaneseq
  %v58 = vshrl.u32 %v57, 7
  %v59 = vsub.s32 1, %v58
  %v60 = vrot.slane %v51, %v59
  %v61 = vlaneseq
  %v62 = vshrl.u32 %v61, 7
  %v63 = vsub.s32 2, %v62
  %v64 = vrot.slane %v51, %v63
  %v72 = vunpack.c.l.b16 %v15
  %v73 = vunpack.c.l.b16 %v16
  %v74 = vunpack.c.l.b16 %v17
  %v75 = vunpack.c.l.b16 %v18
  %v76 = vpack.c.b16 %v73, %v72
  %v77 = vpack.c.b16 %v75, %v74
  %v112 = vunpack.c.l.b16 %v19
  %v113 = vunpack.c.h.b16 %v19
  %v114 = vunpack.c.l.b16 %v20
  %v115 = vunpack.c.l.b16 %v21
  %v116 = vunpack.c.h.b16 %v21
  %v117 = vunpack.c.l.b16 %v22
  %v118 = vunpack.c.l.b16 %v23
  %v119 = vunpack.c.h.b16 %v23
  %v120 = vunpack.c.l.b16 %v24
  %v121 = vunpack.c.l.b16 %v25
  %v122 = vunpack.c.h.b16 %v25
  %v123 = vunpack.c.l.b16 %v26
  %v124 = vunpack.c.l.b16 %v27
  %v125 = vunpack.c.h.b16 %v27
  %v126 = vunpack.c.l.b16 %v28
  %v127 = vunpack.c.l.b16 %v29
  %v128 = vunpack.c.h.b16 %v29
  %v129 = vunpack.c.l.b16 %v30
  %v130 = vunpack.c.l.b16 %v31
  %v131 = vunpack.c.h.b16 %v31
  %v132 = vunpack.c.l.b16 %v32
  %v133 = vunpack.c.l.b16 %v33
  %v134 = vunpack.c.h.b16 %v33
  %v135 = vunpack.c.l.b16 %v34
  %v136 = vunpack.c.l.b16 %v35
  %v137 = vunpack.c.h.b16 %v35
  %v138 = vunpack.c.l.b16 %v36
  %v139 = vunpack.c.l.b16 %v37
  %v140 = vunpack.c.h.b16 %v37
  %v141 = vunpack.c.l.b16 %v38
  %v142 = vunpack.c.l.b16 %v39
  %v143 = vunpack.c.h.b16 %v39
  %v144 = vunpack.c.l.b16 %v40
  %v145 = vunpack.c.l.b16 %v41
  %v146 = vunpack.c.h.b16 %v41
  %v147 = vunpack.c.l.b16 %v42
  %v148 = vunpack.c.l.b16 %v43
  %v149 = vunpack.c.h.b16 %v43
  %v150 = vunpack.c.l.b16 %v44
  %v151 = vunpack.c.l.b16 %v45
  %v152 = vunpack.c.h.b16 %v45
  %v153 = vunpack.c.l.b16 %v46
  %v154 = vunpack.c.l.b16 %v47
  %v155 = vunpack.c.h.b16 %v47
  %v156 = vunpack.c.l.b16 %v48
  %v157 = vunpack.c.l.b16 %v49
  %v158 = vunpack.c.h.b16 %v49
  %v159 = vunpack.c.l.b16 %v50
  %v160 = vpack.c.b16 %v115, %v112
  %v161 = vpack.c.b16 %v116, %v113
  %v162 = vpack.c.b16 %v117, %v114
  %v163 = vpack.c.b16 %v121, %v118
  %v164 = vpack.c.b16 %v122, %v119
  %v165 = vpack.c.b16 %v123, %v120
  %v166 = vpack.c.b16 %v127, %v124
  %v167 = vpack.c.b16 %v128, %v125
  %v168 = vpack.c.b16 %v129, %v126
  %v169 = vpack.c.b16 %v133, %v130
  %v170 = vpack.c.b16 %v134, %v131
  %v171 = vpack.c.b16 %v135, %v132
  %v172 = vpack.c.b16 %v139, %v136
  %v173 = vpack.c.b16 %v140, %v137
  %v174 = vpack.c.b16 %v141, %v138
  %v175 = vpack.c.b16 %v145, %v142
  %v176 = vpack.c.b16 %v146, %v143
  %v177 = vpack.c.b16 %v147, %v144
  %v178 = vpack.c.b16 %v151, %v148
  %v179 = vpack.c.b16 %v152, %v149
  %v180 = vpack.c.b16 %v153, %v150
  %v181 = vpack.c.b16 %v157, %v154
  %v182 = vpack.c.b16 %v158, %v155
  %v183 = vpack.c.b16 %v159, %v156
  %208 = vmatprep.subr.bf16.mxu0 %v182
  %209 = vmatpush1.bf16.msra.mxu0 %v181
  %210 = vmatprep.subr.bf16.mxu0 %v179
  %211 = vmatpush1.bf16.msra.mxu0 %v178
  %212 = vmatprep.subr.bf16.mxu0 %v176
  %213 = vmatpush1.bf16.msra.mxu0 %v175
  %214 = vmatprep.subr.bf16.mxu0 %v173
  %215 = vmatpush1.bf16.msra.mxu0 %v172
  %216 = vmatprep.subr.bf16.mxu0 %v170
  %217 = vmatpush1.bf16.msra.mxu0 %v169
  %218 = vmatprep.subr.bf16.mxu0 %v167
  %219 = vmatpush1.bf16.msra.mxu0 %v166
  %220 = vmatprep.subr.bf16.mxu0 %v164
  %221 = vmatpush1.bf16.msra.mxu0 %v163
  %222 = vmatprep.subr.bf16.mxu0 %v161
  %223 = vmatpush1.bf16.msra.mxu0 %v160
  %224 = vmatprep.subr.bf16.mxu0 0
  %225 = vmatpush2.bf16.msra.mxu0 0
  %226 = vmatprep.subr.bf16.mxu0 0
  %227 = vmatpush2.bf16.msra.mxu0 0
  %228 = vmatprep.subr.bf16.mxu0 0
  %229 = vmatpush2.bf16.msra.mxu0 0
  %230 = vmatprep.subr.bf16.mxu0 0
  %231 = vmatpush2.bf16.msra.mxu0 0
  %232 = vmatprep.subr.bf16.mxu0 0
  %233 = vmatpush2.bf16.msra.mxu0 0
  %234 = vmatprep.subr.bf16.mxu0 0
  %235 = vmatpush2.bf16.msra.mxu0 0
  %236 = vmatprep.subr.bf16.mxu0 0
  %237 = vmatpush2.bf16.msra.mxu0 0
  %238 = vmatprep.subr.bf16.mxu0 0
  %239 = vmatpush2.bf16.msra.mxu0 0
  %240 = vmatprep.mubr.bf16.mxu0 0
  %241 = vmatmul.mubr.bf16.gmra.mxu0 %v76
  %v242 = vpop.f32.mrf.mxu0
  %v243 = vadd.f32 %v56, %v242
  %v244 = vpop.f32.mrf.mxu0
  %v245 = vadd.f32 %v60, %v244
  %v246 = vpop.f32.mrf.mxu0
  %v247 = vadd.f32 %v56, %v246
  %v248 = vpop.f32.mrf.mxu0
  %v249 = vadd.f32 %v60, %v248
  %250 = vmatprep.mubr.bf16.mxu0 0
  %251 = vmatmul.mubr.bf16.gmra.mxu0 %v77
  %v252 = vpop.f32.mrf.mxu0
  %v253 = vadd.f32 %v56, %v252
  %v254 = vpop.f32.mrf.mxu0
  %v255 = vadd.f32 %v60, %v254
  %v256 = vpop.f32.mrf.mxu0
  %v257 = vadd.f32 %v56, %v256
  %v258 = vpop.f32.mrf.mxu0
  %v259 = vadd.f32 %v60, %v258
  %260 = vdwg.mxu0
  %261 = vmatprep.subr.bf16.mxu0 0
  %262 = vmatpush1.bf16.msra.mxu0 %v183
  %263 = vmatprep.subr.bf16.mxu0 0
  %264 = vmatpush1.bf16.msra.mxu0 %v180
  %265 = vmatprep.subr.bf16.mxu0 0
  %266 = vmatpush1.bf16.msra.mxu0 %v177
  %267 = vmatprep.subr.bf16.mxu0 0
  %268 = vmatpush1.bf16.msra.mxu0 %v174
  %269 = vmatprep.subr.bf16.mxu0 0
  %270 = vmatpush1.bf16.msra.mxu0 %v171
  %271 = vmatprep.subr.bf16.mxu0 0
  %272 = vmatpush1.bf16.msra.mxu0 %v168
  %273 = vmatprep.subr.bf16.mxu0 0
  %274 = vmatpush1.bf16.msra.mxu0 %v165
  %275 = vmatprep.subr.bf16.mxu0 0
  %276 = vmatpush1.bf16.msra.mxu0 %v162
  %277 = vmatprep.subr.bf16.mxu0 0
  %278 = vmatpush2.bf16.msra.mxu0 0
  %279 = vmatprep.subr.bf16.mxu0 0
  %280 = vmatpush2.bf16.msra.mxu0 0
  %281 = vmatprep.subr.bf16.mxu0 0
  %282 = vmatpush2.bf16.msra.mxu0 0
  %283 = vmatprep.subr.bf16.mxu0 0
  %284 = vmatpush2.bf16.msra.mxu0 0
  %285 = vmatprep.subr.bf16.mxu0 0
  %286 = vmatpush2.bf16.msra.mxu0 0
  %287 = vmatprep.subr.bf16.mxu0 0
  %288 = vmatpush2.bf16.msra.mxu0 0
  %289 = vmatprep.subr.bf16.mxu0 0
  %290 = vmatpush2.bf16.msra.mxu0 0
  %291 = vmatprep.subr.bf16.mxu0 0
  %292 = vmatpush2.bf16.msra.mxu0 0
  %293 = vmatprep.mubr.bf16.mxu0 0
  %294 = vmatmul.mubr.bf16.gmra.mxu0 %v76
  %v295 = vpop.f32.mrf.mxu0
  %v296 = vadd.f32 %v64, %v295
  %v297 = vpop.f32.mrf.mxu0
  %v298 = vpop.f32.mrf.mxu0
  %v299 = vadd.f32 %v64, %v298
  %v300 = vpop.f32.mrf.mxu0
  %301 = vmatprep.mubr.bf16.mxu0 0
  %302 = vmatmul.mubr.bf16.gmra.mxu0 %v77
  %v303 = vpop.f32.mrf.mxu0
  %v304 = vadd.f32 %v64, %v303
  %v305 = vpop.f32.mrf.mxu0
  %v306 = vpop.f32.mrf.mxu0
  %v307 = vadd.f32 %v64, %v306
  %v308 = vpop.f32.mrf.mxu0
  %309 = vdwg.mxu0
  %v310 = vpack.c.bf16 %v247, %v243
  %v311 = vpack.c.bf16 %v249, %v245
  %v312 = vpack.c.bf16 %v299, %v296
  %v313 = vpack.c.bf16 %v257, %v253
  %v314 = vpack.c.bf16 %v259, %v255
  %v315 = vpack.c.bf16 %v307, %v304
  %v322 = vunpack.c.l.b16 %v310
  %v323 = vunpack.c.l.b16 %v311
  %v324 = vunpack.c.l.b16 %v312
  %v325 = vunpack.c.h.b16 %v310
  %v326 = vunpack.c.h.b16 %v311
  %v327 = vunpack.c.h.b16 %v312
  %v328 = vunpack.c.l.b16 %v313
  %v329 = vunpack.c.l.b16 %v314
  %v330 = vunpack.c.l.b16 %v315
  %v331 = vunpack.c.h.b16 %v313
  %v332 = vunpack.c.h.b16 %v314
  %v333 = vunpack.c.h.b16 %v315
  %v334 = vpack.c.b16 %v323, %v322
  %v335 = vpack.c.b16 %v324, %v324
  %v336 = vpack.c.b16 %v326, %v325
  %v337 = vpack.c.b16 %v327, %v327
  %v338 = vpack.c.b16 %v329, %v328
  %v339 = vpack.c.b16 %v330, %v330
  %v340 = vpack.c.b16 %v332, %v331
  %v341 = vpack.c.b16 %v333, %v333
  %350 = vst [vmem:[%s3] sm:$0xff] %v334
  %351 = vst [vmem:[%s3 + $0x8] sm:$0xf] %v335
  %352 = vst [vmem:[%s3 + $0xc] sm:$0xff] %v336
  %353 = vst [vmem:[%s3 + $0x14] sm:$0xf] %v337
  %354 = vst [vmem:[%s3 + $0x18] sm:$0xff] %v338
  %355 = vst [vmem:[%s3 + $0x20] sm:$0xf] %v339
  %356 = vst [vmem:[%s3 + $0x24] sm:$0xff] %v340
  %357 = vst [vmem:[%s3 + $0x2c] sm:$0xf] %v341
  // Predicated region
  $region14: #{_lambda_.12} parent=0 // pred_check
    _
  $region15: #{_lambda_.12} parent=0 // pred_check_branch
    %359 = sbr.rel (0) target = $region17
  $region16: #{_lambda_.12} parent=0 // pred_region
    _
  $region17: #{_lambda_.12} parent=0 // pred_fallthru
    _
  // Predicated region
  $region18: #{_lambda_.12} parent=0 // pred_check
    _
  $region19: #{_lambda_.12} parent=0 // pred_check_branch
    %361 = sbr.rel (0) target = $region21
  $region20: #{_lambda_.12} parent=0 // pred_region
    _
  $region21: #{_lambda_.12} parent=0 // pred_fallthru
    _

// kernel: _lambda_.14
$region0: #{_lambda_.14}
  #allocation0 [shape = 'u32[]', space=smem, size = 0x4, offset = 0x4, fixed_abs, tag = 'smem constant byte address 0x4 - core index']
  #allocation1 [shape = 'u32[144,128]{1,0:T(1,128)}', space=vmem, size = 0x12000, scoped, tag = 'internal scratch']
  %s0 = inlined_call_operand.vmem [shape: bf16[32,128], index: 0, kind: input, shape index: {}]
  %s1 = inlined_call_operand.vmem [shape: bf16[128,128], index: 1, kind: input, shape index: {}]
  %s2 = inlined_call_operand.vmem [shape: f32[1,128], index: 2, kind: input, shape index: {}]
  %s3 = inlined_call_operand.vmem [shape: bf16[32,128], index: 3, kind: input, shape index: {}]
  %s4 = inlined_call_operand.vmem [shape: f32[1,128], index: 4, kind: input, shape index: {}]
  %s5 = inlined_call_operand.vmem [shape: f32[1,128], index: 5, kind: input, shape index: {}]
  %s6 = inlined_call_operand.vmem [shape: bf16[32,128], index: 6, kind: output, shape index: {}]
  %s7 = sld [smem:[#allocation0]]
  $region34: #{_lambda_.14} parent=0
    _
  %s9 = ssub.s32 1, %s7
  %s10 = scalar_select 0, %s9, %s7
  // Predicated region
  $region2: #{_lambda_.14} parent=0 // pred_check
    _
  $region3: #{_lambda_.14} parent=0 // pred_check_branch
    %12 = sbr.rel (0) target = $region5
  $region4: #{_lambda_.14} parent=0 // pred_region
    _
  $region5: #{_lambda_.14} parent=0 // pred_fallthru
    _
  // Predicated region
  $region6: #{_lambda_.14} parent=0 // pred_check
    _
  $region7: #{_lambda_.14} parent=0 // pred_check_branch
    %14 = sbr.rel (0) target = $region9
  $region8: #{_lambda_.14} parent=0 // pred_region
    _
  $region9: #{_lambda_.14} parent=0 // pred_fallthru
    _
  // Predicated region
  $region10: #{_lambda_.14} parent=0 // pred_check
    _
  $region11: #{_lambda_.14} parent=0 // pred_check_branch
    %16 = sbr.rel (0) target = $region13
  $region12: #{_lambda_.14} parent=0 // pred_region
    _
  $region13: #{_lambda_.14} parent=0 // pred_fallthru
    _
  // Predicated region
  $region14: #{_lambda_.14} parent=0 // pred_check
    _
  $region15: #{_lambda_.14} parent=0 // pred_check_branch
    %18 = sbr.rel (0) target = $region17
  $region16: #{_lambda_.14} parent=0 // pred_region
    _
  $region17: #{_lambda_.14} parent=0 // pred_fallthru
    _
  // Predicated region
  $region18: #{_lambda_.14} parent=0 // pred_check
    _
  $region19: #{_lambda_.14} parent=0 // pred_check_branch
    %20 = sbr.rel (0) target = $region21
  $region20: #{_lambda_.14} parent=0 // pred_region
    _
  $region21: #{_lambda_.14} parent=0 // pred_fallthru
    _
  // Predicated region
  $region22: #{_lambda_.14} parent=0 // pred_check
    _
  $region23: #{_lambda_.14} parent=0 // pred_check_branch
    %22 = sbr.rel (0) target = $region25
  $region24: #{_lambda_.14} parent=0 // pred_region
    _
  $region25: #{_lambda_.14} parent=0 // pred_fallthru
    _
  %v24 = vld [vmem:[%s0] sm:$0xf]
  %v25 = vld [vmem:[%s0 + $0x4] sm:$0xf]
  %v26 = vld [vmem:[%s0 + $0x8] sm:$0xf]
  %v27 = vld [vmem:[%s0 + $0xc] sm:$0xf]
  %v28 = vld [vmem:[%s1] sm:$0xf]
  %v29 = vld [vmem:[%s1 + $0x4] sm:$0xf]
  %v30 = vld [vmem:[%s1 + $0x8] sm:$0xf]
  %v31 = vld [vmem:[%s1 + $0xc] sm:$0xf]
  %v32 = vld [vmem:[%s1 + $0x10] sm:$0xf]
  %v33 = vld [vmem:[%s1 + $0x14] sm:$0xf]
  %v34 = vld [vmem:[%s1 + $0x18] sm:$0xf]
  %v35 = vld [vmem:[%s1 + $0x1c] sm:$0xf]
  %v36 = vld [vmem:[%s1 + $0x20] sm:$0xf]
  %v37 = vld [vmem:[%s1 + $0x24] sm:$0xf]
  %v38 = vld [vmem:[%s1 + $0x28] sm:$0xf]
  %v39 = vld [vmem:[%s1 + $0x2c] sm:$0xf]
  %v40 = vld [vmem:[%s1 + $0x30] sm:$0xf]
  %v41 = vld [vmem:[%s1 + $0x34] sm:$0xf]
  %v42 = vld [vmem:[%s1 + $0x38] sm:$0xf]
  %v43 = vld [vmem:[%s1 + $0x3c] sm:$0xf]
  %v44 = vld [vmem:[%s2] sm:$0x1]
  %v46 = vlaneseq
  %v47 = vshrl.u32 %v46, 7
  %v48 = vsub.s32 0, %v47
  %v49 = vrot.slane %v44, %v48
  %v55 = vunpack.c.l.b16 %v24
  %v56 = vunpack.c.l.b16 %v25
  %v57 = vunpack.c.l.b16 %v26
  %v58 = vunpack.c.l.b16 %v27
  %v59 = vpack.c.b16 %v56, %v55
  %v60 = vpack.c.b16 %v58, %v57
  %v79 = vunpack.c.l.b16 %v28
  %v80 = vunpack.c.l.b16 %v29
  %v81 = vunpack.c.l.b16 %v30
  %v82 = vunpack.c.l.b16 %v31
  %v83 = vunpack.c.l.b16 %v32
  %v84 = vunpack.c.l.b16 %v33
  %v85 = vunpack.c.l.b16 %v34
  %v86 = vunpack.c.l.b16 %v35
  %v87 = vunpack.c.l.b16 %v36
  %v88 = vunpack.c.l.b16 %v37
  %v89 = vunpack.c.l.b16 %v38
  %v90 = vunpack.c.l.b16 %v39
  %v91 = vunpack.c.l.b16 %v40
  %v92 = vunpack.c.l.b16 %v41
  %v93 = vunpack.c.l.b16 %v42
  %v94 = vunpack.c.l.b16 %v43
  %v95 = vpack.c.b16 %v80, %v79
  %v96 = vpack.c.b16 %v82, %v81
  %v97 = vpack.c.b16 %v84, %v83
  %v98 = vpack.c.b16 %v86, %v85
  %v99 = vpack.c.b16 %v88, %v87
  %v100 = vpack.c.b16 %v90, %v89
  %v101 = vpack.c.b16 %v92, %v91
  %v102 = vpack.c.b16 %v94, %v93
  %111 = vmatprep.subr.bf16.mxu0 0
  %112 = vmatpush1.bf16.msra.mxu0 %v102
  %113 = vmatprep.subr.bf16.mxu0 0
  %114 = vmatpush1.bf16.msra.mxu0 %v101
  %115 = vmatprep.subr.bf16.mxu0 0
  %116 = vmatpush1.bf16.msra.mxu0 %v100
  %117 = vmatprep.subr.bf16.mxu0 0
  %118 = vmatpush1.bf16.msra.mxu0 %v99
  %119 = vmatprep.subr.bf16.mxu0 0
  %120 = vmatpush1.bf16.msra.mxu0 %v98
  %121 = vmatprep.subr.bf16.mxu0 0
  %122 = vmatpush1.bf16.msra.mxu0 %v97
  %123 = vmatprep.subr.bf16.mxu0 0
  %124 = vmatpush1.bf16.msra.mxu0 %v96
  %125 = vmatprep.subr.bf16.mxu0 0
  %126 = vmatpush1.bf16.msra.mxu0 %v95
  %127 = vmatprep.subr.bf16.mxu0 0
  %128 = vmatpush2.bf16.msra.mxu0 0
  %129 = vmatprep.subr.bf16.mxu0 0
  %130 = vmatpush2.bf16.msra.mxu0 0
  %131 = vmatprep.subr.bf16.mxu0 0
  %132 = vmatpush2.bf16.msra.mxu0 0
  %133 = vmatprep.subr.bf16.mxu0 0
  %134 = vmatpush2.bf16.msra.mxu0 0
  %135 = vmatprep.subr.bf16.mxu0 0
  %136 = vmatpush2.bf16.msra.mxu0 0
  %137 = vmatprep.subr.bf16.mxu0 0
  %138 = vmatpush2.bf16.msra.mxu0 0
  %139 = vmatprep.subr.bf16.mxu0 0
  %140 = vmatpush2.bf16.msra.mxu0 0
  %141 = vmatprep.subr.bf16.mxu0 0
  %142 = vmatpush2.bf16.msra.mxu0 0
  %143 = vmatprep.mubr.bf16.mxu0 0
  %144 = vmatmul.mubr.bf16.gmra.mxu0 %v59
  %v145 = vpop.f32.mrf.mxu0
  %v146 = vadd.f32 %v49, %v145
  %v147 = vpop.f32.mrf.mxu0
  %v148 = vpop.f32.mrf.mxu0
  %v149 = vadd.f32 %v49, %v148
  %v150 = vpop.f32.mrf.mxu0
  %151 = vmatprep.mubr.bf16.mxu0 0
  %152 = vmatmul.mubr.bf16.gmra.mxu0 %v60
  %v153 = vpop.f32.mrf.mxu0
  %v154 = vadd.f32 %v49, %v153
  %v155 = vpop.f32.mrf.mxu0
  %v156 = vpop.f32.mrf.mxu0
  %v157 = vadd.f32 %v49, %v156
  %v158 = vpop.f32.mrf.mxu0
  %159 = vdwg.mxu0
  %v160 = vld [vmem:[%s3] sm:$0xf]
  %v161 = vld [vmem:[%s3 + $0x4] sm:$0xf]
  %v162 = vld [vmem:[%s3 + $0x8] sm:$0xf]
  %v163 = vld [vmem:[%s3 + $0xc] sm:$0xf]
  %v164 = vunpack.c.l.bf16 %v160
  %v165 = vunpack.c.l.bf16 %v161
  %v166 = vunpack.c.l.bf16 %v162
  %v167 = vunpack.c.l.bf16 %v163
  %v168 = vadd.f32 %v146, %v164
  %v169 = vadd.f32 %v149, %v165
  %v170 = vadd.f32 %v154, %v166
  %v171 = vadd.f32 %v157, %v167
  %v172 = vld [vmem:[%s4] sm:$0x1]
  %v173 = vld [vmem:[%s5] sm:$0x1]
  %174 = vadd.xlane.f32.xlu0 %v168
  %v175 = vpop.xlane.xlu0 %174
  %176 = vadd.xlane.f32.xlu0 %v169
  %v177 = vpop.xlane.xlu0 %176
  %178 = vadd.xlane.f32.xlu0 %v170
  %v179 = vpop.xlane.xlu0 %178
  %180 = vadd.xlane.f32.xlu0 %v171
  %v181 = vpop.xlane.xlu0 %180
  %v182 = vrcp.pop 128.0
  %v183 = vmul.f32 %v175, %v182
  %v184 = vmul.f32 %v177, %v182
  %v185 = vmul.f32 %v179, %v182
  %v186 = vmul.f32 %v181, %v182
  %v187 = vsub.f32 %v168, %v183
  %v188 = vsub.f32 %v169, %v184
  %v189 = vsub.f32 %v170, %v185
  %v190 = vsub.f32 %v171, %v186
  %v191 = vmul.f32 %v187, %v187
  %v192 = vmul.f32 %v188, %v188
  %v193 = vmul.f32 %v189, %v189
  %v194 = vmul.f32 %v190, %v190
  %195 = vadd.xlane.f32.xlu0 %v191
  %v196 = vpop.xlane.xlu0 %195
  %197 = vadd.xlane.f32.xlu0 %v192
  %v198 = vpop.xlane.xlu0 %197
  %199 = vadd.xlane.f32.xlu0 %v193
  %v200 = vpop.xlane.xlu0 %199
  %201 = vadd.xlane.f32.xlu0 %v194
  %v202 = vpop.xlane.xlu0 %201
  %v203 = vmul.f32 %v196, %v182
  %v204 = vmul.f32 %v198, %v182
  %v205 = vmul.f32 %v200, %v182
  %v206 = vmul.f32 %v202, %v182
  %v207 = vadd.f32 %v203, 1e-12
  %v208 = vadd.f32 %v204, 1e-12
  %v209 = vadd.f32 %v205, 1e-12
  %v210 = vadd.f32 %v206, 1e-12
  %v211 = vrsqrt.pop %v207
  %v212 = vrsqrt.pop %v208
  %v213 = vrsqrt.pop %v209
  %v214 = vrsqrt.pop %v210
  %v215 = vmul.f32 %v187, %v211
  %v216 = vmul.f32 %v188, %v212
  %v217 = vmul.f32 %v189, %v213
  %v218 = vmul.f32 %v190, %v214
  %v220 = vlaneseq
  %v221 = vshrl.u32 %v220, 7
  %v222 = vsub.s32 0, %v221
  %v223 = vrot.slane %v172, %v222
  %v225 = vmul.f32 %v215, %v223
  %v226 = vmul.f32 %v216, %v223
  %v227 = vmul.f32 %v217, %v223
  %v228 = vmul.f32 %v218, %v223
  %v230 = vlaneseq
  %v231 = vshrl.u32 %v230, 7
  %v232 = vsub.s32 0, %v231
  %v233 = vrot.slane %v173, %v232
  %v235 = vadd.f32 %v225, %v233
  %v236 = vadd.f32 %v226, %v233
  %v237 = vadd.f32 %v227, %v233
  %v238 = vadd.f32 %v228, %v233
  %v239 = vpack.c.bf16 %v236, %v235
  %v240 = vpack.c.bf16 %v238, %v237
  %v243 = vunpack.c.l.b16 %v239
  %v244 = vunpack.c.h.b16 %v239
  %v245 = vunpack.c.l.b16 %v240
  %v246 = vunpack.c.h.b16 %v240
  %v247 = vpack.c.b16 %v243, %v243
  %v248 = vpack.c.b16 %v244, %v244
  %v249 = vpack.c.b16 %v245, %v245
  %v250 = vpack.c.b16 %v246, %v246
  %255 = vst [vmem:[%s6] sm:$0xf] %v247
  %256 = vst [vmem:[%s6 + $0x4] sm:$0xf] %v248
  %257 = vst [vmem:[%s6 + $0x8] sm:$0xf] %v249
  %258 = vst [vmem:[%s6 + $0xc] sm:$0xf] %v250
  // Predicated region
  $region26: #{_lambda_.14} parent=0 // pred_check
    _
  $region27: #{_lambda_.14} parent=0 // pred_check_branch
    %260 = sbr.rel (0) target = $region29
  $region28: #{_lambda_.14} parent=0 // pred_region
    _
  $region29: #{_lambda_.14} parent=0 // pred_fallthru
    _
  // Predicated region
  $region30: #{_lambda_.14} parent=0 // pred_check
    _
  $region31: #{_lambda_.14} parent=0 // pred_check_branch
    %262 = sbr.rel (0) target = $region33
  $region32: #{_lambda_.14} parent=0 // pred_region
    _
  $region33: #{_lambda_.14} parent=0 // pred_fallthru
    _

// kernel: _lambda_.15
$region0: #{_lambda_.15}
  #allocation0 [shape = 'u32[]', space=smem, size = 0x4, offset = 0x4, fixed_abs, tag = 'smem constant byte address 0x4 - core index']
  #allocation1 [shape = 'u32[144,128]{1,0:T(1,128)}', space=vmem, size = 0x12000, scoped, tag = 'internal scratch']
  #allocation2 [shape = 'f32[32,128]{1,0:T(8,128)}', space=vmem, size = 0x4000, scoped, tag = 'scratch operand']
  %s0 = inlined_call_operand.vmem [shape: bf16[32,128], index: 0, kind: input, shape index: {}]
  %s1 = inlined_call_operand.vmem [shape: bf16[128,512], index: 1, kind: input, shape index: {}]
  %s2 = inlined_call_operand.vmem [shape: f32[1,512], index: 2, kind: input, shape index: {}]
  %s3 = inlined_call_operand.vmem [shape: bf16[512,128], index: 3, kind: input, shape index: {}]
  %s4 = inlined_call_operand.vmem [shape: f32[1,128], index: 4, kind: input, shape index: {}]
  %s5 = inlined_call_operand.vmem [shape: f32[1,128], index: 5, kind: input, shape index: {}]
  %s6 = inlined_call_operand.vmem [shape: f32[1,128], index: 6, kind: input, shape index: {}]
  %s7 = inlined_call_operand.vmem [shape: bf16[32,128], index: 7, kind: output, shape index: {}]
  %s8 = sld [smem:[#allocation0]]
  $region38: #{_lambda_.15} parent=0
    _
  %s10 = ssub.s32 1, %s8
  %s11 = scalar_select 0, %s10, %s8
  // Predicated region
  $region2: #{_lambda_.15} parent=0 // pred_check
    _
  $region3: #{_lambda_.15} parent=0 // pred_check_branch
    %13 = sbr.rel (0) target = $region5
  $region4: #{_lambda_.15} parent=0 // pred_region
    _
  $region5: #{_lambda_.15} parent=0 // pred_fallthru
    _
  // Predicated region
  $region6: #{_lambda_.15} parent=0 // pred_check
    _
  $region7: #{_lambda_.15} parent=0 // pred_check_branch
    %15 = sbr.rel (0) target = $region9
  $region8: #{_lambda_.15} parent=0 // pred_region
    _
  $region9: #{_lambda_.15} parent=0 // pred_fallthru
    _
  // Predicated region
  $region10: #{_lambda_.15} parent=0 // pred_check
    _
  $region11: #{_lambda_.15} parent=0 // pred_check_branch
    %17 = sbr.rel (0) target = $region13
  $region12: #{_lambda_.15} parent=0 // pred_region
    _
  $region13: #{_lambda_.15} parent=0 // pred_fallthru
    _
  // Predicated region
  $region14: #{_lambda_.15} parent=0 // pred_check
    _
  $region15: #{_lambda_.15} parent=0 // pred_check_branch
    %19 = sbr.rel (0) target = $region17
  $region16: #{_lambda_.15} parent=0 // pred_region
    _
  $region17: #{_lambda_.15} parent=0 // pred_fallthru
    _
  // Predicated region
  $region18: #{_lambda_.15} parent=0 // pred_check
    _
  $region19: #{_lambda_.15} parent=0 // pred_check_branch
    %21 = sbr.rel (0) target = $region21
  $region20: #{_lambda_.15} parent=0 // pred_region
    _
  $region21: #{_lambda_.15} parent=0 // pred_fallthru
    _
  // Predicated region
  $region22: #{_lambda_.15} parent=0 // pred_check
    _
  $region23: #{_lambda_.15} parent=0 // pred_check_branch
    %23 = sbr.rel (0) target = $region25
  $region24: #{_lambda_.15} parent=0 // pred_region
    _
  $region25: #{_lambda_.15} parent=0 // pred_fallthru
    _
  // Predicated region
  $region26: #{_lambda_.15} parent=0 // pred_check
    _
  $region27: #{_lambda_.15} parent=0 // pred_check_branch
    %25 = sbr.rel (0) target = $region29
  $region28: #{_lambda_.15} parent=0 // pred_region
    _
  $region29: #{_lambda_.15} parent=0 // pred_fallthru
    _
  %v27 = vld [vmem:[%s0] sm:$0xf]
  %v28 = vld [vmem:[%s0 + $0x4] sm:$0xf]
  %v29 = vld [vmem:[%s0 + $0x8] sm:$0xf]
  %v30 = vld [vmem:[%s0 + $0xc] sm:$0xf]
  %31 = vst [vmem:[#allocation2] sm:$0xff] 0.0
  %32 = vst [vmem:[#allocation2 + $0x8] sm:$0xff] 0.0
  %33 = vst [vmem:[#allocation2 + $0x10] sm:$0xff] 0.0
  %34 = vst [vmem:[#allocation2 + $0x18] sm:$0xff] 0.0
  %v35 = vld [vmem:[%s1] sm:$0xff]
  %v36 = vld [vmem:[%s1 + $0x10] sm:$0xff]
  %v37 = vld [vmem:[%s1 + $0x20] sm:$0xff]
  %v38 = vld [vmem:[%s1 + $0x30] sm:$0xff]
  %v39 = vld [vmem:[%s1 + $0x40] sm:$0xff]
  %v40 = vld [vmem:[%s1 + $0x50] sm:$0xff]
  %v41 = vld [vmem:[%s1 + $0x60] sm:$0xff]
  %v42 = vld [vmem:[%s1 + $0x70] sm:$0xff]
  %v43 = vld [vmem:[%s1 + $0x80] sm:$0xff]
  %v44 = vld [vmem:[%s1 + $0x90] sm:$0xff]
  %v45 = vld [vmem:[%s1 + $0xa0] sm:$0xff]
  %v46 = vld [vmem:[%s1 + $0xb0] sm:$0xff]
  %v47 = vld [vmem:[%s1 + $0xc0] sm:$0xff]
  %v48 = vld [vmem:[%s1 + $0xd0] sm:$0xff]
  %v49 = vld [vmem:[%s1 + $0xe0] sm:$0xff]
  %v50 = vld [vmem:[%s1 + $0xf0] sm:$0xff]
  %v51 = vld [vmem:[%s2] sm:$0x3]
  %v53 = vlaneseq
  %v54 = vshrl.u32 %v53, 7
  %v55 = vsub.s32 0, %v54
  %v56 = vrot.slane %v51, %v55
  %v57 = vlaneseq
  %v58 = vshrl.u32 %v57, 7
  %v59 = vsub.s32 1, %v58
  %v60 = vrot.slane %v51, %v59
  %v67 = vunpack.c.l.b16 %v27
  %v68 = vunpack.c.l.b16 %v28
  %v69 = vunpack.c.l.b16 %v29
  %v70 = vunpack.c.l.b16 %v30
  %v71 = vpack.c.b16 %v68, %v67
  %v72 = vpack.c.b16 %v70, %v69
  %v91 = vunpack.c.l.b16 %v35
  %v92 = vunpack.c.h.b16 %v35
  %v93 = vunpack.c.l.b16 %v36
  %v94 = vunpack.c.h.b16 %v36
  %v95 = vunpack.c.l.b16 %v37
  %v96 = vunpack.c.h.b16 %v37
  %v97 = vunpack.c.l.b16 %v38
  %v98 = vunpack.c.h.b16 %v38
  %v99 = vunpack.c.l.b16 %v39
  %v100 = vunpack.c.h.b16 %v39
  %v101 = vunpack.c.l.b16 %v40
  %v102 = vunpack.c.h.b16 %v40
  %v103 = vunpack.c.l.b16 %v41
  %v104 = vunpack.c.h.b16 %v41
  %v105 = vunpack.c.l.b16 %v42
  %v106 = vunpack.c.h.b16 %v42
  %v107 = vunpack.c.l.b16 %v43
  %v108 = vunpack.c.h.b16 %v43
  %v109 = vunpack.c.l.b16 %v44
  %v110 = vunpack.c.h.b16 %v44
  %v111 = vunpack.c.l.b16 %v45
  %v112 = vunpack.c.h.b16 %v45
  %v113 = vunpack.c.l.b16 %v46
  %v114 = vunpack.c.h.b16 %v46
  %v115 = vunpack.c.l.b16 %v47
  %v116 = vunpack.c.h.b16 %v47
  %v117 = vunpack.c.l.b16 %v48
  %v118 = vunpack.c.h.b16 %v48
  %v119 = vunpack.c.l.b16 %v49
  %v120 = vunpack.c.h.b16 %v49
  %v121 = vunpack.c.l.b16 %v50
  %v122 = vunpack.c.h.b16 %v50
  %v123 = vpack.c.b16 %v93, %v91
  %v124 = vpack.c.b16 %v94, %v92
  %v125 = vpack.c.b16 %v97, %v95
  %v126 = vpack.c.b16 %v98, %v96
  %v127 = vpack.c.b16 %v101, %v99
  %v128 = vpack.c.b16 %v102, %v100
  %v129 = vpack.c.b16 %v105, %v103
  %v130 = vpack.c.b16 %v106, %v104
  %v131 = vpack.c.b16 %v109, %v107
  %v132 = vpack.c.b16 %v110, %v108
  %v133 = vpack.c.b16 %v113, %v111
  %v134 = vpack.c.b16 %v114, %v112
  %v135 = vpack.c.b16 %v117, %v115
  %v136 = vpack.c.b16 %v118, %v116
  %v137 = vpack.c.b16 %v121, %v119
  %v138 = vpack.c.b16 %v122, %v120
  %155 = vmatprep.subr.bf16.mxu0 %v138
  %156 = vmatpush1.bf16.msra.mxu0 %v137
  %157 = vmatprep.subr.bf16.mxu0 %v136
  %158 = vmatpush1.bf16.msra.mxu0 %v135
  %159 = vmatprep.subr.bf16.mxu0 %v134
  %160 = vmatpush1.bf16.msra.mxu0 %v133
  %161 = vmatprep.subr.bf16.mxu0 %v132
  %162 = vmatpush1.bf16.msra.mxu0 %v131
  %163 = vmatprep.subr.bf16.mxu0 %v130
  %164 = vmatpush1.bf16.msra.mxu0 %v129
  %165 = vmatprep.subr.bf16.mxu0 %v128
  %166 = vmatpush1.bf16.msra.mxu0 %v127
  %167 = vmatprep.subr.bf16.mxu0 %v126
  %168 = vmatpush1.bf16.msra.mxu0 %v125
  %169 = vmatprep.subr.bf16.mxu0 %v124
  %170 = vmatpush1.bf16.msra.mxu0 %v123
  %171 = vmatprep.subr.bf16.mxu0 0
  %172 = vmatpush2.bf16.msra.mxu0 0
  %173 = vmatprep.subr.bf16.mxu0 0
  %174 = vmatpush2.bf16.msra.mxu0 0
  %175 = vmatprep.subr.bf16.mxu0 0
  %176 = vmatpush2.bf16.msra.mxu0 0
  %177 = vmatprep.subr.bf16.mxu0 0
  %178 = vmatpush2.bf16.msra.mxu0 0
  %179 = vmatprep.subr.bf16.mxu0 0
  %180 = vmatpush2.bf16.msra.mxu0 0
  %181 = vmatprep.subr.bf16.mxu0 0
  %182 = vmatpush2.bf16.msra.mxu0 0
  %183 = vmatprep.subr.bf16.mxu0 0
  %184 = vmatpush2.bf16.msra.mxu0 0
  %185 = vmatprep.subr.bf16.mxu0 0
  %186 = vmatpush2.bf16.msra.mxu0 0
  %187 = vmatprep.mubr.bf16.mxu0 0
  %188 = vmatmul.mubr.bf16.gmra.mxu0 %v71
  %v189 = vpop.f32.mrf.mxu0
  %v190 = vadd.f32 %v56, %v189
  %v191 = vpop.f32.mrf.mxu0
  %v192 = vadd.f32 %v60, %v191
  %v193 = vpop.f32.mrf.mxu0
  %v194 = vadd.f32 %v56, %v193
  %v195 = vpop.f32.mrf.mxu0
  %v196 = vadd.f32 %v60, %v195
  %197 = vmatprep.mubr.bf16.mxu0 0
  %198 = vmatmul.mubr.bf16.gmra.mxu0 %v72
  %v199 = vpop.f32.mrf.mxu0
  %v200 = vadd.f32 %v56, %v199
  %v201 = vpop.f32.mrf.mxu0
  %v202 = vadd.f32 %v60, %v201
  %v203 = vpop.f32.mrf.mxu0
  %v204 = vadd.f32 %v56, %v203
  %v205 = vpop.f32.mrf.mxu0
  %v206 = vadd.f32 %v60, %v205
  %207 = vdwg.mxu0
  %v208 = vmul.f32 %v190, 0.5
  %v209 = vmul.f32 %v192, 0.5
  %v210 = vmul.f32 %v194, 0.5
  %v211 = vmul.f32 %v196, 0.5
  %v212 = vmul.f32 %v200, 0.5
  %v213 = vmul.f32 %v202, 0.5
  %v214 = vmul.f32 %v204, 0.5
  %v215 = vmul.f32 %v206, 0.5
  %v216 = vmul.f32 %v190, 0.70710677
  %v217 = vmul.f32 %v192, 0.70710677
  %v218 = vmul.f32 %v194, 0.70710677
  %v219 = vmul.f32 %v196, 0.70710677
  %v220 = vmul.f32 %v200, 0.70710677
  %v221 = vmul.f32 %v202, 0.70710677
  %v222 = vmul.f32 %v204, 0.70710677
  %v223 = vmul.f32 %v206, 0.70710677
  %vm224 = vcmp.ge.f32.partialorder %v216, 0.0
  %vm225 = vcmp.ge.f32.partialorder %v217, 0.0
  %vm226 = vcmp.ge.f32.partialorder %v218, 0.0
  %vm227 = vcmp.ge.f32.partialorder %v219, 0.0
  %vm228 = vcmp.ge.f32.partialorder %v220, 0.0
  %vm229 = vcmp.ge.f32.partialorder %v221, 0.0
  %vm230 = vcmp.ge.f32.partialorder %v222, 0.0
  %vm231 = vcmp.ge.f32.partialorder %v223, 0.0
  %v232 = vsel %vm224, 1.0, -1.0
  %v233 = vsel %vm225, 1.0, -1.0
  %v234 = vsel %vm226, 1.0, -1.0
  %v235 = vsel %vm227, 1.0, -1.0
  %v236 = vsel %vm228, 1.0, -1.0
  %v237 = vsel %vm229, 1.0, -1.0
  %v238 = vsel %vm230, 1.0, -1.0
  %v239 = vsel %vm231, 1.0, -1.0
  %v240 = vand.u32 2147483647, %v216
  %v241 = vand.u32 2147483647, %v217
  %v242 = vand.u32 2147483647, %v218
  %v243 = vand.u32 2147483647, %v219
  %v244 = vand.u32 2147483647, %v220
  %v245 = vand.u32 2147483647, %v221
  %v246 = vand.u32 2147483647, %v222
  %v247 = vand.u32 2147483647, %v223
  %v248 = vmul.f32 %v240, 0.3275911
  %v249 = vmul.f32 %v241, 0.3275911
  %v250 = vmul.f32 %v242, 0.3275911
  %v251 = vmul.f32 %v243, 0.3275911
  %v252 = vmul.f32 %v244, 0.3275911
  %v253 = vmul.f32 %v245, 0.3275911
  %v254 = vmul.f32 %v246, 0.3275911
  %v255 = vmul.f32 %v247, 0.3275911
  %v256 = vadd.f32 %v248, 1.0
  %v257 = vadd.f32 %v249, 1.0
  %v258 = vadd.f32 %v250, 1.0
  %v259 = vadd.f32 %v251, 1.0
  %v260 = vadd.f32 %v252, 1.0
  %v261 = vadd.f32 %v253, 1.0
  %v262 = vadd.f32 %v254, 1.0
  %v263 = vadd.f32 %v255, 1.0
  %v264 = vrcp.pop %v256
  %v265 = vmul.f32 1.0, %v264
  %v266 = vrcp.pop %v257
  %v267 = vmul.f32 1.0, %v266
  %v268 = vrcp.pop %v258
  %v269 = vmul.f32 1.0, %v268
  %v270 = vrcp.pop %v259
  %v271 = vmul.f32 1.0, %v270
  %v272 = vrcp.pop %v260
  %v273 = vmul.f32 1.0, %v272
  %v274 = vrcp.pop %v261
  %v275 = vmul.f32 1.0, %v274
  %v276 = vrcp.pop %v262
  %v277 = vmul.f32 1.0, %v276
  %v278 = vrcp.pop %v263
  %v279 = vmul.f32 1.0, %v278
  %v280 = vmul.f32 %v265, 1.0614054
  %v281 = vmul.f32 %v267, 1.0614054
  %v282 = vmul.f32 %v269, 1.0614054
  %v283 = vmul.f32 %v271, 1.0614054
  %v284 = vmul.f32 %v273, 1.0614054
  %v285 = vmul.f32 %v275, 1.0614054
  %v286 = vmul.f32 %v277, 1.0614054
  %v287 = vmul.f32 %v279, 1.0614054
  %v288 = vadd.f32 %v280, -1.4531521
  %v289 = vadd.f32 %v281, -1.4531521
  %v290 = vadd.f32 %v282, -1.4531521
  %v291 = vadd.f32 %v283, -1.4531521
  %v292 = vadd.f32 %v284, -1.4531521
  %v293 = vadd.f32 %v285, -1.4531521
  %v294 = vadd.f32 %v286, -1.4531521
  %v295 = vadd.f32 %v287, -1.4531521
  %v296 = vmul.f32 %v288, %v265
  %v297 = vmul.f32 %v289, %v267
  %v298 = vmul.f32 %v290, %v269
  %v299 = vmul.f32 %v291, %v271
  %v300 = vmul.f32 %v292, %v273
  %v301 = vmul.f32 %v293, %v275
  %v302 = vmul.f32 %v294, %v277
  %v303 = vmul.f32 %v295, %v279
  %v304 = vadd.f32 %v296, 1.4214138
  %v305 = vadd.f32 %v297, 1.4214138
  %v306 = vadd.f32 %v298, 1.4214138
  %v307 = vadd.f32 %v299, 1.4214138
  %v308 = vadd.f32 %v300, 1.4214138
  %v309 = vadd.f32 %v301, 1.4214138
  %v310 = vadd.f32 %v302, 1.4214138
  %v311 = vadd.f32 %v303, 1.4214138
  %v312 = vmul.f32 %v304, %v265
  %v313 = vmul.f32 %v305, %v267
  %v314 = vmul.f32 %v306, %v269
  %v315 = vmul.f32 %v307, %v271
  %v316 = vmul.f32 %v308, %v273
  %v317 = vmul.f32 %v309, %v275
  %v318 = vmul.f32 %v310, %v277
  %v319 = vmul.f32 %v311, %v279
  %v320 = vadd.f32 %v312, -0.28449672
  %v321 = vadd.f32 %v313, -0.28449672
  %v322 = vadd.f32 %v314, -0.28449672
  %v323 = vadd.f32 %v315, -0.28449672
  %v324 = vadd.f32 %v316, -0.28449672
  %v325 = vadd.f32 %v317, -0.28449672
  %v326 = vadd.f32 %v318, -0.28449672
  %v327 = vadd.f32 %v319, -0.28449672
  %v328 = vmul.f32 %v320, %v265
  %v329 = vmul.f32 %v321, %v267
  %v330 = vmul.f32 %v322, %v269
  %v331 = vmul.f32 %v323, %v271
  %v332 = vmul.f32 %v324, %v273
  %v333 = vmul.f32 %v325, %v275
  %v334 = vmul.f32 %v326, %v277
  %v335 = vmul.f32 %v327, %v279
  %v336 = vadd.f32 %v328, 0.2548296
  %v337 = vadd.f32 %v329, 0.2548296
  %v338 = vadd.f32 %v330, 0.2548296
  %v339 = vadd.f32 %v331, 0.2548296
  %v340 = vadd.f32 %v332, 0.2548296
  %v341 = vadd.f32 %v333, 0.2548296
  %v342 = vadd.f32 %v334, 0.2548296
  %v343 = vadd.f32 %v335, 0.2548296
  %v344 = vmul.f32 %v336, %v265
  %v345 = vmul.f32 %v337, %v267
  %v346 = vmul.f32 %v338, %v269
  %v347 = vmul.f32 %v339, %v271
  %v348 = vmul.f32 %v340, %v273
  %v349 = vmul.f32 %v341, %v275
  %v350 = vmul.f32 %v342, %v277
  %v351 = vmul.f32 %v343, %v279
  %v352 = vsub.f32 0.0, %v240
  %v353 = vsub.f32 0.0, %v241
  %v354 = vsub.f32 0.0, %v242
  %v355 = vsub.f32 0.0, %v243
  %v356 = vsub.f32 0.0, %v244
  %v357 = vsub.f32 0.0, %v245
  %v358 = vsub.f32 0.0, %v246
  %v359 = vsub.f32 0.0, %v247
  %v360 = vmul.f32 %v352, %v240
  %v361 = vmul.f32 %v353, %v241
  %v362 = vmul.f32 %v354, %v242
  %v363 = vmul.f32 %v355, %v243
  %v364 = vmul.f32 %v356, %v244
  %v365 = vmul.f32 %v357, %v245
  %v366 = vmul.f32 %v358, %v246
  %v367 = vmul.f32 %v359, %v247
  %v368 = vmul.f32 %v360, 1.442695
  %v369 = vpow.pop %v368
  %v370 = vmul.f32 %v361, 1.442695
  %v371 = vpow.pop %v370
  %v372 = vmul.f32 %v362, 1.442695
  %v373 = vpow.pop %v372
  %v374 = vmul.f32 %v363, 1.442695
  %v375 = vpow.pop %v374
  %v376 = vmul.f32 %v364, 1.442695
  %v377 = vpow.pop %v376
  %v378 = vmul.f32 %v365, 1.442695
  %v379 = vpow.pop %v378
  %v380 = vmul.f32 %v366, 1.442695
  %v381 = vpow.pop %v380
  %v382 = vmul.f32 %v367, 1.442695
  %v383 = vpow.pop %v382
  %v384 = vmul.f32 %v344, %v369
  %v385 = vmul.f32 %v345, %v371
  %v386 = vmul.f32 %v346, %v373
  %v387 = vmul.f32 %v347, %v375
  %v388 = vmul.f32 %v348, %v377
  %v389 = vmul.f32 %v349, %v379
  %v390 = vmul.f32 %v350, %v381
  %v391 = vmul.f32 %v351, %v383
  %v392 = vsub.f32 1.0, %v384
  %v393 = vsub.f32 1.0, %v385
  %v394 = vsub.f32 1.0, %v386
  %v395 = vsub.f32 1.0, %v387
  %v396 = vsub.f32 1.0, %v388
  %v397 = vsub.f32 1.0, %v389
  %v398 = vsub.f32 1.0, %v390
  %v399 = vsub.f32 1.0, %v391
  %v400 = vmul.f32 %v232, %v392
  %v401 = vmul.f32 %v233, %v393
  %v402 = vmul.f32 %v234, %v394
  %v403 = vmul.f32 %v235, %v395
  %v404 = vmul.f32 %v236, %v396
  %v405 = vmul.f32 %v237, %v397
  %v406 = vmul.f32 %v238, %v398
  %v407 = vmul.f32 %v239, %v399
  %v408 = vadd.f32 %v400, 1.0
  %v409 = vadd.f32 %v401, 1.0
  %v410 = vadd.f32 %v402, 1.0
  %v411 = vadd.f32 %v403, 1.0
  %v412 = vadd.f32 %v404, 1.0
  %v413 = vadd.f32 %v405, 1.0
  %v414 = vadd.f32 %v406, 1.0
  %v415 = vadd.f32 %v407, 1.0
  %v416 = vmul.f32 %v208, %v408
  %v417 = vmul.f32 %v209, %v409
  %v418 = vmul.f32 %v210, %v410
  %v419 = vmul.f32 %v211, %v411
  %v420 = vmul.f32 %v212, %v412
  %v421 = vmul.f32 %v213, %v413
  %v422 = vmul.f32 %v214, %v414
  %v423 = vmul.f32 %v215, %v415
  %v424 = vld [vmem:[#allocation2] sm:$0xff]
  %v425 = vld [vmem:[#allocation2 + $0x8] sm:$0xff]
  %v426 = vld [vmem:[#allocation2 + $0x10] sm:$0xff]
  %v427 = vld [vmem:[#allocation2 + $0x18] sm:$0xff]
  %v428 = vpack.c.bf16 %v418, %v416
  %v429 = vpack.c.bf16 %v419, %v417
  %v430 = vpack.c.bf16 %v422, %v420
  %v431 = vpack.c.bf16 %v423, %v421
  %v432 = vld [vmem:[%s3] sm:$0xf]
  %v433 = vld [vmem:[%s3 + $0x4] sm:$0xf]
  %v434 = vld [vmem:[%s3 + $0x8] sm:$0xf]
  %v435 = vld [vmem:[%s3 + $0xc] sm:$0xf]
  %v436 = vld [vmem:[%s3 + $0x10] sm:$0xf]
  %v437 = vld [vmem:[%s3 + $0x14] sm:$0xf]
  %v438 = vld [vmem:[%s3 + $0x18] sm:$0xf]
  %v439 = vld [vmem:[%s3 + $0x1c] sm:$0xf]
  %v440 = vld [vmem:[%s3 + $0x20] sm:$0xf]
  %v441 = vld [vmem:[%s3 + $0x24] sm:$0xf]
  %v442 = vld [vmem:[%s3 + $0x28] sm:$0xf]
  %v443 = vld [vmem:[%s3 + $0x2c] sm:$0xf]
  %v444 = vld [vmem:[%s3 + $0x30] sm:$0xf]
  %v445 = vld [vmem:[%s3 + $0x34] sm:$0xf]
  %v446 = vld [vmem:[%s3 + $0x38] sm:$0xf]
  %v447 = vld [vmem:[%s3 + $0x3c] sm:$0xf]
  %v448 = vld [vmem:[%s3 + $0x40] sm:$0xf]
  %v449 = vld [vmem:[%s3 + $0x44] sm:$0xf]
  %v450 = vld [vmem:[%s3 + $0x48] sm:$0xf]
  %v451 = vld [vmem:[%s3 + $0x4c] sm:$0xf]
  %v452 = vld [vmem:[%s3 + $0x50] sm:$0xf]
  %v453 = vld [vmem:[%s3 + $0x54] sm:$0xf]
  %v454 = vld [vmem:[%s3 + $0x58] sm:$0xf]
  %v455 = vld [vmem:[%s3 + $0x5c] sm:$0xf]
  %v456 = vld [vmem:[%s3 + $0x60] sm:$0xf]
  %v457 = vld [vmem:[%s3 + $0x64] sm:$0xf]
  %v458 = vld [vmem:[%s3 + $0x68] sm:$0xf]
  %v459 = vld [vmem:[%s3 + $0x6c] sm:$0xf]
  %v460 = vld [vmem:[%s3 + $0x70] sm:$0xf]
  %v461 = vld [vmem:[%s3 + $0x74] sm:$0xf]
  %v462 = vld [vmem:[%s3 + $0x78] sm:$0xf]
  %v463 = vld [vmem:[%s3 + $0x7c] sm:$0xf]
  %v496 = vunpack.c.l.b16 %v432
  %v497 = vunpack.c.l.b16 %v433
  %v498 = vunpack.c.l.b16 %v434
  %v499 = vunpack.c.l.b16 %v435
  %v500 = vunpack.c.l.b16 %v436
  %v501 = vunpack.c.l.b16 %v437
  %v502 = vunpack.c.l.b16 %v438
  %v503 = vunpack.c.l.b16 %v439
  %v504 = vunpack.c.l.b16 %v440
  %v505 = vunpack.c.l.b16 %v441
  %v506 = vunpack.c.l.b16 %v442
  %v507 = vunpack.c.l.b16 %v443
  %v508 = vunpack.c.l.b16 %v444
  %v509 = vunpack.c.l.b16 %v445
  %v510 = vunpack.c.l.b16 %v446
  %v511 = vunpack.c.l.b16 %v447
  %v512 = vunpack.c.l.b16 %v448
  %v513 = vunpack.c.l.b16 %v449
  %v514 = vunpack.c.l.b16 %v450
  %v515 = vunpack.c.l.b16 %v451
  %v516 = vunpack.c.l.b16 %v452
  %v517 = vunpack.c.l.b16 %v453
  %v518 = vunpack.c.l.b16 %v454
  %v519 = vunpack.c.l.b16 %v455
  %v520 = vunpack.c.l.b16 %v456
  %v521 = vunpack.c.l.b16 %v457
  %v522 = vunpack.c.l.b16 %v458
  %v523 = vunpack.c.l.b16 %v459
  %v524 = vunpack.c.l.b16 %v460
  %v525 = vunpack.c.l.b16 %v461
  %v526 = vunpack.c.l.b16 %v462
  %v527 = vunpack.c.l.b16 %v463
  %v528 = vpack.c.b16 %v497, %v496
  %v529 = vpack.c.b16 %v499, %v498
  %v530 = vpack.c.b16 %v501, %v500
  %v531 = vpack.c.b16 %v503, %v502
  %v532 = vpack.c.b16 %v505, %v504
  %v533 = vpack.c.b16 %v507, %v506
  %v534 = vpack.c.b16 %v509, %v508
  %v535 = vpack.c.b16 %v511, %v510
  %v536 = vpack.c.b16 %v513, %v512
  %v537 = vpack.c.b16 %v515, %v514
  %v538 = vpack.c.b16 %v517, %v516
  %v539 = vpack.c.b16 %v519, %v518
  %v540 = vpack.c.b16 %v521, %v520
  %v541 = vpack.c.b16 %v523, %v522
  %v542 = vpack.c.b16 %v525, %v524
  %v543 = vpack.c.b16 %v527, %v526
  %560 = vmatprep.subr.bf16.mxu0 0
  %561 = vmatpush1.bf16.msra.mxu0 %v535
  %562 = vmatprep.subr.bf16.mxu0 0
  %563 = vmatpush1.bf16.msra.mxu0 %v534
  %564 = vmatprep.subr.bf16.mxu0 0
  %565 = vmatpush1.bf16.msra.mxu0 %v533
  %566 = vmatprep.subr.bf16.mxu0 0
  %567 = vmatpush1.bf16.msra.mxu0 %v532
  %568 = vmatprep.subr.bf16.mxu0 0
  %569 = vmatpush1.bf16.msra.mxu0 %v531
  %570 = vmatprep.subr.bf16.mxu0 0
  %571 = vmatpush1.bf16.msra.mxu0 %v530
  %572 = vmatprep.subr.bf16.mxu0 0
  %573 = vmatpush1.bf16.msra.mxu0 %v529
  %574 = vmatprep.subr.bf16.mxu0 0
  %575 = vmatpush1.bf16.msra.mxu0 %v528
  %576 = vmatprep.subr.bf16.mxu0 0
  %577 = vmatpush2.bf16.msra.mxu0 %v543
  %578 = vmatprep.subr.bf16.mxu0 0
  %579 = vmatpush2.bf16.msra.mxu0 %v542
  %580 = vmatprep.subr.bf16.mxu0 0
  %581 = vmatpush2.bf16.msra.mxu0 %v541
  %582 = vmatprep.subr.bf16.mxu0 0
  %583 = vmatpush2.bf16.msra.mxu0 %v540
  %584 = vmatprep.subr.bf16.mxu0 0
  %585 = vmatpush2.bf16.msra.mxu0 %v539
  %586 = vmatprep.subr.bf16.mxu0 0
  %587 = vmatpush2.bf16.msra.mxu0 %v538
  %588 = vmatprep.subr.bf16.mxu0 0
  %589 = vmatpush2.bf16.msra.mxu0 %v537
  %590 = vmatprep.subr.bf16.mxu0 0
  %591 = vmatpush2.bf16.msra.mxu0 %v536
  %592 = vmatprep.mubr.bf16.mxu0 %v429
  %593 = vmatmul.mubr.bf16.gmra.mxu0 %v428
  %v594 = vpop.f32.mrf.mxu0
  %v595 = vadd.f32 0.0, %v594
  %v596 = vpop.f32.mrf.mxu0
  %v597 = vpop.f32.mrf.mxu0
  %v598 = vadd.f32 0.0, %v597
  %v599 = vpop.f32.mrf.mxu0
  %600 = vmatprep.mubr.bf16.mxu0 %v431
  %601 = vmatmul.mubr.bf16.gmra.mxu0 %v430
  %v602 = vpop.f32.mrf.mxu0
  %v603 = vadd.f32 0.0, %v602
  %v604 = vpop.f32.mrf.mxu0
  %v605 = vpop.f32.mrf.mxu0
  %v606 = vadd.f32 0.0, %v605
  %v607 = vpop.f32.mrf.mxu0
  %608 = vdwg.mxu0
  %v609 = vadd.f32 %v424, %v595
  %v610 = vadd.f32 %v425, %v598
  %v611 = vadd.f32 %v426, %v603
  %v612 = vadd.f32 %v427, %v606
  %613 = vst [vmem:[#allocation2] sm:$0xff] %v609
  %614 = vst [vmem:[#allocation2 + $0x8] sm:$0xff] %v610
  %615 = vst [vmem:[#allocation2 + $0x10] sm:$0xff] %v611
  %616 = vst [vmem:[#allocation2 + $0x18] sm:$0xff] %v612
  %v617 = vld [vmem:[%s1 + $0x8] sm:$0xff]
  %v618 = vld [vmem:[%s1 + $0x18] sm:$0xff]
  %v619 = vld [vmem:[%s1 + $0x28] sm:$0xff]
  %v620 = vld [vmem:[%s1 + $0x38] sm:$0xff]
  %v621 = vld [vmem:[%s1 + $0x48] sm:$0xff]
  %v622 = vld [vmem:[%s1 + $0x58] sm:$0xff]
  %v623 = vld [vmem:[%s1 + $0x68] sm:$0xff]
  %v624 = vld [vmem:[%s1 + $0x78] sm:$0xff]
  %v625 = vld [vmem:[%s1 + $0x88] sm:$0xff]
  %v626 = vld [vmem:[%s1 + $0x98] sm:$0xff]
  %v627 = vld [vmem:[%s1 + $0xa8] sm:$0xff]
  %v628 = vld [vmem:[%s1 + $0xb8] sm:$0xff]
  %v629 = vld [vmem:[%s1 + $0xc8] sm:$0xff]
  %v630 = vld [vmem:[%s1 + $0xd8] sm:$0xff]
  %v631 = vld [vmem:[%s1 + $0xe8] sm:$0xff]
  %v632 = vld [vmem:[%s1 + $0xf8] sm:$0xff]
  %v633 = vld [vmem:[%s2 + $0x2] sm:$0x3]
  %v635 = vlaneseq
  %v636 = vshrl.u32 %v635, 7
  %v637 = vsub.s32 0, %v636
  %v638 = vrot.slane %v633, %v637
  %v639 = vlaneseq
  %v640 = vshrl.u32 %v639, 7
  %v641 = vsub.s32 1, %v640
  %v642 = vrot.slane %v633, %v641
  %v661 = vunpack.c.l.b16 %v617
  %v662 = vunpack.c.h.b16 %v617
  %v663 = vunpack.c.l.b16 %v618
  %v664 = vunpack.c.h.b16 %v618
  %v665 = vunpack.c.l.b16 %v619
  %v666 = vunpack.c.h.b16 %v619
  %v667 = vunpack.c.l.b16 %v620
  %v668 = vunpack.c.h.b16 %v620
  %v669 = vunpack.c.l.b16 %v621
  %v670 = vunpack.c.h.b16 %v621
  %v671 = vunpack.c.l.b16 %v622
  %v672 = vunpack.c.h.b16 %v622
  %v673 = vunpack.c.l.b16 %v623
  %v674 = vunpack.c.h.b16 %v623
  %v675 = vunpack.c.l.b16 %v624
  %v676 = vunpack.c.h.b16 %v624
  %v677 = vunpack.c.l.b16 %v625
  %v678 = vunpack.c.h.b16 %v625
  %v679 = vunpack.c.l.b16 %v626
  %v680 = vunpack.c.h.b16 %v626
  %v681 = vunpack.c.l.b16 %v627
  %v682 = vunpack.c.h.b16 %v627
  %v683 = vunpack.c.l.b16 %v628
  %v684 = vunpack.c.h.b16 %v628
  %v685 = vunpack.c.l.b16 %v629
  %v686 = vunpack.c.h.b16 %v629
  %v687 = vunpack.c.l.b16 %v630
  %v688 = vunpack.c.h.b16 %v630
  %v689 = vunpack.c.l.b16 %v631
  %v690 = vunpack.c.h.b16 %v631
  %v691 = vunpack.c.l.b16 %v632
  %v692 = vunpack.c.h.b16 %v632
  %v693 = vpack.c.b16 %v663, %v661
  %v694 = vpack.c.b16 %v664, %v662
  %v695 = vpack.c.b16 %v667, %v665
  %v696 = vpack.c.b16 %v668, %v666
  %v697 = vpack.c.b16 %v671, %v669
  %v698 = vpack.c.b16 %v672, %v670
  %v699 = vpack.c.b16 %v675, %v673
  %v700 = vpack.c.b16 %v676, %v674
  %v701 = vpack.c.b16 %v679, %v677
  %v702 = vpack.c.b16 %v680, %v678
  %v703 = vpack.c.b16 %v683, %v681
  %v704 = vpack.c.b16 %v684, %v682
  %v705 = vpack.c.b16 %v687, %v685
  %v706 = vpack.c.b16 %v688, %v686
  %v707 = vpack.c.b16 %v691, %v689
  %v708 = vpack.c.b16 %v692, %v690
  %725 = vmatprep.subr.bf16.mxu0 %v708
  %726 = vmatpush1.bf16.msra.mxu0 %v707
  %727 = vmatprep.subr.bf16.mxu0 %v706
  %728 = vmatpush1.bf16.msra.mxu0 %v705
  %729 = vmatprep.subr.bf16.mxu0 %v704
  %730 = vmatpush1.bf16.msra.mxu0 %v703
  %731 = vmatprep.subr.bf16.mxu0 %v702
  %732 = vmatpush1.bf16.msra.mxu0 %v701
  %733 = vmatprep.subr.bf16.mxu0 %v700
  %734 = vmatpush1.bf16.msra.mxu0 %v699
  %735 = vmatprep.subr.bf16.mxu0 %v698
  %736 = vmatpush1.bf16.msra.mxu0 %v697
  %737 = vmatprep.subr.bf16.mxu0 %v696
  %738 = vmatpush1.bf16.msra.mxu0 %v695
  %739 = vmatprep.subr.bf16.mxu0 %v694
  %740 = vmatpush1.bf16.msra.mxu0 %v693
  %741 = vmatprep.subr.bf16.mxu0 0
  %742 = vmatpush2.bf16.msra.mxu0 0
  %743 = vmatprep.subr.bf16.mxu0 0
  %744 = vmatpush2.bf16.msra.mxu0 0
  %745 = vmatprep.subr.bf16.mxu0 0
  %746 = vmatpush2.bf16.msra.mxu0 0
  %747 = vmatprep.subr.bf16.mxu0 0
  %748 = vmatpush2.bf16.msra.mxu0 0
  %749 = vmatprep.subr.bf16.mxu0 0
  %750 = vmatpush2.bf16.msra.mxu0 0
  %751 = vmatprep.subr.bf16.mxu0 0
  %752 = vmatpush2.bf16.msra.mxu0 0
  %753 = vmatprep.subr.bf16.mxu0 0
  %754 = vmatpush2.bf16.msra.mxu0 0
  %755 = vmatprep.subr.bf16.mxu0 0
  %756 = vmatpush2.bf16.msra.mxu0 0
  %757 = vmatprep.mubr.bf16.mxu0 0
  %758 = vmatmul.mubr.bf16.gmra.mxu0 %v71
  %v759 = vpop.f32.mrf.mxu0
  %v760 = vadd.f32 %v638, %v759
  %v761 = vpop.f32.mrf.mxu0
  %v762 = vadd.f32 %v642, %v761
  %v763 = vpop.f32.mrf.mxu0
  %v764 = vadd.f32 %v638, %v763
  %v765 = vpop.f32.mrf.mxu0
  %v766 = vadd.f32 %v642, %v765
  %767 = vmatprep.mubr.bf16.mxu0 0
  %768 = vmatmul.mubr.bf16.gmra.mxu0 %v72
  %v769 = vpop.f32.mrf.mxu0
  %v770 = vadd.f32 %v638, %v769
  %v771 = vpop.f32.mrf.mxu0
  %v772 = vadd.f32 %v642, %v771
  %v773 = vpop.f32.mrf.mxu0
  %v774 = vadd.f32 %v638, %v773
  %v775 = vpop.f32.mrf.mxu0
  %v776 = vadd.f32 %v642, %v775
  %777 = vdwg.mxu0
  %v778 = vmul.f32 %v760, 0.5
  %v779 = vmul.f32 %v762, 0.5
  %v780 = vmul.f32 %v764, 0.5
  %v781 = vmul.f32 %v766, 0.5
  %v782 = vmul.f32 %v770, 0.5
  %v783 = vmul.f32 %v772, 0.5
  %v784 = vmul.f32 %v774, 0.5
  %v785 = vmul.f32 %v776, 0.5
  %v786 = vmul.f32 %v760, 0.70710677
  %v787 = vmul.f32 %v762, 0.70710677
  %v788 = vmul.f32 %v764, 0.70710677
  %v789 = vmul.f32 %v766, 0.70710677
  %v790 = vmul.f32 %v770, 0.70710677
  %v791 = vmul.f32 %v772, 0.70710677
  %v792 = vmul.f32 %v774, 0.70710677
  %v793 = vmul.f32 %v776, 0.70710677
  %vm794 = vcmp.ge.f32.partialorder %v786, 0.0
  %vm795 = vcmp.ge.f32.partialorder %v787, 0.0
  %vm796 = vcmp.ge.f32.partialorder %v788, 0.0
  %vm797 = vcmp.ge.f32.partialorder %v789, 0.0
  %vm798 = vcmp.ge.f32.partialorder %v790, 0.0
  %vm799 = vcmp.ge.f32.partialorder %v791, 0.0
  %vm800 = vcmp.ge.f32.partialorder %v792, 0.0
  %vm801 = vcmp.ge.f32.partialorder %v793, 0.0
  %v802 = vsel %vm794, 1.0, -1.0
  %v803 = vsel %vm795, 1.0, -1.0
  %v804 = vsel %vm796, 1.0, -1.0
  %v805 = vsel %vm797, 1.0, -1.0
  %v806 = vsel %vm798, 1.0, -1.0
  %v807 = vsel %vm799, 1.0, -1.0
  %v808 = vsel %vm800, 1.0, -1.0
  %v809 = vsel %vm801, 1.0, -1.0
  %v810 = vand.u32 2147483647, %v786
  %v811 = vand.u32 2147483647, %v787
  %v812 = vand.u32 2147483647, %v788
  %v813 = vand.u32 2147483647, %v789
  %v814 = vand.u32 2147483647, %v790
  %v815 = vand.u32 2147483647, %v791
  %v816 = vand.u32 2147483647, %v792
  %v817 = vand.u32 2147483647, %v793
  %v818 = vmul.f32 %v810, 0.3275911
  %v819 = vmul.f32 %v811, 0.3275911
  %v820 = vmul.f32 %v812, 0.3275911
  %v821 = vmul.f32 %v813, 0.3275911
  %v822 = vmul.f32 %v814, 0.3275911
  %v823 = vmul.f32 %v815, 0.3275911
  %v824 = vmul.f32 %v816, 0.3275911
  %v825 = vmul.f32 %v817, 0.3275911
  %v826 = vadd.f32 %v818, 1.0
  %v827 = vadd.f32 %v819, 1.0
  %v828 = vadd.f32 %v820, 1.0
  %v829 = vadd.f32 %v821, 1.0
  %v830 = vadd.f32 %v822, 1.0
  %v831 = vadd.f32 %v823, 1.0
  %v832 = vadd.f32 %v824, 1.0
  %v833 = vadd.f32 %v825, 1.0
  %v834 = vrcp.pop %v826
  %v835 = vmul.f32 1.0, %v834
  %v836 = vrcp.pop %v827
  %v837 = vmul.f32 1.0, %v836
  %v838 = vrcp.pop %v828
  %v839 = vmul.f32 1.0, %v838
  %v840 = vrcp.pop %v829
  %v841 = vmul.f32 1.0, %v840
  %v842 = vrcp.pop %v830
  %v843 = vmul.f32 1.0, %v842
  %v844 = vrcp.pop %v831
  %v845 = vmul.f32 1.0, %v844
  %v846 = vrcp.pop %v832
  %v847 = vmul.f32 1.0, %v846
  %v848 = vrcp.pop %v833
  %v849 = vmul.f32 1.0, %v848
  %v850 = vmul.f32 %v835, 1.0614054
  %v851 = vmul.f32 %v837, 1.0614054
  %v852 = vmul.f32 %v839, 1.0614054
  %v853 = vmul.f32 %v841, 1.0614054
  %v854 = vmul.f32 %v843, 1.0614054
  %v855 = vmul.f32 %v845, 1.0614054
  %v856 = vmul.f32 %v847, 1.0614054
  %v857 = vmul.f32 %v849, 1.0614054
  %v858 = vadd.f32 %v850, -1.4531521
  %v859 = vadd.f32 %v851, -1.4531521
  %v860 = vadd.f32 %v852, -1.4531521
  %v861 = vadd.f32 %v853, -1.4531521
  %v862 = vadd.f32 %v854, -1.4531521
  %v863 = vadd.f32 %v855, -1.4531521
  %v864 = vadd.f32 %v856, -1.4531521
  %v865 = vadd.f32 %v857, -1.4531521
  %v866 = vmul.f32 %v858, %v835
  %v867 = vmul.f32 %v859, %v837
  %v868 = vmul.f32 %v860, %v839
  %v869 = vmul.f32 %v861, %v841
  %v870 = vmul.f32 %v862, %v843
  %v871 = vmul.f32 %v863, %v845
  %v872 = vmul.f32 %v864, %v847
  %v873 = vmul.f32 %v865, %v849
  %v874 = vadd.f32 %v866, 1.4214138
  %v875 = vadd.f32 %v867, 1.4214138
  %v876 = vadd.f32 %v868, 1.4214138
  %v877 = vadd.f32 %v869, 1.4214138
  %v878 = vadd.f32 %v870, 1.4214138
  %v879 = vadd.f32 %v871, 1.4214138
  %v880 = vadd.f32 %v872, 1.4214138
  %v881 = vadd.f32 %v873, 1.4214138
  %v882 = vmul.f32 %v874, %v835
  %v883 = vmul.f32 %v875, %v837
  %v884 = vmul.f32 %v876, %v839
  %v885 = vmul.f32 %v877, %v841
  %v886 = vmul.f32 %v878, %v843
  %v887 = vmul.f32 %v879, %v845
  %v888 = vmul.f32 %v880, %v847
  %v889 = vmul.f32 %v881, %v849
  %v890 = vadd.f32 %v882, -0.28449672
  %v891 = vadd.f32 %v883, -0.28449672
  %v892 = vadd.f32 %v884, -0.28449672
  %v893 = vadd.f32 %v885, -0.28449672
  %v894 = vadd.f32 %v886, -0.28449672
  %v895 = vadd.f32 %v887, -0.28449672
  %v896 = vadd.f32 %v888, -0.28449672
  %v897 = vadd.f32 %v889, -0.28449672
  %v898 = vmul.f32 %v890, %v835
  %v899 = vmul.f32 %v891, %v837
  %v900 = vmul.f32 %v892, %v839
  %v901 = vmul.f32 %v893, %v841
  %v902 = vmul.f32 %v894, %v843
  %v903 = vmul.f32 %v895, %v845
  %v904 = vmul.f32 %v896, %v847
  %v905 = vmul.f32 %v897, %v849
  %v906 = vadd.f32 %v898, 0.2548296
  %v907 = vadd.f32 %v899, 0.2548296
  %v908 = vadd.f32 %v900, 0.2548296
  %v909 = vadd.f32 %v901, 0.2548296
  %v910 = vadd.f32 %v902, 0.2548296
  %v911 = vadd.f32 %v903, 0.2548296
  %v912 = vadd.f32 %v904, 0.2548296
  %v913 = vadd.f32 %v905, 0.2548296
  %v914 = vmul.f32 %v906, %v835
  %v915 = vmul.f32 %v907, %v837
  %v916 = vmul.f32 %v908, %v839
  %v917 = vmul.f32 %v909, %v841
  %v918 = vmul.f32 %v910, %v843
  %v919 = vmul.f32 %v911, %v845
  %v920 = vmul.f32 %v912, %v847
  %v921 = vmul.f32 %v913, %v849
  %v922 = vsub.f32 0.0, %v810
  %v923 = vsub.f32 0.0, %v811
  %v924 = vsub.f32 0.0, %v812
  %v925 = vsub.f32 0.0, %v813
  %v926 = vsub.f32 0.0, %v814
  %v927 = vsub.f32 0.0, %v815
  %v928 = vsub.f32 0.0, %v816
  %v929 = vsub.f32 0.0, %v817
  %v930 = vmul.f32 %v922, %v810
  %v931 = vmul.f32 %v923, %v811
  %v932 = vmul.f32 %v924, %v812
  %v933 = vmul.f32 %v925, %v813
  %v934 = vmul.f32 %v926, %v814
  %v935 = vmul.f32 %v927, %v815
  %v936 = vmul.f32 %v928, %v816
  %v937 = vmul.f32 %v929, %v817
  %v938 = vmul.f32 %v930, 1.442695
  %v939 = vpow.pop %v938
  %v940 = vmul.f32 %v931, 1.442695
  %v941 = vpow.pop %v940
  %v942 = vmul.f32 %v932, 1.442695
  %v943 = vpow.pop %v942
  %v944 = vmul.f32 %v933, 1.442695
  %v945 = vpow.pop %v944
  %v946 = vmul.f32 %v934, 1.442695
  %v947 = vpow.pop %v946
  %v948 = vmul.f32 %v935, 1.442695
  %v949 = vpow.pop %v948
  %v950 = vmul.f32 %v936, 1.442695
  %v951 = vpow.pop %v950
  %v952 = vmul.f32 %v937, 1.442695
  %v953 = vpow.pop %v952
  %v954 = vmul.f32 %v914, %v939
  %v955 = vmul.f32 %v915, %v941
  %v956 = vmul.f32 %v916, %v943
  %v957 = vmul.f32 %v917, %v945
  %v958 = vmul.f32 %v918, %v947
  %v959 = vmul.f32 %v919, %v949
  %v960 = vmul.f32 %v920, %v951
  %v961 = vmul.f32 %v921, %v953
  %v962 = vsub.f32 1.0, %v954
  %v963 = vsub.f32 1.0, %v955
  %v964 = vsub.f32 1.0, %v956
  %v965 = vsub.f32 1.0, %v957
  %v966 = vsub.f32 1.0, %v958
  %v967 = vsub.f32 1.0, %v959
  %v968 = vsub.f32 1.0, %v960
  %v969 = vsub.f32 1.0, %v961
  %v970 = vmul.f32 %v802, %v962
  %v971 = vmul.f32 %v803, %v963
  %v972 = vmul.f32 %v804, %v964
  %v973 = vmul.f32 %v805, %v965
  %v974 = vmul.f32 %v806, %v966
  %v975 = vmul.f32 %v807, %v967
  %v976 = vmul.f32 %v808, %v968
  %v977 = vmul.f32 %v809, %v969
  %v978 = vadd.f32 %v970, 1.0
  %v979 = vadd.f32 %v971, 1.0
  %v980 = vadd.f32 %v972, 1.0
  %v981 = vadd.f32 %v973, 1.0
  %v982 = vadd.f32 %v974, 1.0
  %v983 = vadd.f32 %v975, 1.0
  %v984 = vadd.f32 %v976, 1.0
  %v985 = vadd.f32 %v977, 1.0
  %v986 = vmul.f32 %v778, %v978
  %v987 = vmul.f32 %v779, %v979
  %v988 = vmul.f32 %v780, %v980
  %v989 = vmul.f32 %v781, %v981
  %v990 = vmul.f32 %v782, %v982
  %v991 = vmul.f32 %v783, %v983
  %v992 = vmul.f32 %v784, %v984
  %v993 = vmul.f32 %v785, %v985
  %v994 = vld [vmem:[#allocation2] sm:$0xff]
  %v995 = vld [vmem:[#allocation2 + $0x8] sm:$0xff]
  %v996 = vld [vmem:[#allocation2 + $0x10] sm:$0xff]
  %v997 = vld [vmem:[#allocation2 + $0x18] sm:$0xff]
  %v998 = vpack.c.bf16 %v988, %v986
  %v999 = vpack.c.bf16 %v989, %v987
  %v1000 = vpack.c.bf16 %v992, %v990
  %v1001 = vpack.c.bf16 %v993, %v991
  %v1002 = vld [vmem:[%s3 + $0x80] sm:$0xf]
  %v1003 = vld [vmem:[%s3 + $0x84] sm:$0xf]
  %v1004 = vld [vmem:[%s3 + $0x88] sm:$0xf]
  %v1005 = vld [vmem:[%s3 + $0x8c] sm:$0xf]
  %v1006 = vld [vmem:[%s3 + $0x90] sm:$0xf]
  %v1007 = vld [vmem:[%s3 + $0x94] sm:$0xf]
  %v1008 = vld [vmem:[%s3 + $0x98] sm:$0xf]
  %v1009 = vld [vmem:[%s3 + $0x9c] sm:$0xf]
  %v1010 = vld [vmem:[%s3 + $0xa0] sm:$0xf]
  %v1011 = vld [vmem:[%s3 + $0xa4] sm:$0xf]
  %v1012 = vld [vmem:[%s3 + $0xa8] sm:$0xf]
  %v1013 = vld [vmem:[%s3 + $0xac] sm:$0xf]
  %v1014 = vld [vmem:[%s3 + $0xb0] sm:$0xf]
  %v1015 = vld [vmem:[%s3 + $0xb4] sm:$0xf]
  %v1016 = vld [vmem:[%s3 + $0xb8] sm:$0xf]
  %v1017 = vld [vmem:[%s3 + $0xbc] sm:$0xf]
  %v1018 = vld [vmem:[%s3 + $0xc0] sm:$0xf]
  %v1019 = vld [vmem:[%s3 + $0xc4] sm:$0xf]
  %v1020 = vld [vmem:[%s3 + $0xc8] sm:$0xf]
  %v1021 = vld [vmem:[%s3 + $0xcc] sm:$0xf]
  %v1022 = vld [vmem:[%s3 + $0xd0] sm:$0xf]
  %v1023 = vld [vmem:[%s3 + $0xd4] sm:$0xf]
  %v1024 = vld [vmem:[%s3 + $0xd8] sm:$0xf]
  %v1025 = vld [vmem:[%s3 + $0xdc] sm:$0xf]
  %v1026 = vld [vmem:[%s3 + $0xe0] sm:$0xf]
  %v1027 = vld [vmem:[%s3 + $0xe4] sm:$0xf]
  %v1028 = vld [vmem:[%s3 + $0xe8] sm:$0xf]
  %v1029 = vld [vmem:[%s3 + $0xec] sm:$0xf]
  %v1030 = vld [vmem:[%s3 + $0xf0] sm:$0xf]
  %v1031 = vld [vmem:[%s3 + $0xf4] sm:$0xf]
  %v1032 = vld [vmem:[%s3 + $0xf8] sm:$0xf]
  %v1033 = vld [vmem:[%s3 + $0xfc] sm:$0xf]
  %v1066 = vunpack.c.l.b16 %v1002
  %v1067 = vunpack.c.l.b16 %v1003
  %v1068 = vunpack.c.l.b16 %v1004
  %v1069 = vunpack.c.l.b16 %v1005
  %v1070 = vunpack.c.l.b16 %v1006
  %v1071 = vunpack.c.l.b16 %v1007
  %v1072 = vunpack.c.l.b16 %v1008
  %v1073 = vunpack.c.l.b16 %v1009
  %v1074 = vunpack.c.l.b16 %v1010
  %v1075 = vunpack.c.l.b16 %v1011
  %v1076 = vunpack.c.l.b16 %v1012
  %v1077 = vunpack.c.l.b16 %v1013
  %v1078 = vunpack.c.l.b16 %v1014
  %v1079 = vunpack.c.l.b16 %v1015
  %v1080 = vunpack.c.l.b16 %v1016
  %v1081 = vunpack.c.l.b16 %v1017
  %v1082 = vunpack.c.l.b16 %v1018
  %v1083 = vunpack.c.l.b16 %v1019
  %v1084 = vunpack.c.l.b16 %v1020
  %v1085 = vunpack.c.l.b16 %v1021
  %v1086 = vunpack.c.l.b16 %v1022
  %v1087 = vunpack.c.l.b16 %v1023
  %v1088 = vunpack.c.l.b16 %v1024
  %v1089 = vunpack.c.l.b16 %v1025
  %v1090 = vunpack.c.l.b16 %v1026
  %v1091 = vunpack.c.l.b16 %v1027
  %v1092 = vunpack.c.l.b16 %v1028
  %v1093 = vunpack.c.l.b16 %v1029
  %v1094 = vunpack.c.l.b16 %v1030
  %v1095 = vunpack.c.l.b16 %v1031
  %v1096 = vunpack.c.l.b16 %v1032
  %v1097 = vunpack.c.l.b16 %v1033
  %v1098 = vpack.c.b16 %v1067, %v1066
  %v1099 = vpack.c.b16 %v1069, %v1068
  %v1100 = vpack.c.b16 %v1071, %v1070
  %v1101 = vpack.c.b16 %v1073, %v1072
  %v1102 = vpack.c.b16 %v1075, %v1074
  %v1103 = vpack.c.b16 %v1077, %v1076
  %v1104 = vpack.c.b16 %v1079, %v1078
  %v1105 = vpack.c.b16 %v1081, %v1080
  %v1106 = vpack.c.b16 %v1083, %v1082
  %v1107 = vpack.c.b16 %v1085, %v1084
  %v1108 = vpack.c.b16 %v1087, %v1086
  %v1109 = vpack.c.b16 %v1089, %v1088
  %v1110 = vpack.c.b16 %v1091, %v1090
  %v1111 = vpack.c.b16 %v1093, %v1092
  %v1112 = vpack.c.b16 %v1095, %v1094
  %v1113 = vpack.c.b16 %v1097, %v1096
  %1130 = vmatprep.subr.bf16.mxu0 0
  %1131 = vmatpush1.bf16.msra.mxu0 %v1105
  %1132 = vmatprep.subr.bf16.mxu0 0
  %1133 = vmatpush1.bf16.msra.mxu0 %v1104
  %1134 = vmatprep.subr.bf16.mxu0 0
  %1135 = vmatpush1.bf16.msra.mxu0 %v1103
  %1136 = vmatprep.subr.bf16.mxu0 0
  %1137 = vmatpush1.bf16.msra.mxu0 %v1102
  %1138 = vmatprep.subr.bf16.mxu0 0
  %1139 = vmatpush1.bf16.msra.mxu0 %v1101
  %1140 = vmatprep.subr.bf16.mxu0 0
  %1141 = vmatpush1.bf16.msra.mxu0 %v1100
  %1142 = vmatprep.subr.bf16.mxu0 0
  %1143 = vmatpush1.bf16.msra.mxu0 %v1099
  %1144 = vmatprep.subr.bf16.mxu0 0
  %1145 = vmatpush1.bf16.msra.mxu0 %v1098
  %1146 = vmatprep.subr.bf16.mxu0 0
  %1147 = vmatpush2.bf16.msra.mxu0 %v1113
  %1148 = vmatprep.subr.bf16.mxu0 0
  %1149 = vmatpush2.bf16.msra.mxu0 %v1112
  %1150 = vmatprep.subr.bf16.mxu0 0
  %1151 = vmatpush2.bf16.msra.mxu0 %v1111
  %1152 = vmatprep.subr.bf16.mxu0 0
  %1153 = vmatpush2.bf16.msra.mxu0 %v1110
  %1154 = vmatprep.subr.bf16.mxu0 0
  %1155 = vmatpush2.bf16.msra.mxu0 %v1109
  %1156 = vmatprep.subr.bf16.mxu0 0
  %1157 = vmatpush2.bf16.msra.mxu0 %v1108
  %1158 = vmatprep.subr.bf16.mxu0 0
  %1159 = vmatpush2.bf16.msra.mxu0 %v1107
  %1160 = vmatprep.subr.bf16.mxu0 0
  %1161 = vmatpush2.bf16.msra.mxu0 %v1106
  %1162 = vmatprep.mubr.bf16.mxu0 %v999
  %1163 = vmatmul.mubr.bf16.gmra.mxu0 %v998
  %v1164 = vpop.f32.mrf.mxu0
  %v1165 = vadd.f32 0.0, %v1164
  %v1166 = vpop.f32.mrf.mxu0
  %v1167 = vpop.f32.mrf.mxu0
  %v1168 = vadd.f32 0.0, %v1167
  %v1169 = vpop.f32.mrf.mxu0
  %1170 = vmatprep.mubr.bf16.mxu0 %v1001
  %1171 = vmatmul.mubr.bf16.gmra.mxu0 %v1000
  %v1172 = vpop.f32.mrf.mxu0
  %v1173 = vadd.f32 0.0, %v1172
  %v1174 = vpop.f32.mrf.mxu0
  %v1175 = vpop.f32.mrf.mxu0
  %v1176 = vadd.f32 0.0, %v1175
  %v1177 = vpop.f32.mrf.mxu0
  %1178 = vdwg.mxu0
  %v1179 = vadd.f32 %v994, %v1165
  %v1180 = vadd.f32 %v995, %v1168
  %v1181 = vadd.f32 %v996, %v1173
  %v1182 = vadd.f32 %v997, %v1176
  %1183 = vst [vmem:[#allocation2] sm:$0xff] %v1179
  %1184 = vst [vmem:[#allocation2 + $0x8] sm:$0xff] %v1180
  %1185 = vst [vmem:[#allocation2 + $0x10] sm:$0xff] %v1181
  %1186 = vst [vmem:[#allocation2 + $0x18] sm:$0xff] %v1182
  %v1187 = vld [vmem:[#allocation2] sm:$0xff]
  %v1188 = vld [vmem:[#allocation2 + $0x8] sm:$0xff]
  %v1189 = vld [vmem:[#allocation2 + $0x10] sm:$0xff]
  %v1190 = vld [vmem:[#allocation2 + $0x18] sm:$0xff]
  %v1191 = vld [vmem:[%s4] sm:$0x1]
  %v1193 = vlaneseq
  %v1194 = vshrl.u32 %v1193, 7
  %v1195 = vsub.s32 0, %v1194
  %v1196 = vrot.slane %v1191, %v1195
  %v1198 = vadd.f32 %v1187, %v1196
  %v1199 = vadd.f32 %v1188, %v1196
  %v1200 = vadd.f32 %v1189, %v1196
  %v1201 = vadd.f32 %v1190, %v1196
  %v1202 = vunpack.c.l.bf16 %v27
  %v1203 = vunpack.c.l.bf16 %v28
  %v1204 = vunpack.c.l.bf16 %v29
  %v1205 = vunpack.c.l.bf16 %v30
  %v1206 = vadd.f32 %v1198, %v1202
  %v1207 = vadd.f32 %v1199, %v1203
  %v1208 = vadd.f32 %v1200, %v1204
  %v1209 = vadd.f32 %v1201, %v1205
  %v1210 = vld [vmem:[%s5] sm:$0x1]
  %v1211 = vld [vmem:[%s6] sm:$0x1]
  %1212 = vadd.xlane.f32.xlu0 %v1206
  %v1213 = vpop.xlane.xlu0 %1212
  %1214 = vadd.xlane.f32.xlu0 %v1207
  %v1215 = vpop.xlane.xlu0 %1214
  %1216 = vadd.xlane.f32.xlu0 %v1208
  %v1217 = vpop.xlane.xlu0 %1216
  %1218 = vadd.xlane.f32.xlu0 %v1209
  %v1219 = vpop.xlane.xlu0 %1218
  %v1220 = vrcp.pop 128.0
  %v1221 = vmul.f32 %v1213, %v1220
  %v1222 = vmul.f32 %v1215, %v1220
  %v1223 = vmul.f32 %v1217, %v1220
  %v1224 = vmul.f32 %v1219, %v1220
  %v1225 = vsub.f32 %v1206, %v1221
  %v1226 = vsub.f32 %v1207, %v1222
  %v1227 = vsub.f32 %v1208, %v1223
  %v1228 = vsub.f32 %v1209, %v1224
  %v1229 = vmul.f32 %v1225, %v1225
  %v1230 = vmul.f32 %v1226, %v1226
  %v1231 = vmul.f32 %v1227, %v1227
  %v1232 = vmul.f32 %v1228, %v1228
  %1233 = vadd.xlane.f32.xlu0 %v1229
  %v1234 = vpop.xlane.xlu0 %1233
  %1235 = vadd.xlane.f32.xlu0 %v1230
  %v1236 = vpop.xlane.xlu0 %1235
  %1237 = vadd.xlane.f32.xlu0 %v1231
  %v1238 = vpop.xlane.xlu0 %1237
  %1239 = vadd.xlane.f32.xlu0 %v1232
  %v1240 = vpop.xlane.xlu0 %1239
  %v1241 = vmul.f32 %v1234, %v1220
  %v1242 = vmul.f32 %v1236, %v1220
  %v1243 = vmul.f32 %v1238, %v1220
  %v1244 = vmul.f32 %v1240, %v1220
  %v1245 = vadd.f32 %v1241, 1e-12
  %v1246 = vadd.f32 %v1242, 1e-12
  %v1247 = vadd.f32 %v1243, 1e-12
  %v1248 = vadd.f32 %v1244, 1e-12
  %v1249 = vrsqrt.pop %v1245
  %v1250 = vrsqrt.pop %v1246
  %v1251 = vrsqrt.pop %v1247
  %v1252 = vrsqrt.pop %v1248
  %v1253 = vmul.f32 %v1225, %v1249
  %v1254 = vmul.f32 %v1226, %v1250
  %v1255 = vmul.f32 %v1227, %v1251
  %v1256 = vmul.f32 %v1228, %v1252
  %v1258 = vlaneseq
  %v1259 = vshrl.u32 %v1258, 7
  %v1260 = vsub.s32 0, %v1259
  %v1261 = vrot.slane %v1210, %v1260
  %v1263 = vmul.f32 %v1253, %v1261
  %v1264 = vmul.f32 %v1254, %v1261
  %v1265 = vmul.f32 %v1255, %v1261
  %v1266 = vmul.f32 %v1256, %v1261
  %v1268 = vlaneseq
  %v1269 = vshrl.u32 %v1268, 7
  %v1270 = vsub.s32 0, %v1269
  %v1271 = vrot.slane %v1211, %v1270
  %v1273 = vadd.f32 %v1263, %v1271
  %v1274 = vadd.f32 %v1264, %v1271
  %v1275 = vadd.f32 %v1265, %v1271
  %v1276 = vadd.f32 %v1266, %v1271
  %v1277 = vpack.c.bf16 %v1274, %v1273
  %v1278 = vpack.c.bf16 %v1276, %v1275
  %v1281 = vunpack.c.l.b16 %v1277
  %v1282 = vunpack.c.h.b16 %v1277
  %v1283 = vunpack.c.l.b16 %v1278
  %v1284 = vunpack.c.h.b16 %v1278
  %v1285 = vpack.c.b16 %v1281, %v1281
  %v1286 = vpack.c.b16 %v1282, %v1282
  %v1287 = vpack.c.b16 %v1283, %v1283
  %v1288 = vpack.c.b16 %v1284, %v1284
  %1293 = vst [vmem:[%s7] sm:$0xf] %v1285
  %1294 = vst [vmem:[%s7 + $0x4] sm:$0xf] %v1286
  %1295 = vst [vmem:[%s7 + $0x8] sm:$0xf] %v1287
  %1296 = vst [vmem:[%s7 + $0xc] sm:$0xf] %v1288
  // Predicated region
  $region30: #{_lambda_.15} parent=0 // pred_check
    _
  $region31: #{_lambda_.15} parent=0 // pred_check_branch
    %1298 = sbr.rel (0) target = $region33
  $region32: #{_lambda_.15} parent=0 // pred_region
    _
  $region33: #{_lambda_.15} parent=0 // pred_fallthru
    _
  // Predicated region
  $region34: #{_lambda_.15} parent=0 // pred_check
    _
  $region35: #{_lambda_.15} parent=0 // pred_check_branch
    %1300 = sbr.rel (0) target = $region37
  $region36: #{_lambda_.15} parent=0 // pred_region
    _
  $region37: #{_lambda_.15} parent=0 // pred_fallthru
    _

</llo_original>
